<compile_context>
chip_gen: v7x
topology: tpu7x:2x2x1
jax: 0.10.0
libtpu: 0.0.40
codegen_flags: <defaults>
</compile_context>

<pallas_src>
import jax
import jax.numpy as jnp
from jax.experimental import pallas as pl
from jax.experimental.pallas import tpu as pltpu

BN_EPS = 1e-5


# ----------------------------------------------------------------------------
# Generation-aware VMEM budget
# ----------------------------------------------------------------------------
def _vmem_limit_bytes(default_cap=64 * 1024 * 1024):
    try:
        info = pltpu.get_tpu_info()
        cap = int(getattr(info, "vmem_capacity_bytes", default_cap))
    except Exception:
        cap = default_cap
    # ~48 MiB on a 64 MiB part (v7x), ~96 MiB on a 128 MiB part (v5e/v6e).
    return int(min(cap * 3 // 4, 100 * 1024 * 1024))


def _pick_tile_h(h, w, cout, acc_budget_bytes=128 * 1024):
    """Largest row tile that keeps the f32 accumulator vreg-file sized,
    keeps the output block sublane-aligned, and yields >=2 row tiles so both
    v7x TensorCores can engage even at batch==1."""
    best = h
    for t in range(1, h):
        if h % t:
            continue
        if (t * w) % 8:
            continue
        if t * w * cout * 4 <= acc_budget_bytes:
            best = t
    return best


# ----------------------------------------------------------------------------
# Fused ASPP Pallas kernel (per batch element / row tile / branch grid step)
# ----------------------------------------------------------------------------
def make_aspp_kernel(H, W, D, Cin, Cout, rates, tile_h):
    TH = tile_h
    RW = TH * W
    n_conv = 1 + len(rates)  # 1x1 branch + atrous branches (pool branch is a bias)

    def kernel(xp_ref, w_ref, wproj_ref, shifts_ref, bias_ref, o_ref, acc_ref):
        j = pl.program_id(2)                       # branch index ("arbitrary")
        r = pl.program_id(1)                       # row tile index ("parallel")
        row0 = pl.multiple_of(r * TH, TH)

        @pl.when(j == 0)
        def _():
            acc_ref[...] = jnp.zeros_like(acc_ref)

        def window(dy, dx):
            # Shifted (TH, W, Cin) window read straight off the padded-image
            # ref; dy/dx are static, row0 is a grid-derived dynamic offset on a
            # non-(sublane/lane) dim.  Reshape to 2D for the MXU (W % 8 == 0).
            v = xp_ref[0, pl.ds(row0 + dy, TH), pl.ds(dx, W), :]
            return v.reshape(RW, Cin)

        def project(branch_preact_f32, br_row):
            # Branch BN shift + ReLU, cast to bf16, project with this branch's
            # row-block of the projection weight, accumulate in f32 scratch.
            y = jnp.maximum(
                branch_preact_f32 + shifts_ref[br_row:br_row + 1, :], 0.0)
            acc_ref[...] += jnp.dot(y.astype(jnp.bfloat16), wproj_ref[0],
                                    preferred_element_type=jnp.float32)

        # ---- Branch 0: 1x1 conv (weights stored at the center tap) ----------
        @pl.when(j == 0)
        def _():
            t = 4  # center tap
            a = jnp.dot(window(D, D), w_ref[0, t * Cin:(t + 1) * Cin, :],
                        preferred_element_type=jnp.float32)
            project(a, 0)

        # ---- Atrous branches: 9 accumulated matmuls, static tap offsets -----
        for i, rate in enumerate(rates):
            @pl.when(j == i + 1)
            def _(i=i, rate=rate):
                a = jnp.zeros((RW, Cout), jnp.float32)
                t = 0
                for ky in range(3):
                    for kx in range(3):
                        dy = D + rate * (ky - 1)
                        dx = D + rate * (kx - 1)
                        a = a + jnp.dot(
                            window(dy, dx),
                            w_ref[0, t * Cin:(t + 1) * Cin, :],
                            preferred_element_type=jnp.float32)
                        t += 1
                project(a, i + 1)

        # ---- Finalize: fused (pool-branch projection + proj BN shift) bias,
        #      ReLU, store (Dropout is identity in eval mode). ----------------
        @pl.when(j == n_conv - 1)
        def _():
            o_ref[0] = jnp.maximum(acc_ref[...] + bias_ref[0], 0.0).astype(
                o_ref.dtype)

    return kernel


# ----------------------------------------------------------------------------
# Parameter prep: BN folding + weight layout conversion
# ----------------------------------------------------------------------------
def bn_fold(gamma, beta, mean, var):
    scale = gamma / jnp.sqrt(var + BN_EPS)
    shift = beta - mean * scale
    return scale, shift


def w1x1_to_mat(w_oihw):           # (Cout, Cin, 1, 1) -> (Cin, Cout)
    return w_oihw[:, :, 0, 0].T


def w3x3_to_mat(w_oihw):           # (Cout, Cin, 3, 3) -> (9*Cin, Cout), (ky, kx, cin) rows
    cout = w_oihw.shape[0]
    return jnp.transpose(w_oihw, (2, 3, 1, 0)).reshape(-1, cout)


def fold_bn_into_w(w_mat, bn):
    scale, shift = bn_fold(*bn)
    return w_mat * scale[None, :], shift


# ----------------------------------------------------------------------------
# ASPP forward (single fused Pallas call)
# ----------------------------------------------------------------------------
def aspp_forward(x_nhwc, params, atrous_rates):
    n, h, w, cin = x_nhwc.shape
    rates = list(atrous_rates)
    R = len(rates)
    n_conv = 1 + R
    d = max(rates) if rates else 0

    # BN scale folded into conv weights (compile-time); shift kept additive.
    w0, sh0 = fold_bn_into_w(w1x1_to_mat(params["branch0"]["w"]),
                             params["branch0"]["bn"])
    cout = w0.shape[1]

    w_br = jnp.zeros((n_conv, 9 * cin, cout), jnp.float32)
    w_br = w_br.at[0, 4 * cin:5 * cin, :].set(w0)   # 1x1 weights at center tap
    shifts = [sh0]
    for i in range(R):
        p = params[f"branch_atrous{i}"]
        wm, sb = fold_bn_into_w(w3x3_to_mat(p["w"]), p["bn"])
        w_br = w_br.at[i + 1].set(wm)
        shifts.append(sb)
    shifts = jnp.stack(shifts, axis=0)                               # (n_conv, Cout) f32

    wpool, shpool = fold_bn_into_w(w1x1_to_mat(params["branch_pool"]["w"]),
                                   params["branch_pool"]["bn"])
    wproj, shproj = fold_bn_into_w(w1x1_to_mat(params["project"]["w"]),
                                   params["project"]["bn"])
    wproj_conv = wproj[:n_conv * cout].reshape(n_conv, cout, cout)   # kernel side
    wproj_pool = wproj[n_conv * cout:(n_conv + 1) * cout]            # (Cout, Cout)

    # Pooling branch: global mean + 1x1 conv + BN + ReLU + projection row block,
    # computed ONCE per image in f32 and fused with the projection BN shift
    # into a single (1, Cout) bias (bilinear upsample of a 1x1 map == broadcast).
    pooled = jnp.mean(x_nhwc.astype(jnp.float32), axis=(1, 2))       # (N, Cin) f32
    pb = jnp.maximum(pooled @ wpool + shpool[None, :], 0.0)          # (N, Cout)
    bias = (pb @ wproj_pool + shproj[None, :]).reshape(n, 1, cout)   # (N, 1, Cout) f32

    # Semantically required conv zero-padding (max dilation), then bf16 for MXU.
    xp = jnp.pad(x_nhwc, ((0, 0), (d, d), (d, d), (0, 0))).astype(jnp.bfloat16)
    w_br_bf = w_br.astype(jnp.bfloat16)
    wproj_bf = wproj_conv.astype(jnp.bfloat16)
    hp, wp = h + 2 * d, w + 2 * d

    tile_h = _pick_tile_h(h, w, cout)
    n_rt = h // tile_h

    kernel = make_aspp_kernel(h, w, d, cin, cout, rates, tile_h)

    out = pl.pallas_call(
        kernel,
        out_shape=jax.ShapeDtypeStruct((n, h * w, cout), jnp.float32),
        grid_spec=pltpu.PrefetchScalarGridSpec(
            num_scalar_prefetch=0,
            grid=(n, n_rt, n_conv),
            in_specs=[
                # Padded image: fetched once per batch element (block index
                # ignores the row/branch axes -> no redundant DMA).
                pl.BlockSpec((1, hp, wp, cin), lambda b, r, j: (b, 0, 0, 0)),
                # Per-branch conv weights (only one branch resident at a time).
                pl.BlockSpec((1, 9 * cin, cout), lambda b, r, j: (j, 0, 0)),
                # Per-branch projection row block.
                pl.BlockSpec((1, cout, cout), lambda b, r, j: (j, 0, 0)),
                # Branch BN shifts (tiny, fully resident).
                pl.BlockSpec((n_conv, cout), lambda b, r, j: (0, 0)),
                # Per-image fused bias (pool projection + projection BN shift).
                pl.BlockSpec((1, 1, cout), lambda b, r, j: (b, 0, 0)),
            ],
            out_specs=pl.BlockSpec((1, tile_h * w, cout),
                                   lambda b, r, j: (b, r, 0)),
            scratch_shapes=[pltpu.VMEM((tile_h * w, cout), jnp.float32)],
        ),
        compiler_params=pltpu.CompilerParams(
            dimension_semantics=("parallel", "parallel", "arbitrary"),
            vmem_limit_bytes=_vmem_limit_bytes(),
        ),
    )(xp, w_br_bf, wproj_bf, shifts, bias)

    return out.reshape(n, h, w, cout)


# ----------------------------------------------------------------------------
# Pure-JAX reference (f32) for correctness check
# ----------------------------------------------------------------------------
def aspp_reference(x_nhwc, params, atrous_rates):
    def bnrelu(y, bnp):
        s, b = bn_fold(*bnp)
        return jnp.maximum(y * s + b, 0.0)

    def conv(x, w_oihw, dilation=1, padding=0):
        return jax.lax.conv_general_dilated(
            x, jnp.transpose(w_oihw, (2, 3, 1, 0)),
            window_strides=(1, 1),
            padding=[(padding, padding), (padding, padding)],
            rhs_dilation=(dilation, dilation),
            dimension_numbers=("NHWC", "HWIO", "NHWC"))

    n, h, w, _ = x_nhwc.shape
    outs = []
    p = params["branch0"]
    outs.append(bnrelu(conv(x_nhwc, p["w"]), p["bn"]))
    for i, r in enumerate(atrous_rates):
        p = params[f"branch_atrous{i}"]
        outs.append(bnrelu(conv(x_nhwc, p["w"], dilation=r, padding=r), p["bn"]))
    p = params["branch_pool"]
    pooled = jnp.mean(x_nhwc, axis=(1, 2), keepdims=True)
    pb = bnrelu(conv(pooled, p["w"]), p["bn"])
    outs.append(jnp.broadcast_to(pb, (n, h, w, pb.shape[-1])))
    cat = jnp.concatenate(outs, axis=-1)
    p = params["project"]
    return bnrelu(conv(cat, p["w"]), p["bn"])


# ----------------------------------------------------------------------------
# Deterministic parameter init (shapes from ASPP.__init__)
# ----------------------------------------------------------------------------
def init_params(key, cin, cout, atrous_rates):
    def bn_params(k):
        k1, k2, k3, k4 = jax.random.split(k, 4)
        gamma = 1.0 + 0.1 * jax.random.normal(k1, (cout,), jnp.float32)
        beta = 0.1 * jax.random.normal(k2, (cout,), jnp.float32)
        mean = 0.1 * jax.random.normal(k3, (cout,), jnp.float32)
        var = jnp.abs(jax.random.normal(k4, (cout,), jnp.float32)) + 0.5
        return (gamma, beta, mean, var)

    n_branches = 2 + len(atrous_rates)
    keys = jax.random.split(key, 2 * (n_branches + 1))
    params = {}
    params["branch0"] = {
        "w": 0.1 * jax.random.normal(keys[0], (cout, cin, 1, 1), jnp.float32),
        "bn": bn_params(keys[1]),
    }
    for i in range(len(atrous_rates)):
        params[f"branch_atrous{i}"] = {
            "w": 0.1 * jax.random.normal(keys[2 + 2 * i], (cout, cin, 3, 3), jnp.float32),
            "bn": bn_params(keys[3 + 2 * i]),
        }
    base = 2 + 2 * len(atrous_rates)
    params["branch_pool"] = {
        "w": 0.1 * jax.random.normal(keys[base], (cout, cin, 1, 1), jnp.float32),
        "bn": bn_params(keys[base + 1]),
    }
    params["project"] = {
        "w": 0.1 * jax.random.normal(keys[base + 2], (cout, n_branches * cout, 1, 1), jnp.float32),
        "bn": bn_params(keys[base + 3]),
    }
    return params


if __name__ == "__main__":
    key = jax.random.PRNGKey(0)
    kx, kp = jax.random.split(key)

    # Small shapes consistent with the module: batch=2, in_channels=8, 16x16,
    # out_channels=32, atrous_rates=[2, 4]  => 4 branches, project in = 128.
    N, Cin, H, W = 2, 8, 16, 16
    Cout = 32
    rates = [2, 4]

    x_nchw = jax.random.normal(kx, (N, Cin, H, W), jnp.float32)   # PyTorch layout
    x_nhwc = jnp.transpose(x_nchw, (0, 2, 3, 1))                  # kernel layout

    params = init_params(kp, Cin, Cout, rates)

    out = aspp_forward(x_nhwc, params, rates)
    out = jax.block_until_ready(out)
    assert out.shape == (N, H, W, Cout)

    ref = aspp_reference(x_nhwc, params, rates)
    # bf16 MXU inputs with f32 accumulation -> slightly looser tolerance.
    rel_err = jnp.max(jnp.abs(out - ref)) / (jnp.max(jnp.abs(ref)) + 1e-6)
    assert bool(rel_err < 2e-2), f"mismatch vs reference: rel_err={rel_err}"

    print("KERNEL_OK")
</pallas_src>

<mosaic_0001>
module attributes {stable_mosaic.version = 11 : i64} {
  func.func @kernel(%arg0: i32, %arg1: i32, %arg2: i32, %arg3: memref<1x24x24x8xbf16, #tpu.memory_space<vmem>>, %arg4: memref<1x72x32xbf16, #tpu.memory_space<vmem>>, %arg5: memref<1x32x32xbf16, #tpu.memory_space<vmem>>, %arg6: memref<3x32xf32, #tpu.memory_space<vmem>>, %arg7: memref<1x1x32xf32, #tpu.memory_space<vmem>>, %arg8: memref<1x128x32xf32, #tpu.memory_space<vmem>>, %arg9: memref<128x32xf32, #tpu.memory_space<vmem>>) attributes {dimension_semantics = [#tpu.dimension_semantics<parallel>, #tpu.dimension_semantics<parallel>, #tpu.dimension_semantics<arbitrary>], iteration_bounds = array<i64: 2, 2, 3>, scalar_prefetch = 0 : i64, scratch_operands = 1 : i64, tpu.core_type = #tpu.core_type<tc>, window_params = [{transform_indices = @transform_0, window_bounds = array<i64: 1, 24, 24, 8>}, {transform_indices = @transform_1, window_bounds = array<i64: 1, 72, 32>}, {transform_indices = @transform_2, window_bounds = array<i64: 1, 32, 32>}, {pipeline_mode = #tpu.pipeline_mode<synchronous>, transform_indices = @transform_3, window_bounds = array<i64: 3, 32>}, {transform_indices = @transform_4, window_bounds = array<i64: 1, 1, 32>}, {transform_indices = @transform_5, window_bounds = array<i64: 1, 128, 32>}]} {
    %c8_i32 = arith.constant 8 : i32
    %0 = arith.muli %arg1, %c8_i32 : i32
    %1 = tpu.assume_multiple %0, 8 : i32
    %c0_i32 = arith.constant 0 : i32
    %2 = arith.cmpi eq, %arg2, %c0_i32 : i32
    %3 = arith.extui %2 : i1 to i32
    %c0_i32_0 = arith.constant 0 : i32
    %4 = arith.cmpi ne, %3, %c0_i32_0 : i32
    scf.if %4 {
      %cst = arith.constant 0.000000e+00 : f32
      %17 = vector.broadcast %cst : f32 to vector<128x32xf32>
      %c0 = arith.constant 0 : index
      %c0_7 = arith.constant 0 : index
      %18 = vector.load %arg9[%c0, %c0_7] : memref<128x32xf32, #tpu.memory_space<vmem>>, vector<128x32xf32>
      tpu.vector_store %arg9[%c0, %c0_7], %17 {strides = array<i32>} : memref<128x32xf32, #tpu.memory_space<vmem>>, vector<128x32xf32>,
    } else {
    }
    %c0_i32_1 = arith.constant 0 : i32
    %5 = arith.cmpi eq, %arg2, %c0_i32_1 : i32
    %6 = arith.extui %5 : i1 to i32
    %c0_i32_2 = arith.constant 0 : i32
    %7 = arith.cmpi ne, %6, %c0_i32_2 : i32
    scf.if %7 {
      %c4_i32 = arith.constant 4 : i32
      %17 = arith.addi %1, %c4_i32 : i32
      %c0 = arith.constant 0 : index
      %18 = arith.index_cast %17 : i32 to index
      %c4 = arith.constant 4 : index
      %c0_7 = arith.constant 0 : index
      %19 = vector.load %arg3[%c0, %18, %c4, %c0_7] : memref<1x24x24x8xbf16, #tpu.memory_space<vmem>>, vector<1x8x16x8xbf16>
      %20 = vector.shape_cast %19 : vector<1x8x16x8xbf16> to vector<8x16x8xbf16>
      %21 = vector.shape_cast %20 : vector<8x16x8xbf16> to vector<128x8xbf16>
      %c0_8 = arith.constant 0 : index
      %c32 = arith.constant 32 : index
      %c0_9 = arith.constant 0 : index
      %22 = vector.load %arg4[%c0_8, %c32, %c0_9] : memref<1x72x32xbf16, #tpu.memory_space<vmem>>, vector<1x8x32xbf16>
      %23 = vector.shape_cast %22 : vector<1x8x32xbf16> to vector<8x32xbf16>
      %cst = arith.constant dense<0.000000e+00> : vector<128x32xf32>
      %24 = tpu.matmul %21, %23, %cst {dimension_numbers = #tpu.dot_dimension_numbers<[1], [0], [0], [1], [0, 0, 1, 1], [], []>} : vector<128x8xbf16>, vector<8x32xbf16>, vector<128x32xf32> -> vector<128x32xf32>
      %c0_10 = arith.constant 0 : index
      %c0_11 = arith.constant 0 : index
      %25 = vector.load %arg6[%c0_10, %c0_11] : memref<3x32xf32, #tpu.memory_space<vmem>>, vector<1x32xf32>
      %26 = vector.broadcast %25 : vector<1x32xf32> to vector<128x32xf32>
      %27 = arith.addf %24, %26 : vector<128x32xf32>
      %cst_12 = arith.constant 0.000000e+00 : f32
      %28 = vector.broadcast %cst_12 : f32 to vector<128x32xf32>
      %29 = arith.maximumf %27, %28 : vector<128x32xf32>
      %c0_13 = arith.constant 0 : index
      %c0_14 = arith.constant 0 : index
      %30 = vector.load %arg9[%c0_13, %c0_14] : memref<128x32xf32, #tpu.memory_space<vmem>>, vector<128x32xf32>
      %31 = arith.truncf %29 : vector<128x32xf32> to vector<128x32xbf16>
      %c0_15 = arith.constant 0 : index
      %c0_16 = arith.constant 0 : index
      %c0_17 = arith.constant 0 : index
      %32 = vector.load %arg5[%c0_15, %c0_16, %c0_17] : memref<1x32x32xbf16, #tpu.memory_space<vmem>>, vector<1x32x32xbf16>
      %33 = vector.shape_cast %32 : vector<1x32x32xbf16> to vector<32x32xbf16>
      %cst_18 = arith.constant dense<0.000000e+00> : vector<128x32xf32>
      %34 = tpu.matmul %31, %33, %cst_18 {dimension_numbers = #tpu.dot_dimension_numbers<[1], [0], [0], [1], [0, 0, 1, 1], [], []>} : vector<128x32xbf16>, vector<32x32xbf16>, vector<128x32xf32> -> vector<128x32xf32>
      %35 = arith.addf %30, %34 : vector<128x32xf32>
      %c0_19 = arith.constant 0 : index
      %c0_20 = arith.constant 0 : index
      %36 = vector.load %arg9[%c0_19, %c0_20] : memref<128x32xf32, #tpu.memory_space<vmem>>, vector<128x32xf32>
      tpu.vector_store %arg9[%c0_19, %c0_20], %35 {strides = array<i32>} : memref<128x32xf32, #tpu.memory_space<vmem>>, vector<128x32xf32>,
    } else {
    }
    %c1_i32 = arith.constant 1 : i32
    %8 = arith.cmpi eq, %arg2, %c1_i32 : i32
    %9 = arith.extui %8 : i1 to i32
    %c0_i32_3 = arith.constant 0 : i32
    %10 = arith.cmpi ne, %9, %c0_i32_3 : i32
    scf.if %10 {
      %cst = arith.constant 0.000000e+00 : f32
      %17 = vector.broadcast %cst : f32 to vector<128x32xf32>
      %c2_i32_7 = arith.constant 2 : i32
      %18 = arith.addi %1, %c2_i32_7 : i32
      %c0 = arith.constant 0 : index
      %19 = arith.index_cast %18 : i32 to index
      %c2 = arith.constant 2 : index
      %c0_8 = arith.constant 0 : index
      %20 = vector.load %arg3[%c0, %19, %c2, %c0_8] : memref<1x24x24x8xbf16, #tpu.memory_space<vmem>>, vector<1x8x16x8xbf16>
      %21 = vector.shape_cast %20 : vector<1x8x16x8xbf16> to vector<8x16x8xbf16>
      %22 = vector.shape_cast %21 : vector<8x16x8xbf16> to vector<128x8xbf16>
      %c0_9 = arith.constant 0 : index
      %c0_10 = arith.constant 0 : index
      %c0_11 = arith.constant 0 : index
      %23 = vector.load %arg4[%c0_9, %c0_10, %c0_11] : memref<1x72x32xbf16, #tpu.memory_space<vmem>>, vector<1x8x32xbf16>
      %24 = vector.shape_cast %23 : vector<1x8x32xbf16> to vector<8x32xbf16>
      %cst_12 = arith.constant dense<0.000000e+00> : vector<128x32xf32>
      %25 = tpu.matmul %22, %24, %cst_12 {dimension_numbers = #tpu.dot_dimension_numbers<[1], [0], [0], [1], [0, 0, 1, 1], [], []>} : vector<128x8xbf16>, vector<8x32xbf16>, vector<128x32xf32> -> vector<128x32xf32>
      %26 = arith.addf %17, %25 : vector<128x32xf32>
      %c2_i32_13 = arith.constant 2 : i32
      %27 = arith.addi %1, %c2_i32_13 : i32
      %c0_14 = arith.constant 0 : index
      %28 = arith.index_cast %27 : i32 to index
      %c4 = arith.constant 4 : index
      %c0_15 = arith.constant 0 : index
      %29 = vector.load %arg3[%c0_14, %28, %c4, %c0_15] : memref<1x24x24x8xbf16, #tpu.memory_space<vmem>>, vector<1x8x16x8xbf16>
      %30 = vector.shape_cast %29 : vector<1x8x16x8xbf16> to vector<8x16x8xbf16>
      %31 = vector.shape_cast %30 : vector<8x16x8xbf16> to vector<128x8xbf16>
      %c0_16 = arith.constant 0 : index
      %c8 = arith.constant 8 : index
      %c0_17 = arith.constant 0 : index
      %32 = vector.load %arg4[%c0_16, %c8, %c0_17] : memref<1x72x32xbf16, #tpu.memory_space<vmem>>, vector<1x8x32xbf16>
      %33 = vector.shape_cast %32 : vector<1x8x32xbf16> to vector<8x32xbf16>
      %cst_18 = arith.constant dense<0.000000e+00> : vector<128x32xf32>
      %34 = tpu.matmul %31, %33, %cst_18 {dimension_numbers = #tpu.dot_dimension_numbers<[1], [0], [0], [1], [0, 0, 1, 1], [], []>} : vector<128x8xbf16>, vector<8x32xbf16>, vector<128x32xf32> -> vector<128x32xf32>
      %35 = arith.addf %26, %34 : vector<128x32xf32>
      %c2_i32_19 = arith.constant 2 : i32
      %36 = arith.addi %1, %c2_i32_19 : i32
      %c0_20 = arith.constant 0 : index
      %37 = arith.index_cast %36 : i32 to index
      %c6 = arith.constant 6 : index
      %c0_21 = arith.constant 0 : index
      %38 = vector.load %arg3[%c0_20, %37, %c6, %c0_21] : memref<1x24x24x8xbf16, #tpu.memory_space<vmem>>, vector<1x8x16x8xbf16>
      %39 = vector.shape_cast %38 : vector<1x8x16x8xbf16> to vector<8x16x8xbf16>
      %40 = vector.shape_cast %39 : vector<8x16x8xbf16> to vector<128x8xbf16>
      %c0_22 = arith.constant 0 : index
      %c16 = arith.constant 16 : index
      %c0_23 = arith.constant 0 : index
      %41 = vector.load %arg4[%c0_22, %c16, %c0_23] : memref<1x72x32xbf16, #tpu.memory_space<vmem>>, vector<1x8x32xbf16>
      %42 = vector.shape_cast %41 : vector<1x8x32xbf16> to vector<8x32xbf16>
      %cst_24 = arith.constant dense<0.000000e+00> : vector<128x32xf32>
      %43 = tpu.matmul %40, %42, %cst_24 {dimension_numbers = #tpu.dot_dimension_numbers<[1], [0], [0], [1], [0, 0, 1, 1], [], []>} : vector<128x8xbf16>, vector<8x32xbf16>, vector<128x32xf32> -> vector<128x32xf32>
      %44 = arith.addf %35, %43 : vector<128x32xf32>
      %c4_i32 = arith.constant 4 : i32
      %45 = arith.addi %1, %c4_i32 : i32
      %c0_25 = arith.constant 0 : index
      %46 = arith.index_cast %45 : i32 to index
      %c2_26 = arith.constant 2 : index
      %c0_27 = arith.constant 0 : index
      %47 = vector.load %arg3[%c0_25, %46, %c2_26, %c0_27] : memref<1x24x24x8xbf16, #tpu.memory_space<vmem>>, vector<1x8x16x8xbf16>
      %48 = vector.shape_cast %47 : vector<1x8x16x8xbf16> to vector<8x16x8xbf16>
      %49 = vector.shape_cast %48 : vector<8x16x8xbf16> to vector<128x8xbf16>
      %c0_28 = arith.constant 0 : index
      %c24 = arith.constant 24 : index
      %c0_29 = arith.constant 0 : index
      %50 = vector.load %arg4[%c0_28, %c24, %c0_29] : memref<1x72x32xbf16, #tpu.memory_space<vmem>>, vector<1x8x32xbf16>
      %51 = vector.shape_cast %50 : vector<1x8x32xbf16> to vector<8x32xbf16>
      %cst_30 = arith.constant dense<0.000000e+00> : vector<128x32xf32>
      %52 = tpu.matmul %49, %51, %cst_30 {dimension_numbers = #tpu.dot_dimension_numbers<[1], [0], [0], [1], [0, 0, 1, 1], [], []>} : vector<128x8xbf16>, vector<8x32xbf16>, vector<128x32xf32> -> vector<128x32xf32>
      %53 = arith.addf %44, %52 : vector<128x32xf32>
      %c4_i32_31 = arith.constant 4 : i32
      %54 = arith.addi %1, %c4_i32_31 : i32
      %c0_32 = arith.constant 0 : index
      %55 = arith.index_cast %54 : i32 to index
      %c4_33 = arith.constant 4 : index
      %c0_34 = arith.constant 0 : index
      %56 = vector.load %arg3[%c0_32, %55, %c4_33, %c0_34] : memref<1x24x24x8xbf16, #tpu.memory_space<vmem>>, vector<1x8x16x8xbf16>
      %57 = vector.shape_cast %56 : vector<1x8x16x8xbf16> to vector<8x16x8xbf16>
      %58 = vector.shape_cast %57 : vector<8x16x8xbf16> to vector<128x8xbf16>
      %c0_35 = arith.constant 0 : index
      %c32 = arith.constant 32 : index
      %c0_36 = arith.constant 0 : index
      %59 = vector.load %arg4[%c0_35, %c32, %c0_36] : memref<1x72x32xbf16, #tpu.memory_space<vmem>>, vector<1x8x32xbf16>
      %60 = vector.shape_cast %59 : vector<1x8x32xbf16> to vector<8x32xbf16>
      %cst_37 = arith.constant dense<0.000000e+00> : vector<128x32xf32>
      %61 = tpu.matmul %58, %60, %cst_37 {dimension_numbers = #tpu.dot_dimension_numbers<[1], [0], [0], [1], [0, 0, 1, 1], [], []>} : vector<128x8xbf16>, vector<8x32xbf16>, vector<128x32xf32> -> vector<128x32xf32>
      %62 = arith.addf %53, %61 : vector<128x32xf32>
      %c4_i32_38 = arith.constant 4 : i32
      %63 = arith.addi %1, %c4_i32_38 : i32
      %c0_39 = arith.constant 0 : index
      %64 = arith.index_cast %63 : i32 to index
      %c6_40 = arith.constant 6 : index
      %c0_41 = arith.constant 0 : index
      %65 = vector.load %arg3[%c0_39, %64, %c6_40, %c0_41] : memref<1x24x24x8xbf16, #tpu.memory_space<vmem>>, vector<1x8x16x8xbf16>
      %66 = vector.shape_cast %65 : vector<1x8x16x8xbf16> to vector<8x16x8xbf16>
      %67 = vector.shape_cast %66 : vector<8x16x8xbf16> to vector<128x8xbf16>
      %c0_42 = arith.constant 0 : index
      %c40 = arith.constant 40 : index
      %c0_43 = arith.constant 0 : index
      %68 = vector.load %arg4[%c0_42, %c40, %c0_43] : memref<1x72x32xbf16, #tpu.memory_space<vmem>>, vector<1x8x32xbf16>
      %69 = vector.shape_cast %68 : vector<1x8x32xbf16> to vector<8x32xbf16>
      %cst_44 = arith.constant dense<0.000000e+00> : vector<128x32xf32>
      %70 = tpu.matmul %67, %69, %cst_44 {dimension_numbers = #tpu.dot_dimension_numbers<[1], [0], [0], [1], [0, 0, 1, 1], [], []>} : vector<128x8xbf16>, vector<8x32xbf16>, vector<128x32xf32> -> vector<128x32xf32>
      %71 = arith.addf %62, %70 : vector<128x32xf32>
      %c6_i32 = arith.constant 6 : i32
      %72 = arith.addi %1, %c6_i32 : i32
      %c0_45 = arith.constant 0 : index
      %73 = arith.index_cast %72 : i32 to index
      %c2_46 = arith.constant 2 : index
      %c0_47 = arith.constant 0 : index
      %74 = vector.load %arg3[%c0_45, %73, %c2_46, %c0_47] : memref<1x24x24x8xbf16, #tpu.memory_space<vmem>>, vector<1x8x16x8xbf16>
      %75 = vector.shape_cast %74 : vector<1x8x16x8xbf16> to vector<8x16x8xbf16>
      %76 = vector.shape_cast %75 : vector<8x16x8xbf16> to vector<128x8xbf16>
      %c0_48 = arith.constant 0 : index
      %c48 = arith.constant 48 : index
      %c0_49 = arith.constant 0 : index
      %77 = vector.load %arg4[%c0_48, %c48, %c0_49] : memref<1x72x32xbf16, #tpu.memory_space<vmem>>, vector<1x8x32xbf16>
      %78 = vector.shape_cast %77 : vector<1x8x32xbf16> to vector<8x32xbf16>
      %cst_50 = arith.constant dense<0.000000e+00> : vector<128x32xf32>
      %79 = tpu.matmul %76, %78, %cst_50 {dimension_numbers = #tpu.dot_dimension_numbers<[1], [0], [0], [1], [0, 0, 1, 1], [], []>} : vector<128x8xbf16>, vector<8x32xbf16>, vector<128x32xf32> -> vector<128x32xf32>
      %80 = arith.addf %71, %79 : vector<128x32xf32>
      %c6_i32_51 = arith.constant 6 : i32
      %81 = arith.addi %1, %c6_i32_51 : i32
      %c0_52 = arith.constant 0 : index
      %82 = arith.index_cast %81 : i32 to index
      %c4_53 = arith.constant 4 : index
      %c0_54 = arith.constant 0 : index
      %83 = vector.load %arg3[%c0_52, %82, %c4_53, %c0_54] : memref<1x24x24x8xbf16, #tpu.memory_space<vmem>>, vector<1x8x16x8xbf16>
      %84 = vector.shape_cast %83 : vector<1x8x16x8xbf16> to vector<8x16x8xbf16>
      %85 = vector.shape_cast %84 : vector<8x16x8xbf16> to vector<128x8xbf16>
      %c0_55 = arith.constant 0 : index
      %c56 = arith.constant 56 : index
      %c0_56 = arith.constant 0 : index
      %86 = vector.load %arg4[%c0_55, %c56, %c0_56] : memref<1x72x32xbf16, #tpu.memory_space<vmem>>, vector<1x8x32xbf16>
      %87 = vector.shape_cast %86 : vector<1x8x32xbf16> to vector<8x32xbf16>
      %cst_57 = arith.constant dense<0.000000e+00> : vector<128x32xf32>
      %88 = tpu.matmul %85, %87, %cst_57 {dimension_numbers = #tpu.dot_dimension_numbers<[1], [0], [0], [1], [0, 0, 1, 1], [], []>} : vector<128x8xbf16>, vector<8x32xbf16>, vector<128x32xf32> -> vector<128x32xf32>
      %89 = arith.addf %80, %88 : vector<128x32xf32>
      %c6_i32_58 = arith.constant 6 : i32
      %90 = arith.addi %1, %c6_i32_58 : i32
      %c0_59 = arith.constant 0 : index
      %91 = arith.index_cast %90 : i32 to index
      %c6_60 = arith.constant 6 : index
      %c0_61 = arith.constant 0 : index
      %92 = vector.load %arg3[%c0_59, %91, %c6_60, %c0_61] : memref<1x24x24x8xbf16, #tpu.memory_space<vmem>>, vector<1x8x16x8xbf16>
      %93 = vector.shape_cast %92 : vector<1x8x16x8xbf16> to vector<8x16x8xbf16>
      %94 = vector.shape_cast %93 : vector<8x16x8xbf16> to vector<128x8xbf16>
      %c0_62 = arith.constant 0 : index
      %c64 = arith.constant 64 : index
      %c0_63 = arith.constant 0 : index
      %95 = vector.load %arg4[%c0_62, %c64, %c0_63] : memref<1x72x32xbf16, #tpu.memory_space<vmem>>, vector<1x8x32xbf16>
      %96 = vector.shape_cast %95 : vector<1x8x32xbf16> to vector<8x32xbf16>
      %cst_64 = arith.constant dense<0.000000e+00> : vector<128x32xf32>
      %97 = tpu.matmul %94, %96, %cst_64 {dimension_numbers = #tpu.dot_dimension_numbers<[1], [0], [0], [1], [0, 0, 1, 1], [], []>} : vector<128x8xbf16>, vector<8x32xbf16>, vector<128x32xf32> -> vector<128x32xf32>
      %98 = arith.addf %89, %97 : vector<128x32xf32>
      %c1 = arith.constant 1 : index
      %c0_65 = arith.constant 0 : index
      %99 = vector.load %arg6[%c1, %c0_65] : memref<3x32xf32, #tpu.memory_space<vmem>>, vector<1x32xf32>
      %100 = vector.broadcast %99 : vector<1x32xf32> to vector<128x32xf32>
      %101 = arith.addf %98, %100 : vector<128x32xf32>
      %cst_66 = arith.constant 0.000000e+00 : f32
      %102 = vector.broadcast %cst_66 : f32 to vector<128x32xf32>
      %103 = arith.maximumf %101, %102 : vector<128x32xf32>
      %c0_67 = arith.constant 0 : index
      %c0_68 = arith.constant 0 : index
      %104 = vector.load %arg9[%c0_67, %c0_68] : memref<128x32xf32, #tpu.memory_space<vmem>>, vector<128x32xf32>
      %105 = arith.truncf %103 : vector<128x32xf32> to vector<128x32xbf16>
      %c0_69 = arith.constant 0 : index
      %c0_70 = arith.constant 0 : index
      %c0_71 = arith.constant 0 : index
      %106 = vector.load %arg5[%c0_69, %c0_70, %c0_71] : memref<1x32x32xbf16, #tpu.memory_space<vmem>>, vector<1x32x32xbf16>
      %107 = vector.shape_cast %106 : vector<1x32x32xbf16> to vector<32x32xbf16>
      %cst_72 = arith.constant dense<0.000000e+00> : vector<128x32xf32>
      %108 = tpu.matmul %105, %107, %cst_72 {dimension_numbers = #tpu.dot_dimension_numbers<[1], [0], [0], [1], [0, 0, 1, 1], [], []>} : vector<128x32xbf16>, vector<32x32xbf16>, vector<128x32xf32> -> vector<128x32xf32>
      %109 = arith.addf %104, %108 : vector<128x32xf32>
      %c0_73 = arith.constant 0 : index
      %c0_74 = arith.constant 0 : index
      %110 = vector.load %arg9[%c0_73, %c0_74] : memref<128x32xf32, #tpu.memory_space<vmem>>, vector<128x32xf32>
      tpu.vector_store %arg9[%c0_73, %c0_74], %109 {strides = array<i32>} : memref<128x32xf32, #tpu.memory_space<vmem>>, vector<128x32xf32>,
    } else {
    }
    %c2_i32 = arith.constant 2 : i32
    %11 = arith.cmpi eq, %arg2, %c2_i32 : i32
    %12 = arith.extui %11 : i1 to i32
    %c0_i32_4 = arith.constant 0 : i32
    %13 = arith.cmpi ne, %12, %c0_i32_4 : i32
    scf.if %13 {
      %cst = arith.constant 0.000000e+00 : f32
      %17 = vector.broadcast %cst : f32 to vector<128x32xf32>
      %c0_i32_7 = arith.constant 0 : i32
      %18 = arith.addi %1, %c0_i32_7 : i32
      %c0 = arith.constant 0 : index
      %19 = arith.index_cast %18 : i32 to index
      %c0_8 = arith.constant 0 : index
      %c0_9 = arith.constant 0 : index
      %20 = vector.load %arg3[%c0, %19, %c0_8, %c0_9] : memref<1x24x24x8xbf16, #tpu.memory_space<vmem>>, vector<1x8x16x8xbf16>
      %21 = vector.shape_cast %20 : vector<1x8x16x8xbf16> to vector<8x16x8xbf16>
      %22 = vector.shape_cast %21 : vector<8x16x8xbf16> to vector<128x8xbf16>
      %c0_10 = arith.constant 0 : index
      %c0_11 = arith.constant 0 : index
      %c0_12 = arith.constant 0 : index
      %23 = vector.load %arg4[%c0_10, %c0_11, %c0_12] : memref<1x72x32xbf16, #tpu.memory_space<vmem>>, vector<1x8x32xbf16>
      %24 = vector.shape_cast %23 : vector<1x8x32xbf16> to vector<8x32xbf16>
      %cst_13 = arith.constant dense<0.000000e+00> : vector<128x32xf32>
      %25 = tpu.matmul %22, %24, %cst_13 {dimension_numbers = #tpu.dot_dimension_numbers<[1], [0], [0], [1], [0, 0, 1, 1], [], []>} : vector<128x8xbf16>, vector<8x32xbf16>, vector<128x32xf32> -> vector<128x32xf32>
      %26 = arith.addf %17, %25 : vector<128x32xf32>
      %c0_i32_14 = arith.constant 0 : i32
      %27 = arith.addi %1, %c0_i32_14 : i32
      %c0_15 = arith.constant 0 : index
      %28 = arith.index_cast %27 : i32 to index
      %c4 = arith.constant 4 : index
      %c0_16 = arith.constant 0 : index
      %29 = vector.load %arg3[%c0_15, %28, %c4, %c0_16] : memref<1x24x24x8xbf16, #tpu.memory_space<vmem>>, vector<1x8x16x8xbf16>
      %30 = vector.shape_cast %29 : vector<1x8x16x8xbf16> to vector<8x16x8xbf16>
      %31 = vector.shape_cast %30 : vector<8x16x8xbf16> to vector<128x8xbf16>
      %c0_17 = arith.constant 0 : index
      %c8 = arith.constant 8 : index
      %c0_18 = arith.constant 0 : index
      %32 = vector.load %arg4[%c0_17, %c8, %c0_18] : memref<1x72x32xbf16, #tpu.memory_space<vmem>>, vector<1x8x32xbf16>
      %33 = vector.shape_cast %32 : vector<1x8x32xbf16> to vector<8x32xbf16>
      %cst_19 = arith.constant dense<0.000000e+00> : vector<128x32xf32>
      %34 = tpu.matmul %31, %33, %cst_19 {dimension_numbers = #tpu.dot_dimension_numbers<[1], [0], [0], [1], [0, 0, 1, 1], [], []>} : vector<128x8xbf16>, vector<8x32xbf16>, vector<128x32xf32> -> vector<128x32xf32>
      %35 = arith.addf %26, %34 : vector<128x32xf32>
      %c0_i32_20 = arith.constant 0 : i32
      %36 = arith.addi %1, %c0_i32_20 : i32
      %c0_21 = arith.constant 0 : index
      %37 = arith.index_cast %36 : i32 to index
      %c8_22 = arith.constant 8 : index
      %c0_23 = arith.constant 0 : index
      %38 = vector.load %arg3[%c0_21, %37, %c8_22, %c0_23] : memref<1x24x24x8xbf16, #tpu.memory_space<vmem>>, vector<1x8x16x8xbf16>
      %39 = vector.shape_cast %38 : vector<1x8x16x8xbf16> to vector<8x16x8xbf16>
      %40 = vector.shape_cast %39 : vector<8x16x8xbf16> to vector<128x8xbf16>
      %c0_24 = arith.constant 0 : index
      %c16 = arith.constant 16 : index
      %c0_25 = arith.constant 0 : index
      %41 = vector.load %arg4[%c0_24, %c16, %c0_25] : memref<1x72x32xbf16, #tpu.memory_space<vmem>>, vector<1x8x32xbf16>
      %42 = vector.shape_cast %41 : vector<1x8x32xbf16> to vector<8x32xbf16>
      %cst_26 = arith.constant dense<0.000000e+00> : vector<128x32xf32>
      %43 = tpu.matmul %40, %42, %cst_26 {dimension_numbers = #tpu.dot_dimension_numbers<[1], [0], [0], [1], [0, 0, 1, 1], [], []>} : vector<128x8xbf16>, vector<8x32xbf16>, vector<128x32xf32> -> vector<128x32xf32>
      %44 = arith.addf %35, %43 : vector<128x32xf32>
      %c4_i32 = arith.constant 4 : i32
      %45 = arith.addi %1, %c4_i32 : i32
      %c0_27 = arith.constant 0 : index
      %46 = arith.index_cast %45 : i32 to index
      %c0_28 = arith.constant 0 : index
      %c0_29 = arith.constant 0 : index
      %47 = vector.load %arg3[%c0_27, %46, %c0_28, %c0_29] : memref<1x24x24x8xbf16, #tpu.memory_space<vmem>>, vector<1x8x16x8xbf16>
      %48 = vector.shape_cast %47 : vector<1x8x16x8xbf16> to vector<8x16x8xbf16>
      %49 = vector.shape_cast %48 : vector<8x16x8xbf16> to vector<128x8xbf16>
      %c0_30 = arith.constant 0 : index
      %c24 = arith.constant 24 : index
      %c0_31 = arith.constant 0 : index
      %50 = vector.load %arg4[%c0_30, %c24, %c0_31] : memref<1x72x32xbf16, #tpu.memory_space<vmem>>, vector<1x8x32xbf16>
      %51 = vector.shape_cast %50 : vector<1x8x32xbf16> to vector<8x32xbf16>
      %cst_32 = arith.constant dense<0.000000e+00> : vector<128x32xf32>
      %52 = tpu.matmul %49, %51, %cst_32 {dimension_numbers = #tpu.dot_dimension_numbers<[1], [0], [0], [1], [0, 0, 1, 1], [], []>} : vector<128x8xbf16>, vector<8x32xbf16>, vector<128x32xf32> -> vector<128x32xf32>
      %53 = arith.addf %44, %52 : vector<128x32xf32>
      %c4_i32_33 = arith.constant 4 : i32
      %54 = arith.addi %1, %c4_i32_33 : i32
      %c0_34 = arith.constant 0 : index
      %55 = arith.index_cast %54 : i32 to index
      %c4_35 = arith.constant 4 : index
      %c0_36 = arith.constant 0 : index
      %56 = vector.load %arg3[%c0_34, %55, %c4_35, %c0_36] : memref<1x24x24x8xbf16, #tpu.memory_space<vmem>>, vector<1x8x16x8xbf16>
      %57 = vector.shape_cast %56 : vector<1x8x16x8xbf16> to vector<8x16x8xbf16>
      %58 = vector.shape_cast %57 : vector<8x16x8xbf16> to vector<128x8xbf16>
      %c0_37 = arith.constant 0 : index
      %c32 = arith.constant 32 : index
      %c0_38 = arith.constant 0 : index
      %59 = vector.load %arg4[%c0_37, %c32, %c0_38] : memref<1x72x32xbf16, #tpu.memory_space<vmem>>, vector<1x8x32xbf16>
      %60 = vector.shape_cast %59 : vector<1x8x32xbf16> to vector<8x32xbf16>
      %cst_39 = arith.constant dense<0.000000e+00> : vector<128x32xf32>
      %61 = tpu.matmul %58, %60, %cst_39 {dimension_numbers = #tpu.dot_dimension_numbers<[1], [0], [0], [1], [0, 0, 1, 1], [], []>} : vector<128x8xbf16>, vector<8x32xbf16>, vector<128x32xf32> -> vector<128x32xf32>
      %62 = arith.addf %53, %61 : vector<128x32xf32>
      %c4_i32_40 = arith.constant 4 : i32
      %63 = arith.addi %1, %c4_i32_40 : i32
      %c0_41 = arith.constant 0 : index
      %64 = arith.index_cast %63 : i32 to index
      %c8_42 = arith.constant 8 : index
      %c0_43 = arith.constant 0 : index
      %65 = vector.load %arg3[%c0_41, %64, %c8_42, %c0_43] : memref<1x24x24x8xbf16, #tpu.memory_space<vmem>>, vector<1x8x16x8xbf16>
      %66 = vector.shape_cast %65 : vector<1x8x16x8xbf16> to vector<8x16x8xbf16>
      %67 = vector.shape_cast %66 : vector<8x16x8xbf16> to vector<128x8xbf16>
      %c0_44 = arith.constant 0 : index
      %c40 = arith.constant 40 : index
      %c0_45 = arith.constant 0 : index
      %68 = vector.load %arg4[%c0_44, %c40, %c0_45] : memref<1x72x32xbf16, #tpu.memory_space<vmem>>, vector<1x8x32xbf16>
      %69 = vector.shape_cast %68 : vector<1x8x32xbf16> to vector<8x32xbf16>
      %cst_46 = arith.constant dense<0.000000e+00> : vector<128x32xf32>
      %70 = tpu.matmul %67, %69, %cst_46 {dimension_numbers = #tpu.dot_dimension_numbers<[1], [0], [0], [1], [0, 0, 1, 1], [], []>} : vector<128x8xbf16>, vector<8x32xbf16>, vector<128x32xf32> -> vector<128x32xf32>
      %71 = arith.addf %62, %70 : vector<128x32xf32>
      %c8_i32_47 = arith.constant 8 : i32
      %72 = arith.addi %1, %c8_i32_47 : i32
      %c0_48 = arith.constant 0 : index
      %73 = arith.index_cast %72 : i32 to index
      %c0_49 = arith.constant 0 : index
      %c0_50 = arith.constant 0 : index
      %74 = vector.load %arg3[%c0_48, %73, %c0_49, %c0_50] : memref<1x24x24x8xbf16, #tpu.memory_space<vmem>>, vector<1x8x16x8xbf16>
      %75 = vector.shape_cast %74 : vector<1x8x16x8xbf16> to vector<8x16x8xbf16>
      %76 = vector.shape_cast %75 : vector<8x16x8xbf16> to vector<128x8xbf16>
      %c0_51 = arith.constant 0 : index
      %c48 = arith.constant 48 : index
      %c0_52 = arith.constant 0 : index
      %77 = vector.load %arg4[%c0_51, %c48, %c0_52] : memref<1x72x32xbf16, #tpu.memory_space<vmem>>, vector<1x8x32xbf16>
      %78 = vector.shape_cast %77 : vector<1x8x32xbf16> to vector<8x32xbf16>
      %cst_53 = arith.constant dense<0.000000e+00> : vector<128x32xf32>
      %79 = tpu.matmul %76, %78, %cst_53 {dimension_numbers = #tpu.dot_dimension_numbers<[1], [0], [0], [1], [0, 0, 1, 1], [], []>} : vector<128x8xbf16>, vector<8x32xbf16>, vector<128x32xf32> -> vector<128x32xf32>
      %80 = arith.addf %71, %79 : vector<128x32xf32>
      %c8_i32_54 = arith.constant 8 : i32
      %81 = arith.addi %1, %c8_i32_54 : i32
      %c0_55 = arith.constant 0 : index
      %82 = arith.index_cast %81 : i32 to index
      %c4_56 = arith.constant 4 : index
      %c0_57 = arith.constant 0 : index
      %83 = vector.load %arg3[%c0_55, %82, %c4_56, %c0_57] : memref<1x24x24x8xbf16, #tpu.memory_space<vmem>>, vector<1x8x16x8xbf16>
      %84 = vector.shape_cast %83 : vector<1x8x16x8xbf16> to vector<8x16x8xbf16>
      %85 = vector.shape_cast %84 : vector<8x16x8xbf16> to vector<128x8xbf16>
      %c0_58 = arith.constant 0 : index
      %c56 = arith.constant 56 : index
      %c0_59 = arith.constant 0 : index
      %86 = vector.load %arg4[%c0_58, %c56, %c0_59] : memref<1x72x32xbf16, #tpu.memory_space<vmem>>, vector<1x8x32xbf16>
      %87 = vector.shape_cast %86 : vector<1x8x32xbf16> to vector<8x32xbf16>
      %cst_60 = arith.constant dense<0.000000e+00> : vector<128x32xf32>
      %88 = tpu.matmul %85, %87, %cst_60 {dimension_numbers = #tpu.dot_dimension_numbers<[1], [0], [0], [1], [0, 0, 1, 1], [], []>} : vector<128x8xbf16>, vector<8x32xbf16>, vector<128x32xf32> -> vector<128x32xf32>
      %89 = arith.addf %80, %88 : vector<128x32xf32>
      %c8_i32_61 = arith.constant 8 : i32
      %90 = arith.addi %1, %c8_i32_61 : i32
      %c0_62 = arith.constant 0 : index
      %91 = arith.index_cast %90 : i32 to index
      %c8_63 = arith.constant 8 : index
      %c0_64 = arith.constant 0 : index
      %92 = vector.load %arg3[%c0_62, %91, %c8_63, %c0_64] : memref<1x24x24x8xbf16, #tpu.memory_space<vmem>>, vector<1x8x16x8xbf16>
      %93 = vector.shape_cast %92 : vector<1x8x16x8xbf16> to vector<8x16x8xbf16>
      %94 = vector.shape_cast %93 : vector<8x16x8xbf16> to vector<128x8xbf16>
      %c0_65 = arith.constant 0 : index
      %c64 = arith.constant 64 : index
      %c0_66 = arith.constant 0 : index
      %95 = vector.load %arg4[%c0_65, %c64, %c0_66] : memref<1x72x32xbf16, #tpu.memory_space<vmem>>, vector<1x8x32xbf16>
      %96 = vector.shape_cast %95 : vector<1x8x32xbf16> to vector<8x32xbf16>
      %cst_67 = arith.constant dense<0.000000e+00> : vector<128x32xf32>
      %97 = tpu.matmul %94, %96, %cst_67 {dimension_numbers = #tpu.dot_dimension_numbers<[1], [0], [0], [1], [0, 0, 1, 1], [], []>} : vector<128x8xbf16>, vector<8x32xbf16>, vector<128x32xf32> -> vector<128x32xf32>
      %98 = arith.addf %89, %97 : vector<128x32xf32>
      %c2 = arith.constant 2 : index
      %c0_68 = arith.constant 0 : index
      %99 = vector.load %arg6[%c2, %c0_68] : memref<3x32xf32, #tpu.memory_space<vmem>>, vector<1x32xf32>
      %100 = vector.broadcast %99 : vector<1x32xf32> to vector<128x32xf32>
      %101 = arith.addf %98, %100 : vector<128x32xf32>
      %cst_69 = arith.constant 0.000000e+00 : f32
      %102 = vector.broadcast %cst_69 : f32 to vector<128x32xf32>
      %103 = arith.maximumf %101, %102 : vector<128x32xf32>
      %c0_70 = arith.constant 0 : index
      %c0_71 = arith.constant 0 : index
      %104 = vector.load %arg9[%c0_70, %c0_71] : memref<128x32xf32, #tpu.memory_space<vmem>>, vector<128x32xf32>
      %105 = arith.truncf %103 : vector<128x32xf32> to vector<128x32xbf16>
      %c0_72 = arith.constant 0 : index
      %c0_73 = arith.constant 0 : index
      %c0_74 = arith.constant 0 : index
      %106 = vector.load %arg5[%c0_72, %c0_73, %c0_74] : memref<1x32x32xbf16, #tpu.memory_space<vmem>>, vector<1x32x32xbf16>
      %107 = vector.shape_cast %106 : vector<1x32x32xbf16> to vector<32x32xbf16>
      %cst_75 = arith.constant dense<0.000000e+00> : vector<128x32xf32>
      %108 = tpu.matmul %105, %107, %cst_75 {dimension_numbers = #tpu.dot_dimension_numbers<[1], [0], [0], [1], [0, 0, 1, 1], [], []>} : vector<128x32xbf16>, vector<32x32xbf16>, vector<128x32xf32> -> vector<128x32xf32>
      %109 = arith.addf %104, %108 : vector<128x32xf32>
      %c0_76 = arith.constant 0 : index
      %c0_77 = arith.constant 0 : index
      %110 = vector.load %arg9[%c0_76, %c0_77] : memref<128x32xf32, #tpu.memory_space<vmem>>, vector<128x32xf32>
      tpu.vector_store %arg9[%c0_76, %c0_77], %109 {strides = array<i32>} : memref<128x32xf32, #tpu.memory_space<vmem>>, vector<128x32xf32>,
    } else {
    }
    %c2_i32_5 = arith.constant 2 : i32
    %14 = arith.cmpi eq, %arg2, %c2_i32_5 : i32
    %15 = arith.extui %14 : i1 to i32
    %c0_i32_6 = arith.constant 0 : i32
    %16 = arith.cmpi ne, %15, %c0_i32_6 : i32
    scf.if %16 {
      %c0 = arith.constant 0 : index
      %c0_7 = arith.constant 0 : index
      %17 = vector.load %arg9[%c0, %c0_7] : memref<128x32xf32, #tpu.memory_space<vmem>>, vector<128x32xf32>
      %c0_8 = arith.constant 0 : index
      %c0_9 = arith.constant 0 : index
      %c0_10 = arith.constant 0 : index
      %18 = vector.load %arg7[%c0_8, %c0_9, %c0_10] : memref<1x1x32xf32, #tpu.memory_space<vmem>>, vector<1x1x32xf32>
      %19 = vector.shape_cast %18 : vector<1x1x32xf32> to vector<1x32xf32>
      %20 = vector.broadcast %19 : vector<1x32xf32> to vector<128x32xf32>
      %21 = arith.addf %17, %20 : vector<128x32xf32>
      %cst = arith.constant 0.000000e+00 : f32
      %22 = vector.broadcast %cst : f32 to vector<128x32xf32>
      %23 = arith.maximumf %21, %22 : vector<128x32xf32>
      %c0_11 = arith.constant 0 : index
      %c0_12 = arith.constant 0 : index
      %c0_13 = arith.constant 0 : index
      %24 = vector.load %arg8[%c0_11, %c0_12, %c0_13] : memref<1x128x32xf32, #tpu.memory_space<vmem>>, vector<1x128x32xf32>
      %25 = vector.shape_cast %24 : vector<1x128x32xf32> to vector<128x32xf32>
      %26 = vector.shape_cast %23 : vector<128x32xf32> to vector<1x128x32xf32>
      tpu.vector_store %arg8[%c0_11, %c0_12, %c0_13], %26 {strides = array<i32>} : memref<1x128x32xf32, #tpu.memory_space<vmem>>, vector<1x128x32xf32>,
    } else {
    }
    return
  }
  func.func @transform_0(%arg0: i32, %arg1: i32, %arg2: i32) -> (i32, i32, i32, i32) {
    %c0_i32 = arith.constant 0 : i32
    %c0_i32_0 = arith.constant 0 : i32
    %c0_i32_1 = arith.constant 0 : i32
    %c0_i32_2 = arith.constant 0 : i32
    return %arg0, %c0_i32, %c0_i32_0, %c0_i32_1 : i32, i32, i32, i32
  }
  func.func @transform_1(%arg0: i32, %arg1: i32, %arg2: i32) -> (i32, i32, i32) {
    %c0_i32 = arith.constant 0 : i32
    %c0_i32_0 = arith.constant 0 : i32
    %c0_i32_1 = arith.constant 0 : i32
    return %arg2, %c0_i32, %c0_i32_0 : i32, i32, i32
  }
  func.func @transform_2(%arg0: i32, %arg1: i32, %arg2: i32) -> (i32, i32, i32) {
    %c0_i32 = arith.constant 0 : i32
    %c0_i32_0 = arith.constant 0 : i32
    %c0_i32_1 = arith.constant 0 : i32
    return %arg2, %c0_i32, %c0_i32_0 : i32, i32, i32
  }
  func.func @transform_3(%arg0: i32, %arg1: i32, %arg2: i32) -> (i32, i32) {
    %c0_i32 = arith.constant 0 : i32
    %c0_i32_0 = arith.constant 0 : i32
    %c0_i32_1 = arith.constant 0 : i32
    return %c0_i32, %c0_i32_0 : i32, i32
  }
  func.func @transform_4(%arg0: i32, %arg1: i32, %arg2: i32) -> (i32, i32, i32) {
    %c0_i32 = arith.constant 0 : i32
    %c0_i32_0 = arith.constant 0 : i32
    %c0_i32_1 = arith.constant 0 : i32
    return %arg0, %c0_i32, %c0_i32_0 : i32, i32, i32
  }
  func.func @transform_5(%arg0: i32, %arg1: i32, %arg2: i32) -> (i32, i32, i32) {
    %c0_i32 = arith.constant 0 : i32
    %c0_i32_0 = arith.constant 0 : i32
    return %arg0, %arg1, %c0_i32 : i32, i32, i32
  }
}

</mosaic_0001>

<llo_original>
// kernel: tpu_custom_call.1
$region0: #{tpu_custom_call.1}
  #allocation0 [shape = 'u32[]', space=smem, size = 0x4, offset = 0x4, fixed_abs, tag = 'smem constant byte address 0x4 - core index']
  #allocation1 [shape = 'u32[144,128]{1,0:T(1,128)}', space=vmem, size = 0x12000, scoped, tag = 'internal scratch']
  #allocation2 [shape = 'f32[128,32]{1,0:T(8,128)}', space=vmem, size = 0x10000, scoped, tag = 'scratch operand']
  %s0 = inlined_call_operand.vmem [shape: bf16[2,24,24,8], index: 0, kind: input, shape index: {}]
  %s1 = inlined_call_operand.vmem [shape: bf16[3,72,32], index: 1, kind: input, shape index: {}]
  %s2 = inlined_call_operand.vmem [shape: bf16[3,32,32], index: 2, kind: input, shape index: {}]
  %s3 = inlined_call_operand.vmem [shape: f32[3,32], index: 3, kind: input, shape index: {}]
  %s4 = inlined_call_operand.vmem [shape: f32[2,1,32], index: 4, kind: input, shape index: {}]
  %s5 = inlined_call_operand.vmem [shape: f32[2,256,32], index: 5, kind: output, shape index: {}]
  %s6 = sld [smem:[#allocation0]]
  $region65: #{tpu_custom_call.1} parent=0
    _
  %s8 = ssub.s32 1, %s6
  %s9 = scalar_select 0, %s8, %s6
  loop: start=0, step=1, limit=14
  $region2: #{tpu_custom_call.1} parent=0 // loop_pre_header
    _
  $region3: #{tpu_custom_call.1} parent=0 // loop_header
    %s11 = sphi 0, %s15
    %p12 = scmp.ge.s32.totalorder %s11, 14
    %s18 = sphi 0, %s37
    %s19 = sphi 0, %s33
    %s20 = sphi 0, %s29
    %s21 = sphi 0, %s18
    %s22 = sphi 0, %s19
    %s23 = sphi 0, %s20
    %s24 = sphi 0, %s21
    %s25 = sphi 0, %s22
    %s26 = sphi 0, %s23
    %s40 = sphi 0, %s42
    %s43 = sphi 0, %s40
    %s44 = sphi 0, %s43
    %s60 = sphi 0, %s44
    %s66 = sphi 0, %s68
    %s69 = sphi 0, %s66
    %s70 = sphi 0, %s69
    %s86 = sphi 0, %s70
    %s92 = sphi 0, %s94
    %s95 = sphi 0, %s92
    %s96 = sphi 0, %s95
    %s112 = sphi 0, %s96
    %s116 = sphi 0, %s116
    %s118 = sphi 0, %s116
    %s119 = sphi 0, %s118
    %s133 = sphi 0, %s119
    %s139 = sphi 0, %s141
    %s142 = sphi 0, %s139
    %s143 = sphi 0, %s142
    %s159 = sphi 0, %s143
    %s167 = sphi 0, %s169
    %s170 = sphi 0, %s167
    %s171 = sphi 0, %s170
    %s187 = sphi 0, %s171
  $region4: #{tpu_custom_call.1} parent=0 // loop_header_branch
    %14 = sbr.rel (%p12) target = $region8
  $region5: #{tpu_custom_call.1} parent=0 // loop_body
    %s16 = ssub.s32 %s11, 1
    %s17 = ssub.s32 %s11, 2
    %s27 = sadd.s32 1, %s20
    %p28 = scmp.ge.s32.totalorder %s27, 3
    %s29 = scalar_select %p28, 0, %s27
    %s30 = sadd.s32 1, %s19
    %s31 = scalar_select %p28, %s30, %s19
    %p32 = scmp.ge.s32.totalorder %s31, 2
    %s33 = scalar_select %p32, 0, %s31
    %s34 = sadd.s32 1, %s18
    %s35 = scalar_select %p32, %s34, %s18
    %p36 = scmp.ge.s32.totalorder %s35, 2
    %s37 = scalar_select %p36, 0, %s35
    %s38 = ssub.s32 %s18, %s37
    %p39 = scmp.eq.s32.totalorder %s38, 0
    %s41 = sadd.s32 %s40, 1
    %s42 = scalar_select %p39, %s40, %s41
    %p45 = pneg %p39
    %p46 = scmp.eq.s32.totalorder %s11, 11
    %p47 = por %p45, %p46
    %p48 = scmp.ne.s32.totalorder %s40, %s43
    %p49 = scmp.eq.s32.totalorder %s11, 0
    %p50 = por %p48, %p49
    %p51 = scmp.ne.s32.totalorder %s40, %s43
    %p52 = scmp.eq.s32.totalorder %s16, 11
    %p53 = por %p51, %p52
    %p54 = scmp.ne.s32.totalorder %s43, %s44
    %p55 = scmp.eq.s32.totalorder %s16, 0
    %p56 = por %p54, %p55
    %p57 = scmp.ne.s32.totalorder %s43, %s44
    %p58 = scmp.eq.s32.totalorder %s17, 11
    %p59 = por %p57, %p58
    %p61 = scmp.ne.s32.totalorder %s44, %s60
    %p62 = scmp.eq.s32.totalorder %s17, 0
    %p63 = por %p61, %p62
    %s64 = ssub.s32 %s20, %s29
    %p65 = scmp.eq.s32.totalorder %s64, 0
    %s67 = sadd.s32 %s66, 1
    %s68 = scalar_select %p65, %s66, %s67
    %p71 = pneg %p65
    %p72 = scmp.eq.s32.totalorder %s11, 11
    %p73 = por %p71, %p72
    %p74 = scmp.ne.s32.totalorder %s66, %s69
    %p75 = scmp.eq.s32.totalorder %s11, 0
    %p76 = por %p74, %p75
    %p77 = scmp.ne.s32.totalorder %s66, %s69
    %p78 = scmp.eq.s32.totalorder %s16, 11
    %p79 = por %p77, %p78
    %p80 = scmp.ne.s32.totalorder %s69, %s70
    %p81 = scmp.eq.s32.totalorder %s16, 0
    %p82 = por %p80, %p81
    %p83 = scmp.ne.s32.totalorder %s69, %s70
    %p84 = scmp.eq.s32.totalorder %s17, 11
    %p85 = por %p83, %p84
    %p87 = scmp.ne.s32.totalorder %s70, %s86
    %p88 = scmp.eq.s32.totalorder %s17, 0
    %p89 = por %p87, %p88
    %s90 = ssub.s32 %s20, %s29
    %p91 = scmp.eq.s32.totalorder %s90, 0
    %s93 = sadd.s32 %s92, 1
    %s94 = scalar_select %p91, %s92, %s93
    %p97 = pneg %p91
    %p98 = scmp.eq.s32.totalorder %s11, 11
    %p99 = por %p97, %p98
    %p100 = scmp.ne.s32.totalorder %s92, %s95
    %p101 = scmp.eq.s32.totalorder %s11, 0
    %p102 = por %p100, %p101
    %p103 = scmp.ne.s32.totalorder %s92, %s95
    %p104 = scmp.eq.s32.totalorder %s16, 11
    %p105 = por %p103, %p104
    %p106 = scmp.ne.s32.totalorder %s95, %s96
    %p107 = scmp.eq.s32.totalorder %s16, 0
    %p108 = por %p106, %p107
    %p109 = scmp.ne.s32.totalorder %s95, %s96
    %p110 = scmp.eq.s32.totalorder %s17, 11
    %p111 = por %p109, %p110
    %p113 = scmp.ne.s32.totalorder %s96, %s112
    %p114 = scmp.eq.s32.totalorder %s17, 0
    %p115 = por %p113, %p114
    %s117 = sadd.s32 %s116, 1
    %p120 = scmp.eq.s32.totalorder %s11, 11
    %p121 = scmp.ne.s32.totalorder %s116, %s118
    %p122 = scmp.eq.s32.totalorder %s11, 0
    %p123 = por %p121, %p122
    %p124 = scmp.ne.s32.totalorder %s116, %s118
    %p125 = scmp.eq.s32.totalorder %s16, 11
    %p126 = por %p124, %p125
    %p127 = scmp.ne.s32.totalorder %s118, %s119
    %p128 = scmp.eq.s32.totalorder %s16, 0
    %p129 = por %p127, %p128
    %p130 = scmp.ne.s32.totalorder %s118, %s119
    %p131 = scmp.eq.s32.totalorder %s17, 11
    %p132 = por %p130, %p131
    %p134 = scmp.ne.s32.totalorder %s119, %s133
    %p135 = scmp.eq.s32.totalorder %s17, 0
    %p136 = por %p134, %p135
    %s137 = ssub.s32 %s18, %s37
    %p138 = scmp.eq.s32.totalorder %s137, 0
    %s140 = sadd.s32 %s139, 1
    %s141 = scalar_select %p138, %s139, %s140
    %p144 = pneg %p138
    %p145 = scmp.eq.s32.totalorder %s11, 11
    %p146 = por %p144, %p145
    %p147 = scmp.ne.s32.totalorder %s139, %s142
    %p148 = scmp.eq.s32.totalorder %s11, 0
    %p149 = por %p147, %p148
    %p150 = scmp.ne.s32.totalorder %s139, %s142
    %p151 = scmp.eq.s32.totalorder %s16, 11
    %p152 = por %p150, %p151
    %p153 = scmp.ne.s32.totalorder %s142, %s143
    %p154 = scmp.eq.s32.totalorder %s16, 0
    %p155 = por %p153, %p154
    %p156 = scmp.ne.s32.totalorder %s142, %s143
    %p157 = scmp.eq.s32.totalorder %s17, 11
    %p158 = por %p156, %p157
    %p160 = scmp.ne.s32.totalorder %s143, %s159
    %p161 = scmp.eq.s32.totalorder %s17, 0
    %p162 = por %p160, %p161
    %s163 = ssub.s32 %s18, %s37
    %s164 = ssub.s32 %s19, %s33
    %s165 = sor.u32 %s163, %s164
    %p166 = scmp.eq.s32.totalorder %s165, 0
    %s168 = sadd.s32 %s167, 1
    %s169 = scalar_select %p166, %s167, %s168
    %p172 = pneg %p166
    %p173 = scmp.eq.s32.totalorder %s11, 11
    %p174 = por %p172, %p173
    %p175 = scmp.ne.s32.totalorder %s167, %s170
    %p176 = scmp.eq.s32.totalorder %s11, 0
    %p177 = por %p175, %p176
    %p178 = scmp.ne.s32.totalorder %s167, %s170
    %p179 = scmp.eq.s32.totalorder %s16, 11
    %p180 = por %p178, %p179
    %p181 = scmp.ne.s32.totalorder %s170, %s171
    %p182 = scmp.eq.s32.totalorder %s16, 0
    %p183 = por %p181, %p182
    %p184 = scmp.ne.s32.totalorder %s170, %s171
    %p185 = scmp.eq.s32.totalorder %s17, 11
    %p186 = por %p184, %p185
    %p188 = scmp.ne.s32.totalorder %s171, %s187
    %p189 = scmp.eq.s32.totalorder %s17, 0
    %p190 = por %p188, %p189
    %p191 = scmp.le.s32.totalorder 1, %s11
    %p192 = scmp.lt.s32.totalorder %s11, 13
    %p193 = pnand %p191, %p192
    %p194 = pneg %p193
    // Predicated region
    $region9: #{tpu_custom_call.1} parent=5 // pred_check
      _
    $region10: #{tpu_custom_call.1} parent=5 // pred_check_branch
      %196 = sbr.rel (%p193) target = $region12
    $region11: #{tpu_custom_call.1} parent=5 // pred_region
      %s197 = ssub.s32 %s11, 1
      // Predicated region
      $region13: #{tpu_custom_call.1} parent=11 // pred_check
        %p198 = pneg %p129
      $region14: #{tpu_custom_call.1} parent=11 // pred_check_branch
        %200 = sbr.rel (%p198) target = $region16
      $region15: #{tpu_custom_call.1} parent=11 // pred_region
        _
      $region16: #{tpu_custom_call.1} parent=11 // pred_fallthru
        _
    $region12: #{tpu_custom_call.1} parent=5 // pred_fallthru
      _
    %p201 = scmp.lt.s32.totalorder %s11, 12
    // Predicated region
    $region17: #{tpu_custom_call.1} parent=5 // pred_check
      %p202 = pneg %p201
    $region18: #{tpu_custom_call.1} parent=5 // pred_check_branch
      %204 = sbr.rel (%p202) target = $region20
    $region19: #{tpu_custom_call.1} parent=5 // pred_region
      // Predicated region
      $region21: #{tpu_custom_call.1} parent=19 // pred_check
        %p205 = pneg %p50
      $region22: #{tpu_custom_call.1} parent=19 // pred_check_branch
        %207 = sbr.rel (%p205) target = $region24
      $region23: #{tpu_custom_call.1} parent=19 // pred_region
        %p208 = scmp.lt.s32.totalorder %s18, 1
        %s209 = scalar_select %p208, %s18, 1
        %s210 = smul.addr %s209, 72
        %s211 = smul.addr %s210, 4
        %s212 = scalar_lea.vmem %s0, %s211
      $region24: #{tpu_custom_call.1} parent=19 // pred_fallthru
        _
      // Predicated region
      $region25: #{tpu_custom_call.1} parent=19 // pred_check
        %p213 = pneg %p76
      $region26: #{tpu_custom_call.1} parent=19 // pred_check_branch
        %215 = sbr.rel (%p213) target = $region28
      $region27: #{tpu_custom_call.1} parent=19 // pred_region
        %p216 = scmp.lt.s32.totalorder %s20, 2
        %s217 = scalar_select %p216, %s20, 2
        %s218 = smul.addr %s217, 9
        %s219 = smul.addr %s218, 4
        %s220 = scalar_lea.vmem %s1, %s219
      $region28: #{tpu_custom_call.1} parent=19 // pred_fallthru
        _
      // Predicated region
      $region29: #{tpu_custom_call.1} parent=19 // pred_check
        %p221 = pneg %p102
      $region30: #{tpu_custom_call.1} parent=19 // pred_check_branch
        %223 = sbr.rel (%p221) target = $region32
      $region31: #{tpu_custom_call.1} parent=19 // pred_region
        %p224 = scmp.lt.s32.totalorder %s20, 2
        %s225 = scalar_select %p224, %s20, 2
        %s226 = smul.addr %s225, 4
        %s227 = smul.addr %s226, 4
        %s228 = scalar_lea.vmem %s2, %s227
      $region32: #{tpu_custom_call.1} parent=19 // pred_fallthru
        _
      // Predicated region
      $region33: #{tpu_custom_call.1} parent=19 // pred_check
        %p229 = pneg %p149
      $region34: #{tpu_custom_call.1} parent=19 // pred_check_branch
        %231 = sbr.rel (%p229) target = $region36
      $region35: #{tpu_custom_call.1} parent=19 // pred_region
        %p232 = scmp.lt.s32.totalorder %s18, 1
        %s233 = scalar_select %p232, %s18, 1
        %s234 = scalar_lea.vmem %s4, %s233
      $region36: #{tpu_custom_call.1} parent=19 // pred_fallthru
        _
    $region20: #{tpu_custom_call.1} parent=5 // pred_fallthru
      _
    %p235 = scmp.le.s32.totalorder 1, %s11
    %p236 = scmp.lt.s32.totalorder %s11, 13
    %p237 = pnand %p235, %p236
    %p238 = pneg %p237
    // Predicated region
    $region37: #{tpu_custom_call.1} parent=5 // pred_check
      _
    $region38: #{tpu_custom_call.1} parent=5 // pred_check_branch
      %240 = sbr.rel (%p237) target = $region40
    $region39: #{tpu_custom_call.1} parent=5 // pred_region
      %s241 = ssub.s32 %s11, 1
      %p242 = scmp.lt.s32.totalorder %s21, 1
      %s243 = scalar_select %p242, %s21, 1
      %s244 = smul.addr %s243, 72
      %s245 = smul.addr %s244, 4
      %s246 = scalar_lea.vmem %s0, %s245
      %p247 = pneg %p56
      %p248 = pneg %p53
      %p249 = scmp.lt.s32.totalorder %s23, 2
      %s250 = scalar_select %p249, %s23, 2
      %s251 = smul.addr %s250, 9
      %s252 = smul.addr %s251, 4
      %s253 = scalar_lea.vmem %s1, %s252
      %p254 = pneg %p82
      %p255 = pneg %p79
      %p256 = scmp.lt.s32.totalorder %s23, 2
      %s257 = scalar_select %p256, %s23, 2
      %s258 = smul.addr %s257, 4
      %s259 = smul.addr %s258, 4
      %s260 = scalar_lea.vmem %s2, %s259
      %p261 = pneg %p108
      %p262 = pneg %p105
      %p263 = pneg %p129
      %p264 = pneg %p126
      %p265 = scmp.lt.s32.totalorder %s21, 1
      %s266 = scalar_select %p265, %s21, 1
      %s267 = scalar_lea.vmem %s4, %s266
      %p268 = pneg %p155
      %p269 = pneg %p152
      %p270 = pneg %p183
      %p271 = pneg %p180
      %s272 = smul.u32 16, %s22
      %p273 = scmp.lt.s32.totalorder %s21, 1
      %s274 = scalar_select %p273, %s21, 1
      %p275 = scmp.lt.s32.totalorder %s272, 31
      %s276 = scalar_select %p275, %s272, 31
      %s277 = smul.addr %s274, 32
      %s278 = sadd.s32 %s276, %s277
      %s279 = smul.addr %s278, 8
      %s280 = scalar_lea.vmem %s5, %s279
      %p281 = scmp.lt.s32.totalorder %s21, 1
      %s282 = scalar_select %p281, %s21, 1
      %s283 = smul.addr %s282, 72
      %s284 = smul.addr %s283, 4
      %s285 = scalar_lea.vmem %s0, %s284
      %p286 = scmp.lt.s32.totalorder %s23, 2
      %s287 = scalar_select %p286, %s23, 2
      %s288 = smul.addr %s287, 9
      %s289 = smul.addr %s288, 4
      %s290 = scalar_lea.vmem %s1, %s289
      %p291 = scmp.lt.s32.totalorder %s23, 2
      %s292 = scalar_select %p291, %s23, 2
      %s293 = smul.addr %s292, 4
      %s294 = smul.addr %s293, 4
      %s295 = scalar_lea.vmem %s2, %s294
      %p296 = scmp.lt.s32.totalorder %s21, 1
      %s297 = scalar_select %p296, %s21, 1
      %s298 = scalar_lea.vmem %s4, %s297
      %s299 = smul.u32 16, %s22
      %p300 = scmp.lt.s32.totalorder %s21, 1
      %s301 = scalar_select %p300, %s21, 1
      %p302 = scmp.lt.s32.totalorder %s299, 31
      %s303 = scalar_select %p302, %s299, 31
      %s304 = smul.addr %s301, 32
      %s305 = sadd.s32 %s303, %s304
      %s306 = smul.addr %s305, 8
      %s307 = scalar_lea.vmem %s5, %s306
      %s308 = smul.u32 16, %s22
      %s310 = smul.u32 %s22, 8
      %p311 = scmp.eq.s32.totalorder %s23, 0
      // Predicated region
      $region41: #{tpu_custom_call.1} parent=39 // pred_check
        %p312 = pneg %p311
      $region42: #{tpu_custom_call.1} parent=39 // pred_check_branch
        %314 = sbr.rel (%p312) target = $region44
      $region43: #{tpu_custom_call.1} parent=39 // pred_region
        %vm315 = vcmask 261120
        %316 = vst.msk [vmem:[#allocation2] sm:$0xff] %vm315, 0.0
        %317 = vst.msk [vmem:[#allocation2 + $0x8] sm:$0xff] %vm315, 0.0
        %318 = vst.msk [vmem:[#allocation2 + $0x10] sm:$0xff] %vm315, 0.0
        %319 = vst.msk [vmem:[#allocation2 + $0x18] sm:$0xff] %vm315, 0.0
        %320 = vst.msk [vmem:[#allocation2 + $0x20] sm:$0xff] %vm315, 0.0
        %321 = vst.msk [vmem:[#allocation2 + $0x28] sm:$0xff] %vm315, 0.0
        %322 = vst.msk [vmem:[#allocation2 + $0x30] sm:$0xff] %vm315, 0.0
        %323 = vst.msk [vmem:[#allocation2 + $0x38] sm:$0xff] %vm315, 0.0
        %324 = vst.msk [vmem:[#allocation2 + $0x40] sm:$0xff] %vm315, 0.0
        %325 = vst.msk [vmem:[#allocation2 + $0x48] sm:$0xff] %vm315, 0.0
        %326 = vst.msk [vmem:[#allocation2 + $0x50] sm:$0xff] %vm315, 0.0
        %327 = vst.msk [vmem:[#allocation2 + $0x58] sm:$0xff] %vm315, 0.0
        %328 = vst.msk [vmem:[#allocation2 + $0x60] sm:$0xff] %vm315, 0.0
        %329 = vst.msk [vmem:[#allocation2 + $0x68] sm:$0xff] %vm315, 0.0
        %330 = vst.msk [vmem:[#allocation2 + $0x70] sm:$0xff] %vm315, 0.0
        %331 = vst.msk [vmem:[#allocation2 + $0x78] sm:$0xff] %vm315, 0.0
        %s332 = sadd.s32 %s310, 4
        %s333 = smul.u32 %s332, 3
        %s334 = smul.addr %s333, 4
        %s335 = scalar_lea.vmem %s285, %s334
        %v336 = vld [vmem:[%s335] sm:$0xc]
        %v337 = vld [vmem:[%s335 + $0x4] sm:$0xf]
        %v338 = vld [vmem:[%s335 + $0x8] sm:$0x3]
        %v339 = vld [vmem:[%s335 + $0xc] sm:$0xc]
        %v340 = vld [vmem:[%s335 + $0x10] sm:$0xf]
        %v341 = vld [vmem:[%s335 + $0x14] sm:$0x3]
        %v342 = vld [vmem:[%s335 + $0x18] sm:$0xc]
        %v343 = vld [vmem:[%s335 + $0x1c] sm:$0xf]
        %v344 = vld [vmem:[%s335 + $0x20] sm:$0x3]
        %v345 = vld [vmem:[%s335 + $0x24] sm:$0xc]
        %v346 = vld [vmem:[%s335 + $0x28] sm:$0xf]
        %v347 = vld [vmem:[%s335 + $0x2c] sm:$0x3]
        %v348 = vld [vmem:[%s335 + $0x30] sm:$0xc]
        %v349 = vld [vmem:[%s335 + $0x34] sm:$0xf]
        %v350 = vld [vmem:[%s335 + $0x38] sm:$0x3]
        %v351 = vld [vmem:[%s335 + $0x3c] sm:$0xc]
        %v352 = vld [vmem:[%s335 + $0x40] sm:$0xf]
        %v353 = vld [vmem:[%s335 + $0x44] sm:$0x3]
        %v354 = vld [vmem:[%s335 + $0x48] sm:$0xc]
        %v355 = vld [vmem:[%s335 + $0x4c] sm:$0xf]
        %v356 = vld [vmem:[%s335 + $0x50] sm:$0x3]
        %v357 = vld [vmem:[%s335 + $0x54] sm:$0xc]
        %v358 = vld [vmem:[%s335 + $0x58] sm:$0xf]
        %v359 = vld [vmem:[%s335 + $0x5c] sm:$0x3]
        %vm384 = vcmask 1041408
        %vm385 = vcmask 1045508
        %vm386 = vmor %vm384, %vm385
        %v387 = vrot.slane %v336, 6
        %v388 = vrot.slane %v387, 4
        %v389 = vrot.slane %v337, 6
        %v390 = vsel %vm386, %v388, %v389
        %v391 = vrot.slane %v389, 4
        %v392 = vrot.slane %v338, 6
        %v393 = vsel %vm386, %v391, %v392
        %v394 = vrot.slane %v339, 6
        %v395 = vrot.slane %v394, 4
        %v396 = vrot.slane %v340, 6
        %v397 = vsel %vm386, %v395, %v396
        %v398 = vrot.slane %v396, 4
        %v399 = vrot.slane %v341, 6
        %v400 = vsel %vm386, %v398, %v399
        %v401 = vrot.slane %v342, 6
        %v402 = vrot.slane %v401, 4
        %v403 = vrot.slane %v343, 6
        %v404 = vsel %vm386, %v402, %v403
        %v405 = vrot.slane %v403, 4
        %v406 = vrot.slane %v344, 6
        %v407 = vsel %vm386, %v405, %v406
        %v408 = vrot.slane %v345, 6
        %v409 = vrot.slane %v408, 4
        %v410 = vrot.slane %v346, 6
        %v411 = vsel %vm386, %v409, %v410
        %v412 = vrot.slane %v410, 4
        %v413 = vrot.slane %v347, 6
        %v414 = vsel %vm386, %v412, %v413
        %v415 = vrot.slane %v348, 6
        %v416 = vrot.slane %v415, 4
        %v417 = vrot.slane %v349, 6
        %v418 = vsel %vm386, %v416, %v417
        %v419 = vrot.slane %v417, 4
        %v420 = vrot.slane %v350, 6
        %v421 = vsel %vm386, %v419, %v420
        %v422 = vrot.slane %v351, 6
        %v423 = vrot.slane %v422, 4
        %v424 = vrot.slane %v352, 6
        %v425 = vsel %vm386, %v423, %v424
        %v426 = vrot.slane %v424, 4
        %v427 = vrot.slane %v353, 6
        %v428 = vsel %vm386, %v426, %v427
        %v429 = vrot.slane %v354, 6
        %v430 = vrot.slane %v429, 4
        %v431 = vrot.slane %v355, 6
        %v432 = vsel %vm386, %v430, %v431
        %v433 = vrot.slane %v431, 4
        %v434 = vrot.slane %v356, 6
        %v435 = vsel %vm386, %v433, %v434
        %v436 = vrot.slane %v357, 6
        %v437 = vrot.slane %v436, 4
        %v438 = vrot.slane %v358, 6
        %v439 = vsel %vm386, %v437, %v438
        %v440 = vrot.slane %v438, 4
        %v441 = vrot.slane %v359, 6
        %v442 = vsel %vm386, %v440, %v441
        %v443 = vld [vmem:[%s290 + $0x10] sm:$0xf]
        %v444 = vld [vmem:[%s3] sm:$0x1]
        %v445 = vlaneseq
        %v446 = vshrl.u32 %v445, 7
        %v447 = vsub.s32 0, %v446
        %v448 = vrot.slane %v444, %v447
        %v449 = vunpack.c.l.b16 %v390
        %v450 = vunpack.c.l.b16 %v393
        %v451 = vunpack.c.l.b16 %v397
        %v452 = vunpack.c.l.b16 %v400
        %v453 = vunpack.c.l.b16 %v404
        %v454 = vunpack.c.l.b16 %v407
        %v455 = vunpack.c.l.b16 %v411
        %v456 = vunpack.c.l.b16 %v414
        %v457 = vunpack.c.l.b16 %v418
        %v458 = vunpack.c.l.b16 %v421
        %v459 = vunpack.c.l.b16 %v425
        %v460 = vunpack.c.l.b16 %v428
        %v461 = vunpack.c.l.b16 %v432
        %v462 = vunpack.c.l.b16 %v435
        %v463 = vunpack.c.l.b16 %v439
        %v464 = vunpack.c.l.b16 %v442
        %v465 = vpack.c.b16 %v450, %v449
        %v466 = vpack.c.b16 %v452, %v451
        %v467 = vpack.c.b16 %v454, %v453
        %v468 = vpack.c.b16 %v456, %v455
        %v469 = vpack.c.b16 %v458, %v457
        %v470 = vpack.c.b16 %v460, %v459
        %v471 = vpack.c.b16 %v462, %v461
        %v472 = vpack.c.b16 %v464, %v463
        %vm473 = vcmask 64512
        %v475 = vsel %vm473, %v465, 0
        %v478 = vsel %vm473, %v466, 0
        %v481 = vsel %vm473, %v467, 0
        %v484 = vsel %vm473, %v468, 0
        %v487 = vsel %vm473, %v469, 0
        %v490 = vsel %vm473, %v470, 0
        %v493 = vsel %vm473, %v471, 0
        %v496 = vsel %vm473, %v472, 0
        %vm498 = vcmask 1043456
        %v500 = vsel %vm498, %v443, 0
        %502 = vmatprep.subr.bf16.mxu0 0
        %503 = vmatpush1.bf16.msra.mxu0 %v500
        %504 = vmatprep.subr.bf16.mxu0 0
        %505 = vmatpush1.bf16.msra.mxu0 0
        %506 = vmatprep.subr.bf16.mxu0 0
        %507 = vmatpush1.bf16.msra.mxu0 0
        %508 = vmatprep.subr.bf16.mxu0 0
        %509 = vmatpush1.bf16.msra.mxu0 0
        %510 = vmatprep.subr.bf16.mxu0 0
        %511 = vmatpush1.bf16.msra.mxu0 0
        %512 = vmatprep.subr.bf16.mxu0 0
        %513 = vmatpush1.bf16.msra.mxu0 0
        %514 = vmatprep.subr.bf16.mxu0 0
        %515 = vmatpush1.bf16.msra.mxu0 0
        %516 = vmatprep.subr.bf16.mxu0 0
        %517 = vmatpush1.bf16.msra.mxu0 0
        %518 = vmatprep.subr.bf16.mxu0 0
        %519 = vmatpush1.bf16.msra.mxu0 0
        %520 = vmatprep.subr.bf16.mxu0 0
        %521 = vmatpush1.bf16.msra.mxu0 0
        %522 = vmatprep.subr.bf16.mxu0 0
        %523 = vmatpush1.bf16.msra.mxu0 0
        %524 = vmatprep.subr.bf16.mxu0 0
        %525 = vmatpush1.bf16.msra.mxu0 0
        %526 = vmatprep.subr.bf16.mxu0 0
        %527 = vmatpush1.bf16.msra.mxu0 0
        %528 = vmatprep.subr.bf16.mxu0 0
        %529 = vmatpush1.bf16.msra.mxu0 0
        %530 = vmatprep.subr.bf16.mxu0 0
        %531 = vmatpush1.bf16.msra.mxu0 0
        %532 = vmatprep.subr.bf16.mxu0 0
        %533 = vmatpush1.bf16.msra.mxu0 0
        %534 = vmatprep.mubr.bf16.mxu0 0
        %535 = vmatmul.mubr.bf16.gmra.mrb[0].mxu0 %v475
        %v536 = vpop.f32.mrb[0].mxu0
        %v537 = vadd.f32 %v448, %v536
        %v538 = vpop.f32.mrb[0].mxu0
        %v539 = vpop.f32.mrb[0].mxu0
        %v540 = vadd.f32 %v448, %v539
        %v541 = vpop.f32.mrb[0].mxu0
        %542 = vmatprep.mubr.bf16.mxu0 0
        %543 = vmatmul.mubr.bf16.gmra.mrb[0].mxu0 %v478
        %v544 = vpop.f32.mrb[0].mxu0
        %v545 = vadd.f32 %v448, %v544
        %v546 = vpop.f32.mrb[0].mxu0
        %v547 = vpop.f32.mrb[0].mxu0
        %v548 = vadd.f32 %v448, %v547
        %v549 = vpop.f32.mrb[0].mxu0
        %550 = vmatprep.mubr.bf16.mxu0 0
        %551 = vmatmul.mubr.bf16.gmra.mrb[0].mxu0 %v481
        %v552 = vpop.f32.mrb[0].mxu0
        %v553 = vadd.f32 %v448, %v552
        %v554 = vpop.f32.mrb[0].mxu0
        %v555 = vpop.f32.mrb[0].mxu0
        %v556 = vadd.f32 %v448, %v555
        %v557 = vpop.f32.mrb[0].mxu0
        %558 = vmatprep.mubr.bf16.mxu0 0
        %559 = vmatmul.mubr.bf16.gmra.mrb[0].mxu0 %v484
        %v560 = vpop.f32.mrb[0].mxu0
        %v561 = vadd.f32 %v448, %v560
        %v562 = vpop.f32.mrb[0].mxu0
        %v563 = vpop.f32.mrb[0].mxu0
        %v564 = vadd.f32 %v448, %v563
        %v565 = vpop.f32.mrb[0].mxu0
        %566 = vmatprep.mubr.bf16.mxu0 0
        %567 = vmatmul.mubr.bf16.gmra.mrb[0].mxu0 %v487
        %v568 = vpop.f32.mrb[0].mxu0
        %v569 = vadd.f32 %v448, %v568
        %v570 = vpop.f32.mrb[0].mxu0
        %v571 = vpop.f32.mrb[0].mxu0
        %v572 = vadd.f32 %v448, %v571
        %v573 = vpop.f32.mrb[0].mxu0
        %574 = vmatprep.mubr.bf16.mxu0 0
        %575 = vmatmul.mubr.bf16.gmra.mrb[0].mxu0 %v490
        %v576 = vpop.f32.mrb[0].mxu0
        %v577 = vadd.f32 %v448, %v576
        %v578 = vpop.f32.mrb[0].mxu0
        %v579 = vpop.f32.mrb[0].mxu0
        %v580 = vadd.f32 %v448, %v579
        %v581 = vpop.f32.mrb[0].mxu0
        %582 = vmatprep.mubr.bf16.mxu0 0
        %583 = vmatmul.mubr.bf16.gmra.mrb[0].mxu0 %v493
        %v584 = vpop.f32.mrb[0].mxu0
        %v585 = vadd.f32 %v448, %v584
        %v586 = vpop.f32.mrb[0].mxu0
        %v587 = vpop.f32.mrb[0].mxu0
        %v588 = vadd.f32 %v448, %v587
        %v589 = vpop.f32.mrb[0].mxu0
        %590 = vmatprep.mubr.bf16.mxu0 0
        %591 = vmatmul.mubr.bf16.gmra.mrb[0].mxu0 %v496
        %v592 = vpop.f32.mrb[0].mxu0
        %v593 = vadd.f32 %v448, %v592
        %v594 = vpop.f32.mrb[0].mxu0
        %v595 = vpop.f32.mrb[0].mxu0
        %v596 = vadd.f32 %v448, %v595
        %v597 = vpop.f32.mrb[0].mxu0
        %598 = vdwg.mxu0
        %v599 = vmax.f32 %v537, 0.0
        %v600 = vmax.f32 %v540, 0.0
        %v601 = vmax.f32 %v545, 0.0
        %v602 = vmax.f32 %v548, 0.0
        %v603 = vmax.f32 %v553, 0.0
        %v604 = vmax.f32 %v556, 0.0
        %v605 = vmax.f32 %v561, 0.0
        %v606 = vmax.f32 %v564, 0.0
        %v607 = vmax.f32 %v569, 0.0
        %v608 = vmax.f32 %v572, 0.0
        %v609 = vmax.f32 %v577, 0.0
        %v610 = vmax.f32 %v580, 0.0
        %v611 = vmax.f32 %v585, 0.0
        %v612 = vmax.f32 %v588, 0.0
        %v613 = vmax.f32 %v593, 0.0
        %v614 = vmax.f32 %v596, 0.0
        %v615 = vld [vmem:[#allocation2] sm:$0xff]
        %v616 = vld [vmem:[#allocation2 + $0x8] sm:$0xff]
        %v617 = vld [vmem:[#allocation2 + $0x10] sm:$0xff]
        %v618 = vld [vmem:[#allocation2 + $0x18] sm:$0xff]
        %v619 = vld [vmem:[#allocation2 + $0x20] sm:$0xff]
        %v620 = vld [vmem:[#allocation2 + $0x28] sm:$0xff]
        %v621 = vld [vmem:[#allocation2 + $0x30] sm:$0xff]
        %v622 = vld [vmem:[#allocation2 + $0x38] sm:$0xff]
        %v623 = vld [vmem:[#allocation2 + $0x40] sm:$0xff]
        %v624 = vld [vmem:[#allocation2 + $0x48] sm:$0xff]
        %v625 = vld [vmem:[#allocation2 + $0x50] sm:$0xff]
        %v626 = vld [vmem:[#allocation2 + $0x58] sm:$0xff]
        %v627 = vld [vmem:[#allocation2 + $0x60] sm:$0xff]
        %v628 = vld [vmem:[#allocation2 + $0x68] sm:$0xff]
        %v629 = vld [vmem:[#allocation2 + $0x70] sm:$0xff]
        %v630 = vld [vmem:[#allocation2 + $0x78] sm:$0xff]
        %v631 = vpack.c.bf16 %v600, %v599
        %v632 = vpack.c.bf16 %v602, %v601
        %v633 = vpack.c.bf16 %v604, %v603
        %v634 = vpack.c.bf16 %v606, %v605
        %v635 = vpack.c.bf16 %v608, %v607
        %v636 = vpack.c.bf16 %v610, %v609
        %v637 = vpack.c.bf16 %v612, %v611
        %v638 = vpack.c.bf16 %v614, %v613
        %v639 = vld [vmem:[%s295] sm:$0xf]
        %v640 = vld [vmem:[%s295 + $0x4] sm:$0xf]
        %v641 = vld [vmem:[%s295 + $0x8] sm:$0xf]
        %v642 = vld [vmem:[%s295 + $0xc] sm:$0xf]
        %v647 = vunpack.c.l.b16 %v639
        %v648 = vunpack.c.l.b16 %v640
        %v649 = vunpack.c.l.b16 %v641
        %v650 = vunpack.c.l.b16 %v642
        %v651 = vpack.c.b16 %v648, %v647
        %v652 = vpack.c.b16 %v650, %v649
        %v656 = vsel %vm315, %v631, 0
        %v659 = vsel %vm315, %v632, 0
        %v662 = vsel %vm315, %v633, 0
        %v665 = vsel %vm315, %v634, 0
        %v668 = vsel %vm315, %v635, 0
        %v671 = vsel %vm315, %v636, 0
        %v674 = vsel %vm315, %v637, 0
        %v677 = vsel %vm315, %v638, 0
        %679 = vmatprep.subr.bf16.mxu0 0
        %680 = vmatpush1.bf16.msra.mxu0 %v651
        %681 = vmatprep.subr.bf16.mxu0 0
        %682 = vmatpush1.bf16.msra.mxu0 %v652
        %683 = vmatprep.subr.bf16.mxu0 0
        %684 = vmatpush1.bf16.msra.mxu0 0
        %685 = vmatprep.subr.bf16.mxu0 0
        %686 = vmatpush1.bf16.msra.mxu0 0
        %687 = vmatprep.subr.bf16.mxu0 0
        %688 = vmatpush1.bf16.msra.mxu0 0
        %689 = vmatprep.subr.bf16.mxu0 0
        %690 = vmatpush1.bf16.msra.mxu0 0
        %691 = vmatprep.subr.bf16.mxu0 0
        %692 = vmatpush1.bf16.msra.mxu0 0
        %693 = vmatprep.subr.bf16.mxu0 0
        %694 = vmatpush1.bf16.msra.mxu0 0
        %695 = vmatprep.subr.bf16.mxu0 0
        %696 = vmatpush1.bf16.msra.mxu0 0
        %697 = vmatprep.subr.bf16.mxu0 0
        %698 = vmatpush1.bf16.msra.mxu0 0
        %699 = vmatprep.subr.bf16.mxu0 0
        %700 = vmatpush1.bf16.msra.mxu0 0
        %701 = vmatprep.subr.bf16.mxu0 0
        %702 = vmatpush1.bf16.msra.mxu0 0
        %703 = vmatprep.subr.bf16.mxu0 0
        %704 = vmatpush1.bf16.msra.mxu0 0
        %705 = vmatprep.subr.bf16.mxu0 0
        %706 = vmatpush1.bf16.msra.mxu0 0
        %707 = vmatprep.subr.bf16.mxu0 0
        %708 = vmatpush1.bf16.msra.mxu0 0
        %709 = vmatprep.subr.bf16.mxu0 0
        %710 = vmatpush1.bf16.msra.mxu0 0
        %711 = vmatprep.mubr.bf16.mxu0 0
        %712 = vmatmul.mubr.bf16.gmra.mrb[0].mxu0 %v656
        %v713 = vpop.f32.mrb[0].mxu0
        %v714 = vadd.f32 0.0, %v713
        %v715 = vpop.f32.mrb[0].mxu0
        %v716 = vpop.f32.mrb[0].mxu0
        %v717 = vadd.f32 0.0, %v716
        %v718 = vpop.f32.mrb[0].mxu0
        %719 = vmatprep.mubr.bf16.mxu0 0
        %720 = vmatmul.mubr.bf16.gmra.mrb[0].mxu0 %v659
        %v721 = vpop.f32.mrb[0].mxu0
        %v722 = vadd.f32 0.0, %v721
        %v723 = vpop.f32.mrb[0].mxu0
        %v724 = vpop.f32.mrb[0].mxu0
        %v725 = vadd.f32 0.0, %v724
        %v726 = vpop.f32.mrb[0].mxu0
        %727 = vmatprep.mubr.bf16.mxu0 0
        %728 = vmatmul.mubr.bf16.gmra.mrb[0].mxu0 %v662
        %v729 = vpop.f32.mrb[0].mxu0
        %v730 = vadd.f32 0.0, %v729
        %v731 = vpop.f32.mrb[0].mxu0
        %v732 = vpop.f32.mrb[0].mxu0
        %v733 = vadd.f32 0.0, %v732
        %v734 = vpop.f32.mrb[0].mxu0
        %735 = vmatprep.mubr.bf16.mxu0 0
        %736 = vmatmul.mubr.bf16.gmra.mrb[0].mxu0 %v665
        %v737 = vpop.f32.mrb[0].mxu0
        %v738 = vadd.f32 0.0, %v737
        %v739 = vpop.f32.mrb[0].mxu0
        %v740 = vpop.f32.mrb[0].mxu0
        %v741 = vadd.f32 0.0, %v740
        %v742 = vpop.f32.mrb[0].mxu0
        %743 = vmatprep.mubr.bf16.mxu0 0
        %744 = vmatmul.mubr.bf16.gmra.mrb[0].mxu0 %v668
        %v745 = vpop.f32.mrb[0].mxu0
        %v746 = vadd.f32 0.0, %v745
        %v747 = vpop.f32.mrb[0].mxu0
        %v748 = vpop.f32.mrb[0].mxu0
        %v749 = vadd.f32 0.0, %v748
        %v750 = vpop.f32.mrb[0].mxu0
        %751 = vmatprep.mubr.bf16.mxu0 0
        %752 = vmatmul.mubr.bf16.gmra.mrb[0].mxu0 %v671
        %v753 = vpop.f32.mrb[0].mxu0
        %v754 = vadd.f32 0.0, %v753
        %v755 = vpop.f32.mrb[0].mxu0
        %v756 = vpop.f32.mrb[0].mxu0
        %v757 = vadd.f32 0.0, %v756
        %v758 = vpop.f32.mrb[0].mxu0
        %759 = vmatprep.mubr.bf16.mxu0 0
        %760 = vmatmul.mubr.bf16.gmra.mrb[0].mxu0 %v674
        %v761 = vpop.f32.mrb[0].mxu0
        %v762 = vadd.f32 0.0, %v761
        %v763 = vpop.f32.mrb[0].mxu0
        %v764 = vpop.f32.mrb[0].mxu0
        %v765 = vadd.f32 0.0, %v764
        %v766 = vpop.f32.mrb[0].mxu0
        %767 = vmatprep.mubr.bf16.mxu0 0
        %768 = vmatmul.mubr.bf16.gmra.mrb[0].mxu0 %v677
        %v769 = vpop.f32.mrb[0].mxu0
        %v770 = vadd.f32 0.0, %v769
        %v771 = vpop.f32.mrb[0].mxu0
        %v772 = vpop.f32.mrb[0].mxu0
        %v773 = vadd.f32 0.0, %v772
        %v774 = vpop.f32.mrb[0].mxu0
        %775 = vdwg.mxu0
        %v776 = vadd.f32 %v615, %v714
        %v777 = vadd.f32 %v616, %v717
        %v778 = vadd.f32 %v617, %v722
        %v779 = vadd.f32 %v618, %v725
        %v780 = vadd.f32 %v619, %v730
        %v781 = vadd.f32 %v620, %v733
        %v782 = vadd.f32 %v621, %v738
        %v783 = vadd.f32 %v622, %v741
        %v784 = vadd.f32 %v623, %v746
        %v785 = vadd.f32 %v624, %v749
        %v786 = vadd.f32 %v625, %v754
        %v787 = vadd.f32 %v626, %v757
        %v788 = vadd.f32 %v627, %v762
        %v789 = vadd.f32 %v628, %v765
        %v790 = vadd.f32 %v629, %v770
        %v791 = vadd.f32 %v630, %v773
        %792 = vst.msk [vmem:[#allocation2] sm:$0xff] %vm315, %v776
        %793 = vst.msk [vmem:[#allocation2 + $0x8] sm:$0xff] %vm315, %v777
        %794 = vst.msk [vmem:[#allocation2 + $0x10] sm:$0xff] %vm315, %v778
        %795 = vst.msk [vmem:[#allocation2 + $0x18] sm:$0xff] %vm315, %v779
        %796 = vst.msk [vmem:[#allocation2 + $0x20] sm:$0xff] %vm315, %v780
        %797 = vst.msk [vmem:[#allocation2 + $0x28] sm:$0xff] %vm315, %v781
        %798 = vst.msk [vmem:[#allocation2 + $0x30] sm:$0xff] %vm315, %v782
        %799 = vst.msk [vmem:[#allocation2 + $0x38] sm:$0xff] %vm315, %v783
        %800 = vst.msk [vmem:[#allocation2 + $0x40] sm:$0xff] %vm315, %v784
        %801 = vst.msk [vmem:[#allocation2 + $0x48] sm:$0xff] %vm315, %v785
        %802 = vst.msk [vmem:[#allocation2 + $0x50] sm:$0xff] %vm315, %v786
        %803 = vst.msk [vmem:[#allocation2 + $0x58] sm:$0xff] %vm315, %v787
        %804 = vst.msk [vmem:[#allocation2 + $0x60] sm:$0xff] %vm315, %v788
        %805 = vst.msk [vmem:[#allocation2 + $0x68] sm:$0xff] %vm315, %v789
        %806 = vst.msk [vmem:[#allocation2 + $0x70] sm:$0xff] %vm315, %v790
        %807 = vst.msk [vmem:[#allocation2 + $0x78] sm:$0xff] %vm315, %v791
      $region44: #{tpu_custom_call.1} parent=39 // pred_fallthru
        _
      %p808 = scmp.eq.s32.totalorder %s23, 1
      // Predicated region
      $region45: #{tpu_custom_call.1} parent=39 // pred_check
        %p809 = pneg %p808
      $region46: #{tpu_custom_call.1} parent=39 // pred_check_branch
        %811 = sbr.rel (%p809) target = $region48
      $region47: #{tpu_custom_call.1} parent=39 // pred_region
        %s812 = sadd.s32 %s310, 2
        %s813 = smul.u32 %s812, 3
        %s814 = smul.addr %s813, 4
        %s815 = scalar_lea.vmem %s285, %s814
        %v816 = vld [vmem:[%s815] sm:$0xe]
        %v817 = vld [vmem:[%s815 + $0x4] sm:$0xf]
        %v818 = vld [vmem:[%s815 + $0x8] sm:$0x1]
        %v819 = vld [vmem:[%s815 + $0xc] sm:$0xe]
        %v820 = vld [vmem:[%s815 + $0x10] sm:$0xf]
        %v821 = vld [vmem:[%s815 + $0x14] sm:$0x1]
        %v822 = vld [vmem:[%s815 + $0x18] sm:$0xe]
        %v823 = vld [vmem:[%s815 + $0x1c] sm:$0xf]
        %v824 = vld [vmem:[%s815 + $0x20] sm:$0x1]
        %v825 = vld [vmem:[%s815 + $0x24] sm:$0xe]
        %v826 = vld [vmem:[%s815 + $0x28] sm:$0xf]
        %v827 = vld [vmem:[%s815 + $0x2c] sm:$0x1]
        %v828 = vld [vmem:[%s815 + $0x30] sm:$0xe]
        %v829 = vld [vmem:[%s815 + $0x34] sm:$0xf]
        %v830 = vld [vmem:[%s815 + $0x38] sm:$0x1]
        %v831 = vld [vmem:[%s815 + $0x3c] sm:$0xe]
        %v832 = vld [vmem:[%s815 + $0x40] sm:$0xf]
        %v833 = vld [vmem:[%s815 + $0x44] sm:$0x1]
        %v834 = vld [vmem:[%s815 + $0x48] sm:$0xe]
        %v835 = vld [vmem:[%s815 + $0x4c] sm:$0xf]
        %v836 = vld [vmem:[%s815 + $0x50] sm:$0x1]
        %v837 = vld [vmem:[%s815 + $0x54] sm:$0xe]
        %v838 = vld [vmem:[%s815 + $0x58] sm:$0xf]
        %v839 = vld [vmem:[%s815 + $0x5c] sm:$0x1]
        %vm864 = vcmask 1042432
        %vm865 = vcmask 1046532
        %vm866 = vmor %vm864, %vm865
        %v867 = vrot.slane %v816, 5
        %v868 = vrot.slane %v867, 4
        %v869 = vrot.slane %v817, 5
        %v870 = vsel %vm866, %v868, %v869
        %v871 = vrot.slane %v869, 4
        %v872 = vrot.slane %v818, 5
        %v873 = vsel %vm866, %v871, %v872
        %v874 = vrot.slane %v819, 5
        %v875 = vrot.slane %v874, 4
        %v876 = vrot.slane %v820, 5
        %v877 = vsel %vm866, %v875, %v876
        %v878 = vrot.slane %v876, 4
        %v879 = vrot.slane %v821, 5
        %v880 = vsel %vm866, %v878, %v879
        %v881 = vrot.slane %v822, 5
        %v882 = vrot.slane %v881, 4
        %v883 = vrot.slane %v823, 5
        %v884 = vsel %vm866, %v882, %v883
        %v885 = vrot.slane %v883, 4
        %v886 = vrot.slane %v824, 5
        %v887 = vsel %vm866, %v885, %v886
        %v888 = vrot.slane %v825, 5
        %v889 = vrot.slane %v888, 4
        %v890 = vrot.slane %v826, 5
        %v891 = vsel %vm866, %v889, %v890
        %v892 = vrot.slane %v890, 4
        %v893 = vrot.slane %v827, 5
        %v894 = vsel %vm866, %v892, %v893
        %v895 = vrot.slane %v828, 5
        %v896 = vrot.slane %v895, 4
        %v897 = vrot.slane %v829, 5
        %v898 = vsel %vm866, %v896, %v897
        %v899 = vrot.slane %v897, 4
        %v900 = vrot.slane %v830, 5
        %v901 = vsel %vm866, %v899, %v900
        %v902 = vrot.slane %v831, 5
        %v903 = vrot.slane %v902, 4
        %v904 = vrot.slane %v832, 5
        %v905 = vsel %vm866, %v903, %v904
        %v906 = vrot.slane %v904, 4
        %v907 = vrot.slane %v833, 5
        %v908 = vsel %vm866, %v906, %v907
        %v909 = vrot.slane %v834, 5
        %v910 = vrot.slane %v909, 4
        %v911 = vrot.slane %v835, 5
        %v912 = vsel %vm866, %v910, %v911
        %v913 = vrot.slane %v911, 4
        %v914 = vrot.slane %v836, 5
        %v915 = vsel %vm866, %v913, %v914
        %v916 = vrot.slane %v837, 5
        %v917 = vrot.slane %v916, 4
        %v918 = vrot.slane %v838, 5
        %v919 = vsel %vm866, %v917, %v918
        %v920 = vrot.slane %v918, 4
        %v921 = vrot.slane %v839, 5
        %v922 = vsel %vm866, %v920, %v921
        %v923 = vld [vmem:[%s290] sm:$0xf]
        %v924 = vld [vmem:[%s815] sm:$0xc]
        %v925 = vld [vmem:[%s815 + $0x8] sm:$0x3]
        %v926 = vld [vmem:[%s815 + $0xc] sm:$0xc]
        %v927 = vld [vmem:[%s815 + $0x14] sm:$0x3]
        %v928 = vld [vmem:[%s815 + $0x18] sm:$0xc]
        %v929 = vld [vmem:[%s815 + $0x20] sm:$0x3]
        %v930 = vld [vmem:[%s815 + $0x24] sm:$0xc]
        %v931 = vld [vmem:[%s815 + $0x2c] sm:$0x3]
        %v932 = vld [vmem:[%s815 + $0x30] sm:$0xc]
        %v933 = vld [vmem:[%s815 + $0x38] sm:$0x3]
        %v934 = vld [vmem:[%s815 + $0x3c] sm:$0xc]
        %v935 = vld [vmem:[%s815 + $0x44] sm:$0x3]
        %v936 = vld [vmem:[%s815 + $0x48] sm:$0xc]
        %v937 = vld [vmem:[%s815 + $0x50] sm:$0x3]
        %v938 = vld [vmem:[%s815 + $0x54] sm:$0xc]
        %v939 = vld [vmem:[%s815 + $0x5c] sm:$0x3]
        %vm956 = vcmask 1041408
        %vm957 = vcmask 1045508
        %vm958 = vmor %vm956, %vm957
        %v959 = vrot.slane %v924, 6
        %v960 = vrot.slane %v959, 4
        %v961 = vrot.slane %v817, 6
        %v962 = vsel %vm958, %v960, %v961
        %v963 = vrot.slane %v961, 4
        %v964 = vrot.slane %v925, 6
        %v965 = vsel %vm958, %v963, %v964
        %v966 = vrot.slane %v926, 6
        %v967 = vrot.slane %v966, 4
        %v968 = vrot.slane %v820, 6
        %v969 = vsel %vm958, %v967, %v968
        %v970 = vrot.slane %v968, 4
        %v971 = vrot.slane %v927, 6
        %v972 = vsel %vm958, %v970, %v971
        %v973 = vrot.slane %v928, 6
        %v974 = vrot.slane %v973, 4
        %v975 = vrot.slane %v823, 6
        %v976 = vsel %vm958, %v974, %v975
        %v977 = vrot.slane %v975, 4
        %v978 = vrot.slane %v929, 6
        %v979 = vsel %vm958, %v977, %v978
        %v980 = vrot.slane %v930, 6
        %v981 = vrot.slane %v980, 4
        %v982 = vrot.slane %v826, 6
        %v983 = vsel %vm958, %v981, %v982
        %v984 = vrot.slane %v982, 4
        %v985 = vrot.slane %v931, 6
        %v986 = vsel %vm958, %v984, %v985
        %v987 = vrot.slane %v932, 6
        %v988 = vrot.slane %v987, 4
        %v989 = vrot.slane %v829, 6
        %v990 = vsel %vm958, %v988, %v989
        %v991 = vrot.slane %v989, 4
        %v992 = vrot.slane %v933, 6
        %v993 = vsel %vm958, %v991, %v992
        %v994 = vrot.slane %v934, 6
        %v995 = vrot.slane %v994, 4
        %v996 = vrot.slane %v832, 6
        %v997 = vsel %vm958, %v995, %v996
        %v998 = vrot.slane %v996, 4
        %v999 = vrot.slane %v935, 6
        %v1000 = vsel %vm958, %v998, %v999
        %v1001 = vrot.slane %v936, 6
        %v1002 = vrot.slane %v1001, 4
        %v1003 = vrot.slane %v835, 6
        %v1004 = vsel %vm958, %v1002, %v1003
        %v1005 = vrot.slane %v1003, 4
        %v1006 = vrot.slane %v937, 6
        %v1007 = vsel %vm958, %v1005, %v1006
        %v1008 = vrot.slane %v938, 6
        %v1009 = vrot.slane %v1008, 4
        %v1010 = vrot.slane %v838, 6
        %v1011 = vsel %vm958, %v1009, %v1010
        %v1012 = vrot.slane %v1010, 4
        %v1013 = vrot.slane %v939, 6
        %v1014 = vsel %vm958, %v1012, %v1013
        %v1015 = vld [vmem:[%s290 + $0x4] sm:$0xf]
        %v1016 = vunpack.c.l.b16 %v962
        %v1017 = vunpack.c.l.b16 %v965
        %v1018 = vunpack.c.l.b16 %v969
        %v1019 = vunpack.c.l.b16 %v972
        %v1020 = vunpack.c.l.b16 %v976
        %v1021 = vunpack.c.l.b16 %v979
        %v1022 = vunpack.c.l.b16 %v983
        %v1023 = vunpack.c.l.b16 %v986
        %v1024 = vunpack.c.l.b16 %v990
        %v1025 = vunpack.c.l.b16 %v993
        %v1026 = vunpack.c.l.b16 %v997
        %v1027 = vunpack.c.l.b16 %v1000
        %v1028 = vunpack.c.l.b16 %v1004
        %v1029 = vunpack.c.l.b16 %v1007
        %v1030 = vunpack.c.l.b16 %v1011
        %v1031 = vunpack.c.l.b16 %v1014
        %v1032 = vpack.c.b16 %v1017, %v1016
        %v1033 = vpack.c.b16 %v1019, %v1018
        %v1034 = vpack.c.b16 %v1021, %v1020
        %v1035 = vpack.c.b16 %v1023, %v1022
        %v1036 = vpack.c.b16 %v1025, %v1024
        %v1037 = vpack.c.b16 %v1027, %v1026
        %v1038 = vpack.c.b16 %v1029, %v1028
        %v1039 = vpack.c.b16 %v1031, %v1030
        %vm1040 = vcmask 64512
        %v1042 = vsel %vm1040, %v1032, 0
        %v1045 = vsel %vm1040, %v1033, 0
        %v1048 = vsel %vm1040, %v1034, 0
        %v1051 = vsel %vm1040, %v1035, 0
        %v1054 = vsel %vm1040, %v1036, 0
        %v1057 = vsel %vm1040, %v1037, 0
        %v1060 = vsel %vm1040, %v1038, 0
        %v1063 = vsel %vm1040, %v1039, 0
        %vm1065 = vcmask 1043456
        %v1067 = vsel %vm1065, %v1015, 0
        %1069 = vmatprep.subr.bf16.mxu0 0
        %1070 = vmatpush1.bf16.msra.mxu0 %v1067
        %1071 = vmatprep.subr.bf16.mxu0 0
        %1072 = vmatpush1.bf16.msra.mxu0 0
        %1073 = vmatprep.subr.bf16.mxu0 0
        %1074 = vmatpush1.bf16.msra.mxu0 0
        %1075 = vmatprep.subr.bf16.mxu0 0
        %1076 = vmatpush1.bf16.msra.mxu0 0
        %1077 = vmatprep.subr.bf16.mxu0 0
        %1078 = vmatpush1.bf16.msra.mxu0 0
        %1079 = vmatprep.subr.bf16.mxu0 0
        %1080 = vmatpush1.bf16.msra.mxu0 0
        %1081 = vmatprep.subr.bf16.mxu0 0
        %1082 = vmatpush1.bf16.msra.mxu0 0
        %1083 = vmatprep.subr.bf16.mxu0 0
        %1084 = vmatpush1.bf16.msra.mxu0 0
        %1085 = vmatprep.subr.bf16.mxu0 0
        %1086 = vmatpush1.bf16.msra.mxu0 0
        %1087 = vmatprep.subr.bf16.mxu0 0
        %1088 = vmatpush1.bf16.msra.mxu0 0
        %1089 = vmatprep.subr.bf16.mxu0 0
        %1090 = vmatpush1.bf16.msra.mxu0 0
        %1091 = vmatprep.subr.bf16.mxu0 0
        %1092 = vmatpush1.bf16.msra.mxu0 0
        %1093 = vmatprep.subr.bf16.mxu0 0
        %1094 = vmatpush1.bf16.msra.mxu0 0
        %1095 = vmatprep.subr.bf16.mxu0 0
        %1096 = vmatpush1.bf16.msra.mxu0 0
        %1097 = vmatprep.subr.bf16.mxu0 0
        %1098 = vmatpush1.bf16.msra.mxu0 0
        %1099 = vmatprep.subr.bf16.mxu0 0
        %1100 = vmatpush1.bf16.msra.mxu0 0
        %1101 = vmatprep.mubr.bf16.mxu0 0
        %1102 = vmatmul.mubr.bf16.gmra.mrb[0].mxu0 %v1042
        %v1103 = vpop.f32.mrb[0].mxu0
        %v1104 = vadd.f32 0.0, %v1103
        %v1105 = vpop.f32.mrb[0].mxu0
        %v1106 = vpop.f32.mrb[0].mxu0
        %v1107 = vadd.f32 0.0, %v1106
        %v1108 = vpop.f32.mrb[0].mxu0
        %1109 = vmatprep.mubr.bf16.mxu0 0
        %1110 = vmatmul.mubr.bf16.gmra.mrb[0].mxu0 %v1045
        %v1111 = vpop.f32.mrb[0].mxu0
        %v1112 = vadd.f32 0.0, %v1111
        %v1113 = vpop.f32.mrb[0].mxu0
        %v1114 = vpop.f32.mrb[0].mxu0
        %v1115 = vadd.f32 0.0, %v1114
        %v1116 = vpop.f32.mrb[0].mxu0
        %1117 = vmatprep.mubr.bf16.mxu0 0
        %1118 = vmatmul.mubr.bf16.gmra.mrb[0].mxu0 %v1048
        %v1119 = vpop.f32.mrb[0].mxu0
        %v1120 = vadd.f32 0.0, %v1119
        %v1121 = vpop.f32.mrb[0].mxu0
        %v1122 = vpop.f32.mrb[0].mxu0
        %v1123 = vadd.f32 0.0, %v1122
        %v1124 = vpop.f32.mrb[0].mxu0
        %1125 = vmatprep.mubr.bf16.mxu0 0
        %1126 = vmatmul.mubr.bf16.gmra.mrb[0].mxu0 %v1051
        %v1127 = vpop.f32.mrb[0].mxu0
        %v1128 = vadd.f32 0.0, %v1127
        %v1129 = vpop.f32.mrb[0].mxu0
        %v1130 = vpop.f32.mrb[0].mxu0
        %v1131 = vadd.f32 0.0, %v1130
        %v1132 = vpop.f32.mrb[0].mxu0
        %1133 = vmatprep.mubr.bf16.mxu0 0
        %1134 = vmatmul.mubr.bf16.gmra.mrb[0].mxu0 %v1054
        %v1135 = vpop.f32.mrb[0].mxu0
        %v1136 = vadd.f32 0.0, %v1135
        %v1137 = vpop.f32.mrb[0].mxu0
        %v1138 = vpop.f32.mrb[0].mxu0
        %v1139 = vadd.f32 0.0, %v1138
        %v1140 = vpop.f32.mrb[0].mxu0
        %1141 = vmatprep.mubr.bf16.mxu0 0
        %1142 = vmatmul.mubr.bf16.gmra.mrb[0].mxu0 %v1057
        %v1143 = vpop.f32.mrb[0].mxu0
        %v1144 = vadd.f32 0.0, %v1143
        %v1145 = vpop.f32.mrb[0].mxu0
        %v1146 = vpop.f32.mrb[0].mxu0
        %v1147 = vadd.f32 0.0, %v1146
        %v1148 = vpop.f32.mrb[0].mxu0
        %1149 = vmatprep.mubr.bf16.mxu0 0
        %1150 = vmatmul.mubr.bf16.gmra.mrb[0].mxu0 %v1060
        %v1151 = vpop.f32.mrb[0].mxu0
        %v1152 = vadd.f32 0.0, %v1151
        %v1153 = vpop.f32.mrb[0].mxu0
        %v1154 = vpop.f32.mrb[0].mxu0
        %v1155 = vadd.f32 0.0, %v1154
        %v1156 = vpop.f32.mrb[0].mxu0
        %1157 = vmatprep.mubr.bf16.mxu0 0
        %1158 = vmatmul.mubr.bf16.gmra.mrb[0].mxu0 %v1063
        %v1159 = vpop.f32.mrb[0].mxu0
        %v1160 = vadd.f32 0.0, %v1159
        %v1161 = vpop.f32.mrb[0].mxu0
        %v1162 = vpop.f32.mrb[0].mxu0
        %v1163 = vadd.f32 0.0, %v1162
        %v1164 = vpop.f32.mrb[0].mxu0
        %1165 = vdwg.mxu0
        %v1166 = vunpack.c.l.b16 %v870
        %v1167 = vunpack.c.l.b16 %v873
        %v1168 = vunpack.c.l.b16 %v877
        %v1169 = vunpack.c.l.b16 %v880
        %v1170 = vunpack.c.l.b16 %v884
        %v1171 = vunpack.c.l.b16 %v887
        %v1172 = vunpack.c.l.b16 %v891
        %v1173 = vunpack.c.l.b16 %v894
        %v1174 = vunpack.c.l.b16 %v898
        %v1175 = vunpack.c.l.b16 %v901
        %v1176 = vunpack.c.l.b16 %v905
        %v1177 = vunpack.c.l.b16 %v908
        %v1178 = vunpack.c.l.b16 %v912
        %v1179 = vunpack.c.l.b16 %v915
        %v1180 = vunpack.c.l.b16 %v919
        %v1181 = vunpack.c.l.b16 %v922
        %v1182 = vpack.c.b16 %v1167, %v1166
        %v1183 = vpack.c.b16 %v1169, %v1168
        %v1184 = vpack.c.b16 %v1171, %v1170
        %v1185 = vpack.c.b16 %v1173, %v1172
        %v1186 = vpack.c.b16 %v1175, %v1174
        %v1187 = vpack.c.b16 %v1177, %v1176
        %v1188 = vpack.c.b16 %v1179, %v1178
        %v1189 = vpack.c.b16 %v1181, %v1180
        %v1191 = vsel %vm1040, %v1182, 0
        %v1194 = vsel %vm1040, %v1183, 0
        %v1197 = vsel %vm1040, %v1184, 0
        %v1200 = vsel %vm1040, %v1185, 0
        %v1203 = vsel %vm1040, %v1186, 0
        %v1206 = vsel %vm1040, %v1187, 0
        %v1209 = vsel %vm1040, %v1188, 0
        %v1212 = vsel %vm1040, %v1189, 0
        %v1215 = vsel %vm1065, %v923, 0
        %1217 = vmatprep.subr.bf16.mxu0 0
        %1218 = vmatpush1.bf16.msra.mxu0 %v1215
        %1219 = vmatprep.subr.bf16.mxu0 0
        %1220 = vmatpush1.bf16.msra.mxu0 0
        %1221 = vmatprep.subr.bf16.mxu0 0
        %1222 = vmatpush1.bf16.msra.mxu0 0
        %1223 = vmatprep.subr.bf16.mxu0 0
        %1224 = vmatpush1.bf16.msra.mxu0 0
        %1225 = vmatprep.subr.bf16.mxu0 0
        %1226 = vmatpush1.bf16.msra.mxu0 0
        %1227 = vmatprep.subr.bf16.mxu0 0
        %1228 = vmatpush1.bf16.msra.mxu0 0
        %1229 = vmatprep.subr.bf16.mxu0 0
        %1230 = vmatpush1.bf16.msra.mxu0 0
        %1231 = vmatprep.subr.bf16.mxu0 0
        %1232 = vmatpush1.bf16.msra.mxu0 0
        %1233 = vmatprep.subr.bf16.mxu0 0
        %1234 = vmatpush1.bf16.msra.mxu0 0
        %1235 = vmatprep.subr.bf16.mxu0 0
        %1236 = vmatpush1.bf16.msra.mxu0 0
        %1237 = vmatprep.subr.bf16.mxu0 0
        %1238 = vmatpush1.bf16.msra.mxu0 0
        %1239 = vmatprep.subr.bf16.mxu0 0
        %1240 = vmatpush1.bf16.msra.mxu0 0
        %1241 = vmatprep.subr.bf16.mxu0 0
        %1242 = vmatpush1.bf16.msra.mxu0 0
        %1243 = vmatprep.subr.bf16.mxu0 0
        %1244 = vmatpush1.bf16.msra.mxu0 0
        %1245 = vmatprep.subr.bf16.mxu0 0
        %1246 = vmatpush1.bf16.msra.mxu0 0
        %1247 = vmatprep.subr.bf16.mxu0 0
        %1248 = vmatpush1.bf16.msra.mxu0 0
        %1249 = vmatprep.mubr.bf16.mxu0 0
        %1250 = vmatmul.mubr.bf16.gmra.mrb[0].mxu0 %v1191
        %v1251 = vpop.f32.mrb[0].mxu0
        %v1252 = vadd.f32 %v1104, %v1251
        %v1253 = vpop.f32.mrb[0].mxu0
        %v1254 = vpop.f32.mrb[0].mxu0
        %v1255 = vadd.f32 %v1107, %v1254
        %v1256 = vpop.f32.mrb[0].mxu0
        %1257 = vmatprep.mubr.bf16.mxu0 0
        %1258 = vmatmul.mubr.bf16.gmra.mrb[0].mxu0 %v1194
        %v1259 = vpop.f32.mrb[0].mxu0
        %v1260 = vadd.f32 %v1112, %v1259
        %v1261 = vpop.f32.mrb[0].mxu0
        %v1262 = vpop.f32.mrb[0].mxu0
        %v1263 = vadd.f32 %v1115, %v1262
        %v1264 = vpop.f32.mrb[0].mxu0
        %1265 = vmatprep.mubr.bf16.mxu0 0
        %1266 = vmatmul.mubr.bf16.gmra.mrb[0].mxu0 %v1197
        %v1267 = vpop.f32.mrb[0].mxu0
        %v1268 = vadd.f32 %v1120, %v1267
        %v1269 = vpop.f32.mrb[0].mxu0
        %v1270 = vpop.f32.mrb[0].mxu0
        %v1271 = vadd.f32 %v1123, %v1270
        %v1272 = vpop.f32.mrb[0].mxu0
        %1273 = vmatprep.mubr.bf16.mxu0 0
        %1274 = vmatmul.mubr.bf16.gmra.mrb[0].mxu0 %v1200
        %v1275 = vpop.f32.mrb[0].mxu0
        %v1276 = vadd.f32 %v1128, %v1275
        %v1277 = vpop.f32.mrb[0].mxu0
        %v1278 = vpop.f32.mrb[0].mxu0
        %v1279 = vadd.f32 %v1131, %v1278
        %v1280 = vpop.f32.mrb[0].mxu0
        %1281 = vmatprep.mubr.bf16.mxu0 0
        %1282 = vmatmul.mubr.bf16.gmra.mrb[0].mxu0 %v1203
        %v1283 = vpop.f32.mrb[0].mxu0
        %v1284 = vadd.f32 %v1136, %v1283
        %v1285 = vpop.f32.mrb[0].mxu0
        %v1286 = vpop.f32.mrb[0].mxu0
        %v1287 = vadd.f32 %v1139, %v1286
        %v1288 = vpop.f32.mrb[0].mxu0
        %1289 = vmatprep.mubr.bf16.mxu0 0
        %1290 = vmatmul.mubr.bf16.gmra.mrb[0].mxu0 %v1206
        %v1291 = vpop.f32.mrb[0].mxu0
        %v1292 = vadd.f32 %v1144, %v1291
        %v1293 = vpop.f32.mrb[0].mxu0
        %v1294 = vpop.f32.mrb[0].mxu0
        %v1295 = vadd.f32 %v1147, %v1294
        %v1296 = vpop.f32.mrb[0].mxu0
        %1297 = vmatprep.mubr.bf16.mxu0 0
        %1298 = vmatmul.mubr.bf16.gmra.mrb[0].mxu0 %v1209
        %v1299 = vpop.f32.mrb[0].mxu0
        %v1300 = vadd.f32 %v1152, %v1299
        %v1301 = vpop.f32.mrb[0].mxu0
        %v1302 = vpop.f32.mrb[0].mxu0
        %v1303 = vadd.f32 %v1155, %v1302
        %v1304 = vpop.f32.mrb[0].mxu0
        %1305 = vmatprep.mubr.bf16.mxu0 0
        %1306 = vmatmul.mubr.bf16.gmra.mrb[0].mxu0 %v1212
        %v1307 = vpop.f32.mrb[0].mxu0
        %v1308 = vadd.f32 %v1160, %v1307
        %v1309 = vpop.f32.mrb[0].mxu0
        %v1310 = vpop.f32.mrb[0].mxu0
        %v1311 = vadd.f32 %v1163, %v1310
        %v1312 = vpop.f32.mrb[0].mxu0
        %1313 = vdwg.mxu0
        %v1314 = vld [vmem:[%s815] sm:$0x8]
        %v1315 = vld [vmem:[%s815 + $0x8] sm:$0x7]
        %v1316 = vld [vmem:[%s815 + $0xc] sm:$0x8]
        %v1317 = vld [vmem:[%s815 + $0x14] sm:$0x7]
        %v1318 = vld [vmem:[%s815 + $0x18] sm:$0x8]
        %v1319 = vld [vmem:[%s815 + $0x20] sm:$0x7]
        %v1320 = vld [vmem:[%s815 + $0x24] sm:$0x8]
        %v1321 = vld [vmem:[%s815 + $0x2c] sm:$0x7]
        %v1322 = vld [vmem:[%s815 + $0x30] sm:$0x8]
        %v1323 = vld [vmem:[%s815 + $0x38] sm:$0x7]
        %v1324 = vld [vmem:[%s815 + $0x3c] sm:$0x8]
        %v1325 = vld [vmem:[%s815 + $0x44] sm:$0x7]
        %v1326 = vld [vmem:[%s815 + $0x48] sm:$0x8]
        %v1327 = vld [vmem:[%s815 + $0x50] sm:$0x7]
        %v1328 = vld [vmem:[%s815 + $0x54] sm:$0x8]
        %v1329 = vld [vmem:[%s815 + $0x5c] sm:$0x7]
        %vm1346 = vcmask 1040384
        %vm1347 = vcmask 1044484
        %vm1348 = vmor %vm1346, %vm1347
        %v1349 = vrot.slane %v1314, 7
        %v1350 = vrot.slane %v1349, 4
        %v1351 = vrot.slane %v817, 7
        %v1352 = vsel %vm1348, %v1350, %v1351
        %v1353 = vrot.slane %v1351, 4
        %v1354 = vrot.slane %v1315, 7
        %v1355 = vsel %vm1348, %v1353, %v1354
        %v1356 = vrot.slane %v1316, 7
        %v1357 = vrot.slane %v1356, 4
        %v1358 = vrot.slane %v820, 7
        %v1359 = vsel %vm1348, %v1357, %v1358
        %v1360 = vrot.slane %v1358, 4
        %v1361 = vrot.slane %v1317, 7
        %v1362 = vsel %vm1348, %v1360, %v1361
        %v1363 = vrot.slane %v1318, 7
        %v1364 = vrot.slane %v1363, 4
        %v1365 = vrot.slane %v823, 7
        %v1366 = vsel %vm1348, %v1364, %v1365
        %v1367 = vrot.slane %v1365, 4
        %v1368 = vrot.slane %v1319, 7
        %v1369 = vsel %vm1348, %v1367, %v1368
        %v1370 = vrot.slane %v1320, 7
        %v1371 = vrot.slane %v1370, 4
        %v1372 = vrot.slane %v826, 7
        %v1373 = vsel %vm1348, %v1371, %v1372
        %v1374 = vrot.slane %v1372, 4
        %v1375 = vrot.slane %v1321, 7
        %v1376 = vsel %vm1348, %v1374, %v1375
        %v1377 = vrot.slane %v1322, 7
        %v1378 = vrot.slane %v1377, 4
        %v1379 = vrot.slane %v829, 7
        %v1380 = vsel %vm1348, %v1378, %v1379
        %v1381 = vrot.slane %v1379, 4
        %v1382 = vrot.slane %v1323, 7
        %v1383 = vsel %vm1348, %v1381, %v1382
        %v1384 = vrot.slane %v1324, 7
        %v1385 = vrot.slane %v1384, 4
        %v1386 = vrot.slane %v832, 7
        %v1387 = vsel %vm1348, %v1385, %v1386
        %v1388 = vrot.slane %v1386, 4
        %v1389 = vrot.slane %v1325, 7
        %v1390 = vsel %vm1348, %v1388, %v1389
        %v1391 = vrot.slane %v1326, 7
        %v1392 = vrot.slane %v1391, 4
        %v1393 = vrot.slane %v835, 7
        %v1394 = vsel %vm1348, %v1392, %v1393
        %v1395 = vrot.slane %v1393, 4
        %v1396 = vrot.slane %v1327, 7
        %v1397 = vsel %vm1348, %v1395, %v1396
        %v1398 = vrot.slane %v1328, 7
        %v1399 = vrot.slane %v1398, 4
        %v1400 = vrot.slane %v838, 7
        %v1401 = vsel %vm1348, %v1399, %v1400
        %v1402 = vrot.slane %v1400, 4
        %v1403 = vrot.slane %v1329, 7
        %v1404 = vsel %vm1348, %v1402, %v1403
        %v1405 = vld [vmem:[%s290 + $0x8] sm:$0xf]
        %v1406 = vunpack.c.l.b16 %v1352
        %v1407 = vunpack.c.l.b16 %v1355
        %v1408 = vunpack.c.l.b16 %v1359
        %v1409 = vunpack.c.l.b16 %v1362
        %v1410 = vunpack.c.l.b16 %v1366
        %v1411 = vunpack.c.l.b16 %v1369
        %v1412 = vunpack.c.l.b16 %v1373
        %v1413 = vunpack.c.l.b16 %v1376
        %v1414 = vunpack.c.l.b16 %v1380
        %v1415 = vunpack.c.l.b16 %v1383
        %v1416 = vunpack.c.l.b16 %v1387
        %v1417 = vunpack.c.l.b16 %v1390
        %v1418 = vunpack.c.l.b16 %v1394
        %v1419 = vunpack.c.l.b16 %v1397
        %v1420 = vunpack.c.l.b16 %v1401
        %v1421 = vunpack.c.l.b16 %v1404
        %v1422 = vpack.c.b16 %v1407, %v1406
        %v1423 = vpack.c.b16 %v1409, %v1408
        %v1424 = vpack.c.b16 %v1411, %v1410
        %v1425 = vpack.c.b16 %v1413, %v1412
        %v1426 = vpack.c.b16 %v1415, %v1414
        %v1427 = vpack.c.b16 %v1417, %v1416
        %v1428 = vpack.c.b16 %v1419, %v1418
        %v1429 = vpack.c.b16 %v1421, %v1420
        %v1431 = vsel %vm1040, %v1422, 0
        %v1434 = vsel %vm1040, %v1423, 0
        %v1437 = vsel %vm1040, %v1424, 0
        %v1440 = vsel %vm1040, %v1425, 0
        %v1443 = vsel %vm1040, %v1426, 0
        %v1446 = vsel %vm1040, %v1427, 0
        %v1449 = vsel %vm1040, %v1428, 0
        %v1452 = vsel %vm1040, %v1429, 0
        %v1455 = vsel %vm1065, %v1405, 0
        %1457 = vmatprep.subr.bf16.mxu0 0
        %1458 = vmatpush1.bf16.msra.mxu0 %v1455
        %1459 = vmatprep.subr.bf16.mxu0 0
        %1460 = vmatpush1.bf16.msra.mxu0 0
        %1461 = vmatprep.subr.bf16.mxu0 0
        %1462 = vmatpush1.bf16.msra.mxu0 0
        %1463 = vmatprep.subr.bf16.mxu0 0
        %1464 = vmatpush1.bf16.msra.mxu0 0
        %1465 = vmatprep.subr.bf16.mxu0 0
        %1466 = vmatpush1.bf16.msra.mxu0 0
        %1467 = vmatprep.subr.bf16.mxu0 0
        %1468 = vmatpush1.bf16.msra.mxu0 0
        %1469 = vmatprep.subr.bf16.mxu0 0
        %1470 = vmatpush1.bf16.msra.mxu0 0
        %1471 = vmatprep.subr.bf16.mxu0 0
        %1472 = vmatpush1.bf16.msra.mxu0 0
        %1473 = vmatprep.subr.bf16.mxu0 0
        %1474 = vmatpush1.bf16.msra.mxu0 0
        %1475 = vmatprep.subr.bf16.mxu0 0
        %1476 = vmatpush1.bf16.msra.mxu0 0
        %1477 = vmatprep.subr.bf16.mxu0 0
        %1478 = vmatpush1.bf16.msra.mxu0 0
        %1479 = vmatprep.subr.bf16.mxu0 0
        %1480 = vmatpush1.bf16.msra.mxu0 0
        %1481 = vmatprep.subr.bf16.mxu0 0
        %1482 = vmatpush1.bf16.msra.mxu0 0
        %1483 = vmatprep.subr.bf16.mxu0 0
        %1484 = vmatpush1.bf16.msra.mxu0 0
        %1485 = vmatprep.subr.bf16.mxu0 0
        %1486 = vmatpush1.bf16.msra.mxu0 0
        %1487 = vmatprep.subr.bf16.mxu0 0
        %1488 = vmatpush1.bf16.msra.mxu0 0
        %1489 = vmatprep.mubr.bf16.mxu0 0
        %1490 = vmatmul.mubr.bf16.gmra.mrb[0].mxu0 %v1431
        %v1491 = vpop.f32.mrb[0].mxu0
        %v1492 = vadd.f32 0.0, %v1491
        %v1493 = vpop.f32.mrb[0].mxu0
        %v1494 = vpop.f32.mrb[0].mxu0
        %v1495 = vadd.f32 0.0, %v1494
        %v1496 = vpop.f32.mrb[0].mxu0
        %1497 = vmatprep.mubr.bf16.mxu0 0
        %1498 = vmatmul.mubr.bf16.gmra.mrb[0].mxu0 %v1434
        %v1499 = vpop.f32.mrb[0].mxu0
        %v1500 = vadd.f32 0.0, %v1499
        %v1501 = vpop.f32.mrb[0].mxu0
        %v1502 = vpop.f32.mrb[0].mxu0
        %v1503 = vadd.f32 0.0, %v1502
        %v1504 = vpop.f32.mrb[0].mxu0
        %1505 = vmatprep.mubr.bf16.mxu0 0
        %1506 = vmatmul.mubr.bf16.gmra.mrb[0].mxu0 %v1437
        %v1507 = vpop.f32.mrb[0].mxu0
        %v1508 = vadd.f32 0.0, %v1507
        %v1509 = vpop.f32.mrb[0].mxu0
        %v1510 = vpop.f32.mrb[0].mxu0
        %v1511 = vadd.f32 0.0, %v1510
        %v1512 = vpop.f32.mrb[0].mxu0
        %1513 = vmatprep.mubr.bf16.mxu0 0
        %1514 = vmatmul.mubr.bf16.gmra.mrb[0].mxu0 %v1440
        %v1515 = vpop.f32.mrb[0].mxu0
        %v1516 = vadd.f32 0.0, %v1515
        %v1517 = vpop.f32.mrb[0].mxu0
        %v1518 = vpop.f32.mrb[0].mxu0
        %v1519 = vadd.f32 0.0, %v1518
        %v1520 = vpop.f32.mrb[0].mxu0
        %1521 = vmatprep.mubr.bf16.mxu0 0
        %1522 = vmatmul.mubr.bf16.gmra.mrb[0].mxu0 %v1443
        %v1523 = vpop.f32.mrb[0].mxu0
        %v1524 = vadd.f32 0.0, %v1523
        %v1525 = vpop.f32.mrb[0].mxu0
        %v1526 = vpop.f32.mrb[0].mxu0
        %v1527 = vadd.f32 0.0, %v1526
        %v1528 = vpop.f32.mrb[0].mxu0
        %1529 = vmatprep.mubr.bf16.mxu0 0
        %1530 = vmatmul.mubr.bf16.gmra.mrb[0].mxu0 %v1446
        %v1531 = vpop.f32.mrb[0].mxu0
        %v1532 = vadd.f32 0.0, %v1531
        %v1533 = vpop.f32.mrb[0].mxu0
        %v1534 = vpop.f32.mrb[0].mxu0
        %v1535 = vadd.f32 0.0, %v1534
        %v1536 = vpop.f32.mrb[0].mxu0
        %1537 = vmatprep.mubr.bf16.mxu0 0
        %1538 = vmatmul.mubr.bf16.gmra.mrb[0].mxu0 %v1449
        %v1539 = vpop.f32.mrb[0].mxu0
        %v1540 = vadd.f32 0.0, %v1539
        %v1541 = vpop.f32.mrb[0].mxu0
        %v1542 = vpop.f32.mrb[0].mxu0
        %v1543 = vadd.f32 0.0, %v1542
        %v1544 = vpop.f32.mrb[0].mxu0
        %1545 = vmatprep.mubr.bf16.mxu0 0
        %1546 = vmatmul.mubr.bf16.gmra.mrb[0].mxu0 %v1452
        %v1547 = vpop.f32.mrb[0].mxu0
        %v1548 = vadd.f32 0.0, %v1547
        %v1549 = vpop.f32.mrb[0].mxu0
        %v1550 = vpop.f32.mrb[0].mxu0
        %v1551 = vadd.f32 0.0, %v1550
        %v1552 = vpop.f32.mrb[0].mxu0
        %1553 = vdwg.mxu0
        %v1554 = vadd.f32 %v1252, %v1492
        %v1555 = vadd.f32 %v1255, %v1495
        %v1556 = vadd.f32 %v1260, %v1500
        %v1557 = vadd.f32 %v1263, %v1503
        %v1558 = vadd.f32 %v1268, %v1508
        %v1559 = vadd.f32 %v1271, %v1511
        %v1560 = vadd.f32 %v1276, %v1516
        %v1561 = vadd.f32 %v1279, %v1519
        %v1562 = vadd.f32 %v1284, %v1524
        %v1563 = vadd.f32 %v1287, %v1527
        %v1564 = vadd.f32 %v1292, %v1532
        %v1565 = vadd.f32 %v1295, %v1535
        %v1566 = vadd.f32 %v1300, %v1540
        %v1567 = vadd.f32 %v1303, %v1543
        %v1568 = vadd.f32 %v1308, %v1548
        %v1569 = vadd.f32 %v1311, %v1551
        %s1570 = sadd.s32 %s310, 4
        %s1571 = smul.u32 %s1570, 3
        %s1572 = smul.addr %s1571, 4
        %s1573 = scalar_lea.vmem %s285, %s1572
        %v1574 = vld [vmem:[%s1573] sm:$0xe]
        %v1575 = vld [vmem:[%s1573 + $0x4] sm:$0xf]
        %v1576 = vld [vmem:[%s1573 + $0x8] sm:$0x1]
        %v1577 = vld [vmem:[%s1573 + $0xc] sm:$0xe]
        %v1578 = vld [vmem:[%s1573 + $0x10] sm:$0xf]
        %v1579 = vld [vmem:[%s1573 + $0x14] sm:$0x1]
        %v1580 = vld [vmem:[%s1573 + $0x18] sm:$0xe]
        %v1581 = vld [vmem:[%s1573 + $0x1c] sm:$0xf]
        %v1582 = vld [vmem:[%s1573 + $0x20] sm:$0x1]
        %v1583 = vld [vmem:[%s1573 + $0x24] sm:$0xe]
        %v1584 = vld [vmem:[%s1573 + $0x28] sm:$0xf]
        %v1585 = vld [vmem:[%s1573 + $0x2c] sm:$0x1]
        %v1586 = vld [vmem:[%s1573 + $0x30] sm:$0xe]
        %v1587 = vld [vmem:[%s1573 + $0x34] sm:$0xf]
        %v1588 = vld [vmem:[%s1573 + $0x38] sm:$0x1]
        %v1589 = vld [vmem:[%s1573 + $0x3c] sm:$0xe]
        %v1590 = vld [vmem:[%s1573 + $0x40] sm:$0xf]
        %v1591 = vld [vmem:[%s1573 + $0x44] sm:$0x1]
        %v1592 = vld [vmem:[%s1573 + $0x48] sm:$0xe]
        %v1593 = vld [vmem:[%s1573 + $0x4c] sm:$0xf]
        %v1594 = vld [vmem:[%s1573 + $0x50] sm:$0x1]
        %v1595 = vld [vmem:[%s1573 + $0x54] sm:$0xe]
        %v1596 = vld [vmem:[%s1573 + $0x58] sm:$0xf]
        %v1597 = vld [vmem:[%s1573 + $0x5c] sm:$0x1]
        %v1622 = vrot.slane %v1574, 5
        %v1623 = vrot.slane %v1622, 4
        %v1624 = vrot.slane %v1575, 5
        %v1625 = vsel %vm866, %v1623, %v1624
        %v1626 = vrot.slane %v1624, 4
        %v1627 = vrot.slane %v1576, 5
        %v1628 = vsel %vm866, %v1626, %v1627
        %v1629 = vrot.slane %v1577, 5
        %v1630 = vrot.slane %v1629, 4
        %v1631 = vrot.slane %v1578, 5
        %v1632 = vsel %vm866, %v1630, %v1631
        %v1633 = vrot.slane %v1631, 4
        %v1634 = vrot.slane %v1579, 5
        %v1635 = vsel %vm866, %v1633, %v1634
        %v1636 = vrot.slane %v1580, 5
        %v1637 = vrot.slane %v1636, 4
        %v1638 = vrot.slane %v1581, 5
        %v1639 = vsel %vm866, %v1637, %v1638
        %v1640 = vrot.slane %v1638, 4
        %v1641 = vrot.slane %v1582, 5
        %v1642 = vsel %vm866, %v1640, %v1641
        %v1643 = vrot.slane %v1583, 5
        %v1644 = vrot.slane %v1643, 4
        %v1645 = vrot.slane %v1584, 5
        %v1646 = vsel %vm866, %v1644, %v1645
        %v1647 = vrot.slane %v1645, 4
        %v1648 = vrot.slane %v1585, 5
        %v1649 = vsel %vm866, %v1647, %v1648
        %v1650 = vrot.slane %v1586, 5
        %v1651 = vrot.slane %v1650, 4
        %v1652 = vrot.slane %v1587, 5
        %v1653 = vsel %vm866, %v1651, %v1652
        %v1654 = vrot.slane %v1652, 4
        %v1655 = vrot.slane %v1588, 5
        %v1656 = vsel %vm866, %v1654, %v1655
        %v1657 = vrot.slane %v1589, 5
        %v1658 = vrot.slane %v1657, 4
        %v1659 = vrot.slane %v1590, 5
        %v1660 = vsel %vm866, %v1658, %v1659
        %v1661 = vrot.slane %v1659, 4
        %v1662 = vrot.slane %v1591, 5
        %v1663 = vsel %vm866, %v1661, %v1662
        %v1664 = vrot.slane %v1592, 5
        %v1665 = vrot.slane %v1664, 4
        %v1666 = vrot.slane %v1593, 5
        %v1667 = vsel %vm866, %v1665, %v1666
        %v1668 = vrot.slane %v1666, 4
        %v1669 = vrot.slane %v1594, 5
        %v1670 = vsel %vm866, %v1668, %v1669
        %v1671 = vrot.slane %v1595, 5
        %v1672 = vrot.slane %v1671, 4
        %v1673 = vrot.slane %v1596, 5
        %v1674 = vsel %vm866, %v1672, %v1673
        %v1675 = vrot.slane %v1673, 4
        %v1676 = vrot.slane %v1597, 5
        %v1677 = vsel %vm866, %v1675, %v1676
        %v1678 = vld [vmem:[%s290 + $0xc] sm:$0xf]
        %v1679 = vunpack.c.l.b16 %v1625
        %v1680 = vunpack.c.l.b16 %v1628
        %v1681 = vunpack.c.l.b16 %v1632
        %v1682 = vunpack.c.l.b16 %v1635
        %v1683 = vunpack.c.l.b16 %v1639
        %v1684 = vunpack.c.l.b16 %v1642
        %v1685 = vunpack.c.l.b16 %v1646
        %v1686 = vunpack.c.l.b16 %v1649
        %v1687 = vunpack.c.l.b16 %v1653
        %v1688 = vunpack.c.l.b16 %v1656
        %v1689 = vunpack.c.l.b16 %v1660
        %v1690 = vunpack.c.l.b16 %v1663
        %v1691 = vunpack.c.l.b16 %v1667
        %v1692 = vunpack.c.l.b16 %v1670
        %v1693 = vunpack.c.l.b16 %v1674
        %v1694 = vunpack.c.l.b16 %v1677
        %v1695 = vpack.c.b16 %v1680, %v1679
        %v1696 = vpack.c.b16 %v1682, %v1681
        %v1697 = vpack.c.b16 %v1684, %v1683
        %v1698 = vpack.c.b16 %v1686, %v1685
        %v1699 = vpack.c.b16 %v1688, %v1687
        %v1700 = vpack.c.b16 %v1690, %v1689
        %v1701 = vpack.c.b16 %v1692, %v1691
        %v1702 = vpack.c.b16 %v1694, %v1693
        %v1704 = vsel %vm1040, %v1695, 0
        %v1707 = vsel %vm1040, %v1696, 0
        %v1710 = vsel %vm1040, %v1697, 0
        %v1713 = vsel %vm1040, %v1698, 0
        %v1716 = vsel %vm1040, %v1699, 0
        %v1719 = vsel %vm1040, %v1700, 0
        %v1722 = vsel %vm1040, %v1701, 0
        %v1725 = vsel %vm1040, %v1702, 0
        %v1728 = vsel %vm1065, %v1678, 0
        %1730 = vmatprep.subr.bf16.mxu0 0
        %1731 = vmatpush1.bf16.msra.mxu0 %v1728
        %1732 = vmatprep.subr.bf16.mxu0 0
        %1733 = vmatpush1.bf16.msra.mxu0 0
        %1734 = vmatprep.subr.bf16.mxu0 0
        %1735 = vmatpush1.bf16.msra.mxu0 0
        %1736 = vmatprep.subr.bf16.mxu0 0
        %1737 = vmatpush1.bf16.msra.mxu0 0
        %1738 = vmatprep.subr.bf16.mxu0 0
        %1739 = vmatpush1.bf16.msra.mxu0 0
        %1740 = vmatprep.subr.bf16.mxu0 0
        %1741 = vmatpush1.bf16.msra.mxu0 0
        %1742 = vmatprep.subr.bf16.mxu0 0
        %1743 = vmatpush1.bf16.msra.mxu0 0
        %1744 = vmatprep.subr.bf16.mxu0 0
        %1745 = vmatpush1.bf16.msra.mxu0 0
        %1746 = vmatprep.subr.bf16.mxu0 0
        %1747 = vmatpush1.bf16.msra.mxu0 0
        %1748 = vmatprep.subr.bf16.mxu0 0
        %1749 = vmatpush1.bf16.msra.mxu0 0
        %1750 = vmatprep.subr.bf16.mxu0 0
        %1751 = vmatpush1.bf16.msra.mxu0 0
        %1752 = vmatprep.subr.bf16.mxu0 0
        %1753 = vmatpush1.bf16.msra.mxu0 0
        %1754 = vmatprep.subr.bf16.mxu0 0
        %1755 = vmatpush1.bf16.msra.mxu0 0
        %1756 = vmatprep.subr.bf16.mxu0 0
        %1757 = vmatpush1.bf16.msra.mxu0 0
        %1758 = vmatprep.subr.bf16.mxu0 0
        %1759 = vmatpush1.bf16.msra.mxu0 0
        %1760 = vmatprep.subr.bf16.mxu0 0
        %1761 = vmatpush1.bf16.msra.mxu0 0
        %1762 = vmatprep.mubr.bf16.mxu0 0
        %1763 = vmatmul.mubr.bf16.gmra.mrb[0].mxu0 %v1704
        %v1764 = vpop.f32.mrb[0].mxu0
        %v1765 = vadd.f32 0.0, %v1764
        %v1766 = vpop.f32.mrb[0].mxu0
        %v1767 = vpop.f32.mrb[0].mxu0
        %v1768 = vadd.f32 0.0, %v1767
        %v1769 = vpop.f32.mrb[0].mxu0
        %1770 = vmatprep.mubr.bf16.mxu0 0
        %1771 = vmatmul.mubr.bf16.gmra.mrb[0].mxu0 %v1707
        %v1772 = vpop.f32.mrb[0].mxu0
        %v1773 = vadd.f32 0.0, %v1772
        %v1774 = vpop.f32.mrb[0].mxu0
        %v1775 = vpop.f32.mrb[0].mxu0
        %v1776 = vadd.f32 0.0, %v1775
        %v1777 = vpop.f32.mrb[0].mxu0
        %1778 = vmatprep.mubr.bf16.mxu0 0
        %1779 = vmatmul.mubr.bf16.gmra.mrb[0].mxu0 %v1710
        %v1780 = vpop.f32.mrb[0].mxu0
        %v1781 = vadd.f32 0.0, %v1780
        %v1782 = vpop.f32.mrb[0].mxu0
        %v1783 = vpop.f32.mrb[0].mxu0
        %v1784 = vadd.f32 0.0, %v1783
        %v1785 = vpop.f32.mrb[0].mxu0
        %1786 = vmatprep.mubr.bf16.mxu0 0
        %1787 = vmatmul.mubr.bf16.gmra.mrb[0].mxu0 %v1713
        %v1788 = vpop.f32.mrb[0].mxu0
        %v1789 = vadd.f32 0.0, %v1788
        %v1790 = vpop.f32.mrb[0].mxu0
        %v1791 = vpop.f32.mrb[0].mxu0
        %v1792 = vadd.f32 0.0, %v1791
        %v1793 = vpop.f32.mrb[0].mxu0
        %1794 = vmatprep.mubr.bf16.mxu0 0
        %1795 = vmatmul.mubr.bf16.gmra.mrb[0].mxu0 %v1716
        %v1796 = vpop.f32.mrb[0].mxu0
        %v1797 = vadd.f32 0.0, %v1796
        %v1798 = vpop.f32.mrb[0].mxu0
        %v1799 = vpop.f32.mrb[0].mxu0
        %v1800 = vadd.f32 0.0, %v1799
        %v1801 = vpop.f32.mrb[0].mxu0
        %1802 = vmatprep.mubr.bf16.mxu0 0
        %1803 = vmatmul.mubr.bf16.gmra.mrb[0].mxu0 %v1719
        %v1804 = vpop.f32.mrb[0].mxu0
        %v1805 = vadd.f32 0.0, %v1804
        %v1806 = vpop.f32.mrb[0].mxu0
        %v1807 = vpop.f32.mrb[0].mxu0
        %v1808 = vadd.f32 0.0, %v1807
        %v1809 = vpop.f32.mrb[0].mxu0
        %1810 = vmatprep.mubr.bf16.mxu0 0
        %1811 = vmatmul.mubr.bf16.gmra.mrb[0].mxu0 %v1722
        %v1812 = vpop.f32.mrb[0].mxu0
        %v1813 = vadd.f32 0.0, %v1812
        %v1814 = vpop.f32.mrb[0].mxu0
        %v1815 = vpop.f32.mrb[0].mxu0
        %v1816 = vadd.f32 0.0, %v1815
        %v1817 = vpop.f32.mrb[0].mxu0
        %1818 = vmatprep.mubr.bf16.mxu0 0
        %1819 = vmatmul.mubr.bf16.gmra.mrb[0].mxu0 %v1725
        %v1820 = vpop.f32.mrb[0].mxu0
        %v1821 = vadd.f32 0.0, %v1820
        %v1822 = vpop.f32.mrb[0].mxu0
        %v1823 = vpop.f32.mrb[0].mxu0
        %v1824 = vadd.f32 0.0, %v1823
        %v1825 = vpop.f32.mrb[0].mxu0
        %1826 = vdwg.mxu0
        %v1827 = vadd.f32 %v1554, %v1765
        %v1828 = vadd.f32 %v1555, %v1768
        %v1829 = vadd.f32 %v1556, %v1773
        %v1830 = vadd.f32 %v1557, %v1776
        %v1831 = vadd.f32 %v1558, %v1781
        %v1832 = vadd.f32 %v1559, %v1784
        %v1833 = vadd.f32 %v1560, %v1789
        %v1834 = vadd.f32 %v1561, %v1792
        %v1835 = vadd.f32 %v1562, %v1797
        %v1836 = vadd.f32 %v1563, %v1800
        %v1837 = vadd.f32 %v1564, %v1805
        %v1838 = vadd.f32 %v1565, %v1808
        %v1839 = vadd.f32 %v1566, %v1813
        %v1840 = vadd.f32 %v1567, %v1816
        %v1841 = vadd.f32 %v1568, %v1821
        %v1842 = vadd.f32 %v1569, %v1824
        %v1843 = vld [vmem:[%s1573] sm:$0xc]
        %v1844 = vld [vmem:[%s1573 + $0x8] sm:$0x3]
        %v1845 = vld [vmem:[%s1573 + $0xc] sm:$0xc]
        %v1846 = vld [vmem:[%s1573 + $0x14] sm:$0x3]
        %v1847 = vld [vmem:[%s1573 + $0x18] sm:$0xc]
        %v1848 = vld [vmem:[%s1573 + $0x20] sm:$0x3]
        %v1849 = vld [vmem:[%s1573 + $0x24] sm:$0xc]
        %v1850 = vld [vmem:[%s1573 + $0x2c] sm:$0x3]
        %v1851 = vld [vmem:[%s1573 + $0x30] sm:$0xc]
        %v1852 = vld [vmem:[%s1573 + $0x38] sm:$0x3]
        %v1853 = vld [vmem:[%s1573 + $0x3c] sm:$0xc]
        %v1854 = vld [vmem:[%s1573 + $0x44] sm:$0x3]
        %v1855 = vld [vmem:[%s1573 + $0x48] sm:$0xc]
        %v1856 = vld [vmem:[%s1573 + $0x50] sm:$0x3]
        %v1857 = vld [vmem:[%s1573 + $0x54] sm:$0xc]
        %v1858 = vld [vmem:[%s1573 + $0x5c] sm:$0x3]
        %v1875 = vrot.slane %v1843, 6
        %v1876 = vrot.slane %v1875, 4
        %v1877 = vrot.slane %v1575, 6
        %v1878 = vsel %vm958, %v1876, %v1877
        %v1879 = vrot.slane %v1877, 4
        %v1880 = vrot.slane %v1844, 6
        %v1881 = vsel %vm958, %v1879, %v1880
        %v1882 = vrot.slane %v1845, 6
        %v1883 = vrot.slane %v1882, 4
        %v1884 = vrot.slane %v1578, 6
        %v1885 = vsel %vm958, %v1883, %v1884
        %v1886 = vrot.slane %v1884, 4
        %v1887 = vrot.slane %v1846, 6
        %v1888 = vsel %vm958, %v1886, %v1887
        %v1889 = vrot.slane %v1847, 6
        %v1890 = vrot.slane %v1889, 4
        %v1891 = vrot.slane %v1581, 6
        %v1892 = vsel %vm958, %v1890, %v1891
        %v1893 = vrot.slane %v1891, 4
        %v1894 = vrot.slane %v1848, 6
        %v1895 = vsel %vm958, %v1893, %v1894
        %v1896 = vrot.slane %v1849, 6
        %v1897 = vrot.slane %v1896, 4
        %v1898 = vrot.slane %v1584, 6
        %v1899 = vsel %vm958, %v1897, %v1898
        %v1900 = vrot.slane %v1898, 4
        %v1901 = vrot.slane %v1850, 6
        %v1902 = vsel %vm958, %v1900, %v1901
        %v1903 = vrot.slane %v1851, 6
        %v1904 = vrot.slane %v1903, 4
        %v1905 = vrot.slane %v1587, 6
        %v1906 = vsel %vm958, %v1904, %v1905
        %v1907 = vrot.slane %v1905, 4
        %v1908 = vrot.slane %v1852, 6
        %v1909 = vsel %vm958, %v1907, %v1908
        %v1910 = vrot.slane %v1853, 6
        %v1911 = vrot.slane %v1910, 4
        %v1912 = vrot.slane %v1590, 6
        %v1913 = vsel %vm958, %v1911, %v1912
        %v1914 = vrot.slane %v1912, 4
        %v1915 = vrot.slane %v1854, 6
        %v1916 = vsel %vm958, %v1914, %v1915
        %v1917 = vrot.slane %v1855, 6
        %v1918 = vrot.slane %v1917, 4
        %v1919 = vrot.slane %v1593, 6
        %v1920 = vsel %vm958, %v1918, %v1919
        %v1921 = vrot.slane %v1919, 4
        %v1922 = vrot.slane %v1856, 6
        %v1923 = vsel %vm958, %v1921, %v1922
        %v1924 = vrot.slane %v1857, 6
        %v1925 = vrot.slane %v1924, 4
        %v1926 = vrot.slane %v1596, 6
        %v1927 = vsel %vm958, %v1925, %v1926
        %v1928 = vrot.slane %v1926, 4
        %v1929 = vrot.slane %v1858, 6
        %v1930 = vsel %vm958, %v1928, %v1929
        %v1931 = vld [vmem:[%s290 + $0x10] sm:$0xf]
        %v1932 = vunpack.c.l.b16 %v1878
        %v1933 = vunpack.c.l.b16 %v1881
        %v1934 = vunpack.c.l.b16 %v1885
        %v1935 = vunpack.c.l.b16 %v1888
        %v1936 = vunpack.c.l.b16 %v1892
        %v1937 = vunpack.c.l.b16 %v1895
        %v1938 = vunpack.c.l.b16 %v1899
        %v1939 = vunpack.c.l.b16 %v1902
        %v1940 = vunpack.c.l.b16 %v1906
        %v1941 = vunpack.c.l.b16 %v1909
        %v1942 = vunpack.c.l.b16 %v1913
        %v1943 = vunpack.c.l.b16 %v1916
        %v1944 = vunpack.c.l.b16 %v1920
        %v1945 = vunpack.c.l.b16 %v1923
        %v1946 = vunpack.c.l.b16 %v1927
        %v1947 = vunpack.c.l.b16 %v1930
        %v1948 = vpack.c.b16 %v1933, %v1932
        %v1949 = vpack.c.b16 %v1935, %v1934
        %v1950 = vpack.c.b16 %v1937, %v1936
        %v1951 = vpack.c.b16 %v1939, %v1938
        %v1952 = vpack.c.b16 %v1941, %v1940
        %v1953 = vpack.c.b16 %v1943, %v1942
        %v1954 = vpack.c.b16 %v1945, %v1944
        %v1955 = vpack.c.b16 %v1947, %v1946
        %v1957 = vsel %vm1040, %v1948, 0
        %v1960 = vsel %vm1040, %v1949, 0
        %v1963 = vsel %vm1040, %v1950, 0
        %v1966 = vsel %vm1040, %v1951, 0
        %v1969 = vsel %vm1040, %v1952, 0
        %v1972 = vsel %vm1040, %v1953, 0
        %v1975 = vsel %vm1040, %v1954, 0
        %v1978 = vsel %vm1040, %v1955, 0
        %v1981 = vsel %vm1065, %v1931, 0
        %1983 = vmatprep.subr.bf16.mxu0 0
        %1984 = vmatpush1.bf16.msra.mxu0 %v1981
        %1985 = vmatprep.subr.bf16.mxu0 0
        %1986 = vmatpush1.bf16.msra.mxu0 0
        %1987 = vmatprep.subr.bf16.mxu0 0
        %1988 = vmatpush1.bf16.msra.mxu0 0
        %1989 = vmatprep.subr.bf16.mxu0 0
        %1990 = vmatpush1.bf16.msra.mxu0 0
        %1991 = vmatprep.subr.bf16.mxu0 0
        %1992 = vmatpush1.bf16.msra.mxu0 0
        %1993 = vmatprep.subr.bf16.mxu0 0
        %1994 = vmatpush1.bf16.msra.mxu0 0
        %1995 = vmatprep.subr.bf16.mxu0 0
        %1996 = vmatpush1.bf16.msra.mxu0 0
        %1997 = vmatprep.subr.bf16.mxu0 0
        %1998 = vmatpush1.bf16.msra.mxu0 0
        %1999 = vmatprep.subr.bf16.mxu0 0
        %2000 = vmatpush1.bf16.msra.mxu0 0
        %2001 = vmatprep.subr.bf16.mxu0 0
        %2002 = vmatpush1.bf16.msra.mxu0 0
        %2003 = vmatprep.subr.bf16.mxu0 0
        %2004 = vmatpush1.bf16.msra.mxu0 0
        %2005 = vmatprep.subr.bf16.mxu0 0
        %2006 = vmatpush1.bf16.msra.mxu0 0
        %2007 = vmatprep.subr.bf16.mxu0 0
        %2008 = vmatpush1.bf16.msra.mxu0 0
        %2009 = vmatprep.subr.bf16.mxu0 0
        %2010 = vmatpush1.bf16.msra.mxu0 0
        %2011 = vmatprep.subr.bf16.mxu0 0
        %2012 = vmatpush1.bf16.msra.mxu0 0
        %2013 = vmatprep.subr.bf16.mxu0 0
        %2014 = vmatpush1.bf16.msra.mxu0 0
        %2015 = vmatprep.mubr.bf16.mxu0 0
        %2016 = vmatmul.mubr.bf16.gmra.mrb[0].mxu0 %v1957
        %v2017 = vpop.f32.mrb[0].mxu0
        %v2018 = vadd.f32 0.0, %v2017
        %v2019 = vpop.f32.mrb[0].mxu0
        %v2020 = vpop.f32.mrb[0].mxu0
        %v2021 = vadd.f32 0.0, %v2020
        %v2022 = vpop.f32.mrb[0].mxu0
        %2023 = vmatprep.mubr.bf16.mxu0 0
        %2024 = vmatmul.mubr.bf16.gmra.mrb[0].mxu0 %v1960
        %v2025 = vpop.f32.mrb[0].mxu0
        %v2026 = vadd.f32 0.0, %v2025
        %v2027 = vpop.f32.mrb[0].mxu0
        %v2028 = vpop.f32.mrb[0].mxu0
        %v2029 = vadd.f32 0.0, %v2028
        %v2030 = vpop.f32.mrb[0].mxu0
        %2031 = vmatprep.mubr.bf16.mxu0 0
        %2032 = vmatmul.mubr.bf16.gmra.mrb[0].mxu0 %v1963
        %v2033 = vpop.f32.mrb[0].mxu0
        %v2034 = vadd.f32 0.0, %v2033
        %v2035 = vpop.f32.mrb[0].mxu0
        %v2036 = vpop.f32.mrb[0].mxu0
        %v2037 = vadd.f32 0.0, %v2036
        %v2038 = vpop.f32.mrb[0].mxu0
        %2039 = vmatprep.mubr.bf16.mxu0 0
        %2040 = vmatmul.mubr.bf16.gmra.mrb[0].mxu0 %v1966
        %v2041 = vpop.f32.mrb[0].mxu0
        %v2042 = vadd.f32 0.0, %v2041
        %v2043 = vpop.f32.mrb[0].mxu0
        %v2044 = vpop.f32.mrb[0].mxu0
        %v2045 = vadd.f32 0.0, %v2044
        %v2046 = vpop.f32.mrb[0].mxu0
        %2047 = vmatprep.mubr.bf16.mxu0 0
        %2048 = vmatmul.mubr.bf16.gmra.mrb[0].mxu0 %v1969
        %v2049 = vpop.f32.mrb[0].mxu0
        %v2050 = vadd.f32 0.0, %v2049
        %v2051 = vpop.f32.mrb[0].mxu0
        %v2052 = vpop.f32.mrb[0].mxu0
        %v2053 = vadd.f32 0.0, %v2052
        %v2054 = vpop.f32.mrb[0].mxu0
        %2055 = vmatprep.mubr.bf16.mxu0 0
        %2056 = vmatmul.mubr.bf16.gmra.mrb[0].mxu0 %v1972
        %v2057 = vpop.f32.mrb[0].mxu0
        %v2058 = vadd.f32 0.0, %v2057
        %v2059 = vpop.f32.mrb[0].mxu0
        %v2060 = vpop.f32.mrb[0].mxu0
        %v2061 = vadd.f32 0.0, %v2060
        %v2062 = vpop.f32.mrb[0].mxu0
        %2063 = vmatprep.mubr.bf16.mxu0 0
        %2064 = vmatmul.mubr.bf16.gmra.mrb[0].mxu0 %v1975
        %v2065 = vpop.f32.mrb[0].mxu0
        %v2066 = vadd.f32 0.0, %v2065
        %v2067 = vpop.f32.mrb[0].mxu0
        %v2068 = vpop.f32.mrb[0].mxu0
        %v2069 = vadd.f32 0.0, %v2068
        %v2070 = vpop.f32.mrb[0].mxu0
        %2071 = vmatprep.mubr.bf16.mxu0 0
        %2072 = vmatmul.mubr.bf16.gmra.mrb[0].mxu0 %v1978
        %v2073 = vpop.f32.mrb[0].mxu0
        %v2074 = vadd.f32 0.0, %v2073
        %v2075 = vpop.f32.mrb[0].mxu0
        %v2076 = vpop.f32.mrb[0].mxu0
        %v2077 = vadd.f32 0.0, %v2076
        %v2078 = vpop.f32.mrb[0].mxu0
        %2079 = vdwg.mxu0
        %v2080 = vadd.f32 %v1827, %v2018
        %v2081 = vadd.f32 %v1828, %v2021
        %v2082 = vadd.f32 %v1829, %v2026
        %v2083 = vadd.f32 %v1830, %v2029
        %v2084 = vadd.f32 %v1831, %v2034
        %v2085 = vadd.f32 %v1832, %v2037
        %v2086 = vadd.f32 %v1833, %v2042
        %v2087 = vadd.f32 %v1834, %v2045
        %v2088 = vadd.f32 %v1835, %v2050
        %v2089 = vadd.f32 %v1836, %v2053
        %v2090 = vadd.f32 %v1837, %v2058
        %v2091 = vadd.f32 %v1838, %v2061
        %v2092 = vadd.f32 %v1839, %v2066
        %v2093 = vadd.f32 %v1840, %v2069
        %v2094 = vadd.f32 %v1841, %v2074
        %v2095 = vadd.f32 %v1842, %v2077
        %v2096 = vld [vmem:[%s1573] sm:$0x8]
        %v2097 = vld [vmem:[%s1573 + $0x8] sm:$0x7]
        %v2098 = vld [vmem:[%s1573 + $0xc] sm:$0x8]
        %v2099 = vld [vmem:[%s1573 + $0x14] sm:$0x7]
        %v2100 = vld [vmem:[%s1573 + $0x18] sm:$0x8]
        %v2101 = vld [vmem:[%s1573 + $0x20] sm:$0x7]
        %v2102 = vld [vmem:[%s1573 + $0x24] sm:$0x8]
        %v2103 = vld [vmem:[%s1573 + $0x2c] sm:$0x7]
        %v2104 = vld [vmem:[%s1573 + $0x30] sm:$0x8]
        %v2105 = vld [vmem:[%s1573 + $0x38] sm:$0x7]
        %v2106 = vld [vmem:[%s1573 + $0x3c] sm:$0x8]
        %v2107 = vld [vmem:[%s1573 + $0x44] sm:$0x7]
        %v2108 = vld [vmem:[%s1573 + $0x48] sm:$0x8]
        %v2109 = vld [vmem:[%s1573 + $0x50] sm:$0x7]
        %v2110 = vld [vmem:[%s1573 + $0x54] sm:$0x8]
        %v2111 = vld [vmem:[%s1573 + $0x5c] sm:$0x7]
        %v2128 = vrot.slane %v2096, 7
        %v2129 = vrot.slane %v2128, 4
        %v2130 = vrot.slane %v1575, 7
        %v2131 = vsel %vm1348, %v2129, %v2130
        %v2132 = vrot.slane %v2130, 4
        %v2133 = vrot.slane %v2097, 7
        %v2134 = vsel %vm1348, %v2132, %v2133
        %v2135 = vrot.slane %v2098, 7
        %v2136 = vrot.slane %v2135, 4
        %v2137 = vrot.slane %v1578, 7
        %v2138 = vsel %vm1348, %v2136, %v2137
        %v2139 = vrot.slane %v2137, 4
        %v2140 = vrot.slane %v2099, 7
        %v2141 = vsel %vm1348, %v2139, %v2140
        %v2142 = vrot.slane %v2100, 7
        %v2143 = vrot.slane %v2142, 4
        %v2144 = vrot.slane %v1581, 7
        %v2145 = vsel %vm1348, %v2143, %v2144
        %v2146 = vrot.slane %v2144, 4
        %v2147 = vrot.slane %v2101, 7
        %v2148 = vsel %vm1348, %v2146, %v2147
        %v2149 = vrot.slane %v2102, 7
        %v2150 = vrot.slane %v2149, 4
        %v2151 = vrot.slane %v1584, 7
        %v2152 = vsel %vm1348, %v2150, %v2151
        %v2153 = vrot.slane %v2151, 4
        %v2154 = vrot.slane %v2103, 7
        %v2155 = vsel %vm1348, %v2153, %v2154
        %v2156 = vrot.slane %v2104, 7
        %v2157 = vrot.slane %v2156, 4
        %v2158 = vrot.slane %v1587, 7
        %v2159 = vsel %vm1348, %v2157, %v2158
        %v2160 = vrot.slane %v2158, 4
        %v2161 = vrot.slane %v2105, 7
        %v2162 = vsel %vm1348, %v2160, %v2161
        %v2163 = vrot.slane %v2106, 7
        %v2164 = vrot.slane %v2163, 4
        %v2165 = vrot.slane %v1590, 7
        %v2166 = vsel %vm1348, %v2164, %v2165
        %v2167 = vrot.slane %v2165, 4
        %v2168 = vrot.slane %v2107, 7
        %v2169 = vsel %vm1348, %v2167, %v2168
        %v2170 = vrot.slane %v2108, 7
        %v2171 = vrot.slane %v2170, 4
        %v2172 = vrot.slane %v1593, 7
        %v2173 = vsel %vm1348, %v2171, %v2172
        %v2174 = vrot.slane %v2172, 4
        %v2175 = vrot.slane %v2109, 7
        %v2176 = vsel %vm1348, %v2174, %v2175
        %v2177 = vrot.slane %v2110, 7
        %v2178 = vrot.slane %v2177, 4
        %v2179 = vrot.slane %v1596, 7
        %v2180 = vsel %vm1348, %v2178, %v2179
        %v2181 = vrot.slane %v2179, 4
        %v2182 = vrot.slane %v2111, 7
        %v2183 = vsel %vm1348, %v2181, %v2182
        %v2184 = vld [vmem:[%s290 + $0x14] sm:$0xf]
        %v2185 = vunpack.c.l.b16 %v2131
        %v2186 = vunpack.c.l.b16 %v2134
        %v2187 = vunpack.c.l.b16 %v2138
        %v2188 = vunpack.c.l.b16 %v2141
        %v2189 = vunpack.c.l.b16 %v2145
        %v2190 = vunpack.c.l.b16 %v2148
        %v2191 = vunpack.c.l.b16 %v2152
        %v2192 = vunpack.c.l.b16 %v2155
        %v2193 = vunpack.c.l.b16 %v2159
        %v2194 = vunpack.c.l.b16 %v2162
        %v2195 = vunpack.c.l.b16 %v2166
        %v2196 = vunpack.c.l.b16 %v2169
        %v2197 = vunpack.c.l.b16 %v2173
        %v2198 = vunpack.c.l.b16 %v2176
        %v2199 = vunpack.c.l.b16 %v2180
        %v2200 = vunpack.c.l.b16 %v2183
        %v2201 = vpack.c.b16 %v2186, %v2185
        %v2202 = vpack.c.b16 %v2188, %v2187
        %v2203 = vpack.c.b16 %v2190, %v2189
        %v2204 = vpack.c.b16 %v2192, %v2191
        %v2205 = vpack.c.b16 %v2194, %v2193
        %v2206 = vpack.c.b16 %v2196, %v2195
        %v2207 = vpack.c.b16 %v2198, %v2197
        %v2208 = vpack.c.b16 %v2200, %v2199
        %v2210 = vsel %vm1040, %v2201, 0
        %v2213 = vsel %vm1040, %v2202, 0
        %v2216 = vsel %vm1040, %v2203, 0
        %v2219 = vsel %vm1040, %v2204, 0
        %v2222 = vsel %vm1040, %v2205, 0
        %v2225 = vsel %vm1040, %v2206, 0
        %v2228 = vsel %vm1040, %v2207, 0
        %v2231 = vsel %vm1040, %v2208, 0
        %v2234 = vsel %vm1065, %v2184, 0
        %2236 = vmatprep.subr.bf16.mxu0 0
        %2237 = vmatpush1.bf16.msra.mxu0 %v2234
        %2238 = vmatprep.subr.bf16.mxu0 0
        %2239 = vmatpush1.bf16.msra.mxu0 0
        %2240 = vmatprep.subr.bf16.mxu0 0
        %2241 = vmatpush1.bf16.msra.mxu0 0
        %2242 = vmatprep.subr.bf16.mxu0 0
        %2243 = vmatpush1.bf16.msra.mxu0 0
        %2244 = vmatprep.subr.bf16.mxu0 0
        %2245 = vmatpush1.bf16.msra.mxu0 0
        %2246 = vmatprep.subr.bf16.mxu0 0
        %2247 = vmatpush1.bf16.msra.mxu0 0
        %2248 = vmatprep.subr.bf16.mxu0 0
        %2249 = vmatpush1.bf16.msra.mxu0 0
        %2250 = vmatprep.subr.bf16.mxu0 0
        %2251 = vmatpush1.bf16.msra.mxu0 0
        %2252 = vmatprep.subr.bf16.mxu0 0
        %2253 = vmatpush1.bf16.msra.mxu0 0
        %2254 = vmatprep.subr.bf16.mxu0 0
        %2255 = vmatpush1.bf16.msra.mxu0 0
        %2256 = vmatprep.subr.bf16.mxu0 0
        %2257 = vmatpush1.bf16.msra.mxu0 0
        %2258 = vmatprep.subr.bf16.mxu0 0
        %2259 = vmatpush1.bf16.msra.mxu0 0
        %2260 = vmatprep.subr.bf16.mxu0 0
        %2261 = vmatpush1.bf16.msra.mxu0 0
        %2262 = vmatprep.subr.bf16.mxu0 0
        %2263 = vmatpush1.bf16.msra.mxu0 0
        %2264 = vmatprep.subr.bf16.mxu0 0
        %2265 = vmatpush1.bf16.msra.mxu0 0
        %2266 = vmatprep.subr.bf16.mxu0 0
        %2267 = vmatpush1.bf16.msra.mxu0 0
        %2268 = vmatprep.mubr.bf16.mxu0 0
        %2269 = vmatmul.mubr.bf16.gmra.mrb[0].mxu0 %v2210
        %v2270 = vpop.f32.mrb[0].mxu0
        %v2271 = vadd.f32 0.0, %v2270
        %v2272 = vpop.f32.mrb[0].mxu0
        %v2273 = vpop.f32.mrb[0].mxu0
        %v2274 = vadd.f32 0.0, %v2273
        %v2275 = vpop.f32.mrb[0].mxu0
        %2276 = vmatprep.mubr.bf16.mxu0 0
        %2277 = vmatmul.mubr.bf16.gmra.mrb[0].mxu0 %v2213
        %v2278 = vpop.f32.mrb[0].mxu0
        %v2279 = vadd.f32 0.0, %v2278
        %v2280 = vpop.f32.mrb[0].mxu0
        %v2281 = vpop.f32.mrb[0].mxu0
        %v2282 = vadd.f32 0.0, %v2281
        %v2283 = vpop.f32.mrb[0].mxu0
        %2284 = vmatprep.mubr.bf16.mxu0 0
        %2285 = vmatmul.mubr.bf16.gmra.mrb[0].mxu0 %v2216
        %v2286 = vpop.f32.mrb[0].mxu0
        %v2287 = vadd.f32 0.0, %v2286
        %v2288 = vpop.f32.mrb[0].mxu0
        %v2289 = vpop.f32.mrb[0].mxu0
        %v2290 = vadd.f32 0.0, %v2289
        %v2291 = vpop.f32.mrb[0].mxu0
        %2292 = vmatprep.mubr.bf16.mxu0 0
        %2293 = vmatmul.mubr.bf16.gmra.mrb[0].mxu0 %v2219
        %v2294 = vpop.f32.mrb[0].mxu0
        %v2295 = vadd.f32 0.0, %v2294
        %v2296 = vpop.f32.mrb[0].mxu0
        %v2297 = vpop.f32.mrb[0].mxu0
        %v2298 = vadd.f32 0.0, %v2297
        %v2299 = vpop.f32.mrb[0].mxu0
        %2300 = vmatprep.mubr.bf16.mxu0 0
        %2301 = vmatmul.mubr.bf16.gmra.mrb[0].mxu0 %v2222
        %v2302 = vpop.f32.mrb[0].mxu0
        %v2303 = vadd.f32 0.0, %v2302
        %v2304 = vpop.f32.mrb[0].mxu0
        %v2305 = vpop.f32.mrb[0].mxu0
        %v2306 = vadd.f32 0.0, %v2305
        %v2307 = vpop.f32.mrb[0].mxu0
        %2308 = vmatprep.mubr.bf16.mxu0 0
        %2309 = vmatmul.mubr.bf16.gmra.mrb[0].mxu0 %v2225
        %v2310 = vpop.f32.mrb[0].mxu0
        %v2311 = vadd.f32 0.0, %v2310
        %v2312 = vpop.f32.mrb[0].mxu0
        %v2313 = vpop.f32.mrb[0].mxu0
        %v2314 = vadd.f32 0.0, %v2313
        %v2315 = vpop.f32.mrb[0].mxu0
        %2316 = vmatprep.mubr.bf16.mxu0 0
        %2317 = vmatmul.mubr.bf16.gmra.mrb[0].mxu0 %v2228
        %v2318 = vpop.f32.mrb[0].mxu0
        %v2319 = vadd.f32 0.0, %v2318
        %v2320 = vpop.f32.mrb[0].mxu0
        %v2321 = vpop.f32.mrb[0].mxu0
        %v2322 = vadd.f32 0.0, %v2321
        %v2323 = vpop.f32.mrb[0].mxu0
        %2324 = vmatprep.mubr.bf16.mxu0 0
        %2325 = vmatmul.mubr.bf16.gmra.mrb[0].mxu0 %v2231
        %v2326 = vpop.f32.mrb[0].mxu0
        %v2327 = vadd.f32 0.0, %v2326
        %v2328 = vpop.f32.mrb[0].mxu0
        %v2329 = vpop.f32.mrb[0].mxu0
        %v2330 = vadd.f32 0.0, %v2329
        %v2331 = vpop.f32.mrb[0].mxu0
        %2332 = vdwg.mxu0
        %v2333 = vadd.f32 %v2080, %v2271
        %v2334 = vadd.f32 %v2081, %v2274
        %v2335 = vadd.f32 %v2082, %v2279
        %v2336 = vadd.f32 %v2083, %v2282
        %v2337 = vadd.f32 %v2084, %v2287
        %v2338 = vadd.f32 %v2085, %v2290
        %v2339 = vadd.f32 %v2086, %v2295
        %v2340 = vadd.f32 %v2087, %v2298
        %v2341 = vadd.f32 %v2088, %v2303
        %v2342 = vadd.f32 %v2089, %v2306
        %v2343 = vadd.f32 %v2090, %v2311
        %v2344 = vadd.f32 %v2091, %v2314
        %v2345 = vadd.f32 %v2092, %v2319
        %v2346 = vadd.f32 %v2093, %v2322
        %v2347 = vadd.f32 %v2094, %v2327
        %v2348 = vadd.f32 %v2095, %v2330
        %s2349 = sadd.s32 %s310, 6
        %s2350 = smul.u32 %s2349, 3
        %s2351 = smul.addr %s2350, 4
        %s2352 = scalar_lea.vmem %s285, %s2351
        %v2353 = vld [vmem:[%s2352] sm:$0xe]
        %v2354 = vld [vmem:[%s2352 + $0x4] sm:$0xf]
        %v2355 = vld [vmem:[%s2352 + $0x8] sm:$0x1]
        %v2356 = vld [vmem:[%s2352 + $0xc] sm:$0xe]
        %v2357 = vld [vmem:[%s2352 + $0x10] sm:$0xf]
        %v2358 = vld [vmem:[%s2352 + $0x14] sm:$0x1]
        %v2359 = vld [vmem:[%s2352 + $0x18] sm:$0xe]
        %v2360 = vld [vmem:[%s2352 + $0x1c] sm:$0xf]
        %v2361 = vld [vmem:[%s2352 + $0x20] sm:$0x1]
        %v2362 = vld [vmem:[%s2352 + $0x24] sm:$0xe]
        %v2363 = vld [vmem:[%s2352 + $0x28] sm:$0xf]
        %v2364 = vld [vmem:[%s2352 + $0x2c] sm:$0x1]
        %v2365 = vld [vmem:[%s2352 + $0x30] sm:$0xe]
        %v2366 = vld [vmem:[%s2352 + $0x34] sm:$0xf]
        %v2367 = vld [vmem:[%s2352 + $0x38] sm:$0x1]
        %v2368 = vld [vmem:[%s2352 + $0x3c] sm:$0xe]
        %v2369 = vld [vmem:[%s2352 + $0x40] sm:$0xf]
        %v2370 = vld [vmem:[%s2352 + $0x44] sm:$0x1]
        %v2371 = vld [vmem:[%s2352 + $0x48] sm:$0xe]
        %v2372 = vld [vmem:[%s2352 + $0x4c] sm:$0xf]
        %v2373 = vld [vmem:[%s2352 + $0x50] sm:$0x1]
        %v2374 = vld [vmem:[%s2352 + $0x54] sm:$0xe]
        %v2375 = vld [vmem:[%s2352 + $0x58] sm:$0xf]
        %v2376 = vld [vmem:[%s2352 + $0x5c] sm:$0x1]
        %v2401 = vrot.slane %v2353, 5
        %v2402 = vrot.slane %v2401, 4
        %v2403 = vrot.slane %v2354, 5
        %v2404 = vsel %vm866, %v2402, %v2403
        %v2405 = vrot.slane %v2403, 4
        %v2406 = vrot.slane %v2355, 5
        %v2407 = vsel %vm866, %v2405, %v2406
        %v2408 = vrot.slane %v2356, 5
        %v2409 = vrot.slane %v2408, 4
        %v2410 = vrot.slane %v2357, 5
        %v2411 = vsel %vm866, %v2409, %v2410
        %v2412 = vrot.slane %v2410, 4
        %v2413 = vrot.slane %v2358, 5
        %v2414 = vsel %vm866, %v2412, %v2413
        %v2415 = vrot.slane %v2359, 5
        %v2416 = vrot.slane %v2415, 4
        %v2417 = vrot.slane %v2360, 5
        %v2418 = vsel %vm866, %v2416, %v2417
        %v2419 = vrot.slane %v2417, 4
        %v2420 = vrot.slane %v2361, 5
        %v2421 = vsel %vm866, %v2419, %v2420
        %v2422 = vrot.slane %v2362, 5
        %v2423 = vrot.slane %v2422, 4
        %v2424 = vrot.slane %v2363, 5
        %v2425 = vsel %vm866, %v2423, %v2424
        %v2426 = vrot.slane %v2424, 4
        %v2427 = vrot.slane %v2364, 5
        %v2428 = vsel %vm866, %v2426, %v2427
        %v2429 = vrot.slane %v2365, 5
        %v2430 = vrot.slane %v2429, 4
        %v2431 = vrot.slane %v2366, 5
        %v2432 = vsel %vm866, %v2430, %v2431
        %v2433 = vrot.slane %v2431, 4
        %v2434 = vrot.slane %v2367, 5
        %v2435 = vsel %vm866, %v2433, %v2434
        %v2436 = vrot.slane %v2368, 5
        %v2437 = vrot.slane %v2436, 4
        %v2438 = vrot.slane %v2369, 5
        %v2439 = vsel %vm866, %v2437, %v2438
        %v2440 = vrot.slane %v2438, 4
        %v2441 = vrot.slane %v2370, 5
        %v2442 = vsel %vm866, %v2440, %v2441
        %v2443 = vrot.slane %v2371, 5
        %v2444 = vrot.slane %v2443, 4
        %v2445 = vrot.slane %v2372, 5
        %v2446 = vsel %vm866, %v2444, %v2445
        %v2447 = vrot.slane %v2445, 4
        %v2448 = vrot.slane %v2373, 5
        %v2449 = vsel %vm866, %v2447, %v2448
        %v2450 = vrot.slane %v2374, 5
        %v2451 = vrot.slane %v2450, 4
        %v2452 = vrot.slane %v2375, 5
        %v2453 = vsel %vm866, %v2451, %v2452
        %v2454 = vrot.slane %v2452, 4
        %v2455 = vrot.slane %v2376, 5
        %v2456 = vsel %vm866, %v2454, %v2455
        %v2457 = vld [vmem:[%s290 + $0x18] sm:$0xf]
        %v2458 = vunpack.c.l.b16 %v2404
        %v2459 = vunpack.c.l.b16 %v2407
        %v2460 = vunpack.c.l.b16 %v2411
        %v2461 = vunpack.c.l.b16 %v2414
        %v2462 = vunpack.c.l.b16 %v2418
        %v2463 = vunpack.c.l.b16 %v2421
        %v2464 = vunpack.c.l.b16 %v2425
        %v2465 = vunpack.c.l.b16 %v2428
        %v2466 = vunpack.c.l.b16 %v2432
        %v2467 = vunpack.c.l.b16 %v2435
        %v2468 = vunpack.c.l.b16 %v2439
        %v2469 = vunpack.c.l.b16 %v2442
        %v2470 = vunpack.c.l.b16 %v2446
        %v2471 = vunpack.c.l.b16 %v2449
        %v2472 = vunpack.c.l.b16 %v2453
        %v2473 = vunpack.c.l.b16 %v2456
        %v2474 = vpack.c.b16 %v2459, %v2458
        %v2475 = vpack.c.b16 %v2461, %v2460
        %v2476 = vpack.c.b16 %v2463, %v2462
        %v2477 = vpack.c.b16 %v2465, %v2464
        %v2478 = vpack.c.b16 %v2467, %v2466
        %v2479 = vpack.c.b16 %v2469, %v2468
        %v2480 = vpack.c.b16 %v2471, %v2470
        %v2481 = vpack.c.b16 %v2473, %v2472
        %v2483 = vsel %vm1040, %v2474, 0
        %v2486 = vsel %vm1040, %v2475, 0
        %v2489 = vsel %vm1040, %v2476, 0
        %v2492 = vsel %vm1040, %v2477, 0
        %v2495 = vsel %vm1040, %v2478, 0
        %v2498 = vsel %vm1040, %v2479, 0
        %v2501 = vsel %vm1040, %v2480, 0
        %v2504 = vsel %vm1040, %v2481, 0
        %v2507 = vsel %vm1065, %v2457, 0
        %2509 = vmatprep.subr.bf16.mxu0 0
        %2510 = vmatpush1.bf16.msra.mxu0 %v2507
        %2511 = vmatprep.subr.bf16.mxu0 0
        %2512 = vmatpush1.bf16.msra.mxu0 0
        %2513 = vmatprep.subr.bf16.mxu0 0
        %2514 = vmatpush1.bf16.msra.mxu0 0
        %2515 = vmatprep.subr.bf16.mxu0 0
        %2516 = vmatpush1.bf16.msra.mxu0 0
        %2517 = vmatprep.subr.bf16.mxu0 0
        %2518 = vmatpush1.bf16.msra.mxu0 0
        %2519 = vmatprep.subr.bf16.mxu0 0
        %2520 = vmatpush1.bf16.msra.mxu0 0
        %2521 = vmatprep.subr.bf16.mxu0 0
        %2522 = vmatpush1.bf16.msra.mxu0 0
        %2523 = vmatprep.subr.bf16.mxu0 0
        %2524 = vmatpush1.bf16.msra.mxu0 0
        %2525 = vmatprep.subr.bf16.mxu0 0
        %2526 = vmatpush1.bf16.msra.mxu0 0
        %2527 = vmatprep.subr.bf16.mxu0 0
        %2528 = vmatpush1.bf16.msra.mxu0 0
        %2529 = vmatprep.subr.bf16.mxu0 0
        %2530 = vmatpush1.bf16.msra.mxu0 0
        %2531 = vmatprep.subr.bf16.mxu0 0
        %2532 = vmatpush1.bf16.msra.mxu0 0
        %2533 = vmatprep.subr.bf16.mxu0 0
        %2534 = vmatpush1.bf16.msra.mxu0 0
        %2535 = vmatprep.subr.bf16.mxu0 0
        %2536 = vmatpush1.bf16.msra.mxu0 0
        %2537 = vmatprep.subr.bf16.mxu0 0
        %2538 = vmatpush1.bf16.msra.mxu0 0
        %2539 = vmatprep.subr.bf16.mxu0 0
        %2540 = vmatpush1.bf16.msra.mxu0 0
        %2541 = vmatprep.mubr.bf16.mxu0 0
        %2542 = vmatmul.mubr.bf16.gmra.mrb[0].mxu0 %v2483
        %v2543 = vpop.f32.mrb[0].mxu0
        %v2544 = vadd.f32 0.0, %v2543
        %v2545 = vpop.f32.mrb[0].mxu0
        %v2546 = vpop.f32.mrb[0].mxu0
        %v2547 = vadd.f32 0.0, %v2546
        %v2548 = vpop.f32.mrb[0].mxu0
        %2549 = vmatprep.mubr.bf16.mxu0 0
        %2550 = vmatmul.mubr.bf16.gmra.mrb[0].mxu0 %v2486
        %v2551 = vpop.f32.mrb[0].mxu0
        %v2552 = vadd.f32 0.0, %v2551
        %v2553 = vpop.f32.mrb[0].mxu0
        %v2554 = vpop.f32.mrb[0].mxu0
        %v2555 = vadd.f32 0.0, %v2554
        %v2556 = vpop.f32.mrb[0].mxu0
        %2557 = vmatprep.mubr.bf16.mxu0 0
        %2558 = vmatmul.mubr.bf16.gmra.mrb[0].mxu0 %v2489
        %v2559 = vpop.f32.mrb[0].mxu0
        %v2560 = vadd.f32 0.0, %v2559
        %v2561 = vpop.f32.mrb[0].mxu0
        %v2562 = vpop.f32.mrb[0].mxu0
        %v2563 = vadd.f32 0.0, %v2562
        %v2564 = vpop.f32.mrb[0].mxu0
        %2565 = vmatprep.mubr.bf16.mxu0 0
        %2566 = vmatmul.mubr.bf16.gmra.mrb[0].mxu0 %v2492
        %v2567 = vpop.f32.mrb[0].mxu0
        %v2568 = vadd.f32 0.0, %v2567
        %v2569 = vpop.f32.mrb[0].mxu0
        %v2570 = vpop.f32.mrb[0].mxu0
        %v2571 = vadd.f32 0.0, %v2570
        %v2572 = vpop.f32.mrb[0].mxu0
        %2573 = vmatprep.mubr.bf16.mxu0 0
        %2574 = vmatmul.mubr.bf16.gmra.mrb[0].mxu0 %v2495
        %v2575 = vpop.f32.mrb[0].mxu0
        %v2576 = vadd.f32 0.0, %v2575
        %v2577 = vpop.f32.mrb[0].mxu0
        %v2578 = vpop.f32.mrb[0].mxu0
        %v2579 = vadd.f32 0.0, %v2578
        %v2580 = vpop.f32.mrb[0].mxu0
        %2581 = vmatprep.mubr.bf16.mxu0 0
        %2582 = vmatmul.mubr.bf16.gmra.mrb[0].mxu0 %v2498
        %v2583 = vpop.f32.mrb[0].mxu0
        %v2584 = vadd.f32 0.0, %v2583
        %v2585 = vpop.f32.mrb[0].mxu0
        %v2586 = vpop.f32.mrb[0].mxu0
        %v2587 = vadd.f32 0.0, %v2586
        %v2588 = vpop.f32.mrb[0].mxu0
        %2589 = vmatprep.mubr.bf16.mxu0 0
        %2590 = vmatmul.mubr.bf16.gmra.mrb[0].mxu0 %v2501
        %v2591 = vpop.f32.mrb[0].mxu0
        %v2592 = vadd.f32 0.0, %v2591
        %v2593 = vpop.f32.mrb[0].mxu0
        %v2594 = vpop.f32.mrb[0].mxu0
        %v2595 = vadd.f32 0.0, %v2594
        %v2596 = vpop.f32.mrb[0].mxu0
        %2597 = vmatprep.mubr.bf16.mxu0 0
        %2598 = vmatmul.mubr.bf16.gmra.mrb[0].mxu0 %v2504
        %v2599 = vpop.f32.mrb[0].mxu0
        %v2600 = vadd.f32 0.0, %v2599
        %v2601 = vpop.f32.mrb[0].mxu0
        %v2602 = vpop.f32.mrb[0].mxu0
        %v2603 = vadd.f32 0.0, %v2602
        %v2604 = vpop.f32.mrb[0].mxu0
        %2605 = vdwg.mxu0
        %v2606 = vadd.f32 %v2333, %v2544
        %v2607 = vadd.f32 %v2334, %v2547
        %v2608 = vadd.f32 %v2335, %v2552
        %v2609 = vadd.f32 %v2336, %v2555
        %v2610 = vadd.f32 %v2337, %v2560
        %v2611 = vadd.f32 %v2338, %v2563
        %v2612 = vadd.f32 %v2339, %v2568
        %v2613 = vadd.f32 %v2340, %v2571
        %v2614 = vadd.f32 %v2341, %v2576
        %v2615 = vadd.f32 %v2342, %v2579
        %v2616 = vadd.f32 %v2343, %v2584
        %v2617 = vadd.f32 %v2344, %v2587
        %v2618 = vadd.f32 %v2345, %v2592
        %v2619 = vadd.f32 %v2346, %v2595
        %v2620 = vadd.f32 %v2347, %v2600
        %v2621 = vadd.f32 %v2348, %v2603
        %v2622 = vld [vmem:[%s2352] sm:$0xc]
        %v2623 = vld [vmem:[%s2352 + $0x8] sm:$0x3]
        %v2624 = vld [vmem:[%s2352 + $0xc] sm:$0xc]
        %v2625 = vld [vmem:[%s2352 + $0x14] sm:$0x3]
        %v2626 = vld [vmem:[%s2352 + $0x18] sm:$0xc]
        %v2627 = vld [vmem:[%s2352 + $0x20] sm:$0x3]
        %v2628 = vld [vmem:[%s2352 + $0x24] sm:$0xc]
        %v2629 = vld [vmem:[%s2352 + $0x2c] sm:$0x3]
        %v2630 = vld [vmem:[%s2352 + $0x30] sm:$0xc]
        %v2631 = vld [vmem:[%s2352 + $0x38] sm:$0x3]
        %v2632 = vld [vmem:[%s2352 + $0x3c] sm:$0xc]
        %v2633 = vld [vmem:[%s2352 + $0x44] sm:$0x3]
        %v2634 = vld [vmem:[%s2352 + $0x48] sm:$0xc]
        %v2635 = vld [vmem:[%s2352 + $0x50] sm:$0x3]
        %v2636 = vld [vmem:[%s2352 + $0x54] sm:$0xc]
        %v2637 = vld [vmem:[%s2352 + $0x5c] sm:$0x3]
        %v2654 = vrot.slane %v2622, 6
        %v2655 = vrot.slane %v2654, 4
        %v2656 = vrot.slane %v2354, 6
        %v2657 = vsel %vm958, %v2655, %v2656
        %v2658 = vrot.slane %v2656, 4
        %v2659 = vrot.slane %v2623, 6
        %v2660 = vsel %vm958, %v2658, %v2659
        %v2661 = vrot.slane %v2624, 6
        %v2662 = vrot.slane %v2661, 4
        %v2663 = vrot.slane %v2357, 6
        %v2664 = vsel %vm958, %v2662, %v2663
        %v2665 = vrot.slane %v2663, 4
        %v2666 = vrot.slane %v2625, 6
        %v2667 = vsel %vm958, %v2665, %v2666
        %v2668 = vrot.slane %v2626, 6
        %v2669 = vrot.slane %v2668, 4
        %v2670 = vrot.slane %v2360, 6
        %v2671 = vsel %vm958, %v2669, %v2670
        %v2672 = vrot.slane %v2670, 4
        %v2673 = vrot.slane %v2627, 6
        %v2674 = vsel %vm958, %v2672, %v2673
        %v2675 = vrot.slane %v2628, 6
        %v2676 = vrot.slane %v2675, 4
        %v2677 = vrot.slane %v2363, 6
        %v2678 = vsel %vm958, %v2676, %v2677
        %v2679 = vrot.slane %v2677, 4
        %v2680 = vrot.slane %v2629, 6
        %v2681 = vsel %vm958, %v2679, %v2680
        %v2682 = vrot.slane %v2630, 6
        %v2683 = vrot.slane %v2682, 4
        %v2684 = vrot.slane %v2366, 6
        %v2685 = vsel %vm958, %v2683, %v2684
        %v2686 = vrot.slane %v2684, 4
        %v2687 = vrot.slane %v2631, 6
        %v2688 = vsel %vm958, %v2686, %v2687
        %v2689 = vrot.slane %v2632, 6
        %v2690 = vrot.slane %v2689, 4
        %v2691 = vrot.slane %v2369, 6
        %v2692 = vsel %vm958, %v2690, %v2691
        %v2693 = vrot.slane %v2691, 4
        %v2694 = vrot.slane %v2633, 6
        %v2695 = vsel %vm958, %v2693, %v2694
        %v2696 = vrot.slane %v2634, 6
        %v2697 = vrot.slane %v2696, 4
        %v2698 = vrot.slane %v2372, 6
        %v2699 = vsel %vm958, %v2697, %v2698
        %v2700 = vrot.slane %v2698, 4
        %v2701 = vrot.slane %v2635, 6
        %v2702 = vsel %vm958, %v2700, %v2701
        %v2703 = vrot.slane %v2636, 6
        %v2704 = vrot.slane %v2703, 4
        %v2705 = vrot.slane %v2375, 6
        %v2706 = vsel %vm958, %v2704, %v2705
        %v2707 = vrot.slane %v2705, 4
        %v2708 = vrot.slane %v2637, 6
        %v2709 = vsel %vm958, %v2707, %v2708
        %v2710 = vld [vmem:[%s290 + $0x1c] sm:$0xf]
        %v2711 = vunpack.c.l.b16 %v2657
        %v2712 = vunpack.c.l.b16 %v2660
        %v2713 = vunpack.c.l.b16 %v2664
        %v2714 = vunpack.c.l.b16 %v2667
        %v2715 = vunpack.c.l.b16 %v2671
        %v2716 = vunpack.c.l.b16 %v2674
        %v2717 = vunpack.c.l.b16 %v2678
        %v2718 = vunpack.c.l.b16 %v2681
        %v2719 = vunpack.c.l.b16 %v2685
        %v2720 = vunpack.c.l.b16 %v2688
        %v2721 = vunpack.c.l.b16 %v2692
        %v2722 = vunpack.c.l.b16 %v2695
        %v2723 = vunpack.c.l.b16 %v2699
        %v2724 = vunpack.c.l.b16 %v2702
        %v2725 = vunpack.c.l.b16 %v2706
        %v2726 = vunpack.c.l.b16 %v2709
        %v2727 = vpack.c.b16 %v2712, %v2711
        %v2728 = vpack.c.b16 %v2714, %v2713
        %v2729 = vpack.c.b16 %v2716, %v2715
        %v2730 = vpack.c.b16 %v2718, %v2717
        %v2731 = vpack.c.b16 %v2720, %v2719
        %v2732 = vpack.c.b16 %v2722, %v2721
        %v2733 = vpack.c.b16 %v2724, %v2723
        %v2734 = vpack.c.b16 %v2726, %v2725
        %v2736 = vsel %vm1040, %v2727, 0
        %v2739 = vsel %vm1040, %v2728, 0
        %v2742 = vsel %vm1040, %v2729, 0
        %v2745 = vsel %vm1040, %v2730, 0
        %v2748 = vsel %vm1040, %v2731, 0
        %v2751 = vsel %vm1040, %v2732, 0
        %v2754 = vsel %vm1040, %v2733, 0
        %v2757 = vsel %vm1040, %v2734, 0
        %v2760 = vsel %vm1065, %v2710, 0
        %2762 = vmatprep.subr.bf16.mxu0 0
        %2763 = vmatpush1.bf16.msra.mxu0 %v2760
        %2764 = vmatprep.subr.bf16.mxu0 0
        %2765 = vmatpush1.bf16.msra.mxu0 0
        %2766 = vmatprep.subr.bf16.mxu0 0
        %2767 = vmatpush1.bf16.msra.mxu0 0
        %2768 = vmatprep.subr.bf16.mxu0 0
        %2769 = vmatpush1.bf16.msra.mxu0 0
        %2770 = vmatprep.subr.bf16.mxu0 0
        %2771 = vmatpush1.bf16.msra.mxu0 0
        %2772 = vmatprep.subr.bf16.mxu0 0
        %2773 = vmatpush1.bf16.msra.mxu0 0
        %2774 = vmatprep.subr.bf16.mxu0 0
        %2775 = vmatpush1.bf16.msra.mxu0 0
        %2776 = vmatprep.subr.bf16.mxu0 0
        %2777 = vmatpush1.bf16.msra.mxu0 0
        %2778 = vmatprep.subr.bf16.mxu0 0
        %2779 = vmatpush1.bf16.msra.mxu0 0
        %2780 = vmatprep.subr.bf16.mxu0 0
        %2781 = vmatpush1.bf16.msra.mxu0 0
        %2782 = vmatprep.subr.bf16.mxu0 0
        %2783 = vmatpush1.bf16.msra.mxu0 0
        %2784 = vmatprep.subr.bf16.mxu0 0
        %2785 = vmatpush1.bf16.msra.mxu0 0
        %2786 = vmatprep.subr.bf16.mxu0 0
        %2787 = vmatpush1.bf16.msra.mxu0 0
        %2788 = vmatprep.subr.bf16.mxu0 0
        %2789 = vmatpush1.bf16.msra.mxu0 0
        %2790 = vmatprep.subr.bf16.mxu0 0
        %2791 = vmatpush1.bf16.msra.mxu0 0
        %2792 = vmatprep.subr.bf16.mxu0 0
        %2793 = vmatpush1.bf16.msra.mxu0 0
        %2794 = vmatprep.mubr.bf16.mxu0 0
        %2795 = vmatmul.mubr.bf16.gmra.mrb[0].mxu0 %v2736
        %v2796 = vpop.f32.mrb[0].mxu0
        %v2797 = vadd.f32 0.0, %v2796
        %v2798 = vpop.f32.mrb[0].mxu0
        %v2799 = vpop.f32.mrb[0].mxu0
        %v2800 = vadd.f32 0.0, %v2799
        %v2801 = vpop.f32.mrb[0].mxu0
        %2802 = vmatprep.mubr.bf16.mxu0 0
        %2803 = vmatmul.mubr.bf16.gmra.mrb[0].mxu0 %v2739
        %v2804 = vpop.f32.mrb[0].mxu0
        %v2805 = vadd.f32 0.0, %v2804
        %v2806 = vpop.f32.mrb[0].mxu0
        %v2807 = vpop.f32.mrb[0].mxu0
        %v2808 = vadd.f32 0.0, %v2807
        %v2809 = vpop.f32.mrb[0].mxu0
        %2810 = vmatprep.mubr.bf16.mxu0 0
        %2811 = vmatmul.mubr.bf16.gmra.mrb[0].mxu0 %v2742
        %v2812 = vpop.f32.mrb[0].mxu0
        %v2813 = vadd.f32 0.0, %v2812
        %v2814 = vpop.f32.mrb[0].mxu0
        %v2815 = vpop.f32.mrb[0].mxu0
        %v2816 = vadd.f32 0.0, %v2815
        %v2817 = vpop.f32.mrb[0].mxu0
        %2818 = vmatprep.mubr.bf16.mxu0 0
        %2819 = vmatmul.mubr.bf16.gmra.mrb[0].mxu0 %v2745
        %v2820 = vpop.f32.mrb[0].mxu0
        %v2821 = vadd.f32 0.0, %v2820
        %v2822 = vpop.f32.mrb[0].mxu0
        %v2823 = vpop.f32.mrb[0].mxu0
        %v2824 = vadd.f32 0.0, %v2823
        %v2825 = vpop.f32.mrb[0].mxu0
        %2826 = vmatprep.mubr.bf16.mxu0 0
        %2827 = vmatmul.mubr.bf16.gmra.mrb[0].mxu0 %v2748
        %v2828 = vpop.f32.mrb[0].mxu0
        %v2829 = vadd.f32 0.0, %v2828
        %v2830 = vpop.f32.mrb[0].mxu0
        %v2831 = vpop.f32.mrb[0].mxu0
        %v2832 = vadd.f32 0.0, %v2831
        %v2833 = vpop.f32.mrb[0].mxu0
        %2834 = vmatprep.mubr.bf16.mxu0 0
        %2835 = vmatmul.mubr.bf16.gmra.mrb[0].mxu0 %v2751
        %v2836 = vpop.f32.mrb[0].mxu0
        %v2837 = vadd.f32 0.0, %v2836
        %v2838 = vpop.f32.mrb[0].mxu0
        %v2839 = vpop.f32.mrb[0].mxu0
        %v2840 = vadd.f32 0.0, %v2839
        %v2841 = vpop.f32.mrb[0].mxu0
        %2842 = vmatprep.mubr.bf16.mxu0 0
        %2843 = vmatmul.mubr.bf16.gmra.mrb[0].mxu0 %v2754
        %v2844 = vpop.f32.mrb[0].mxu0
        %v2845 = vadd.f32 0.0, %v2844
        %v2846 = vpop.f32.mrb[0].mxu0
        %v2847 = vpop.f32.mrb[0].mxu0
        %v2848 = vadd.f32 0.0, %v2847
        %v2849 = vpop.f32.mrb[0].mxu0
        %2850 = vmatprep.mubr.bf16.mxu0 0
        %2851 = vmatmul.mubr.bf16.gmra.mrb[0].mxu0 %v2757
        %v2852 = vpop.f32.mrb[0].mxu0
        %v2853 = vadd.f32 0.0, %v2852
        %v2854 = vpop.f32.mrb[0].mxu0
        %v2855 = vpop.f32.mrb[0].mxu0
        %v2856 = vadd.f32 0.0, %v2855
        %v2857 = vpop.f32.mrb[0].mxu0
        %2858 = vdwg.mxu0
        %v2859 = vadd.f32 %v2606, %v2797
        %v2860 = vadd.f32 %v2607, %v2800
        %v2861 = vadd.f32 %v2608, %v2805
        %v2862 = vadd.f32 %v2609, %v2808
        %v2863 = vadd.f32 %v2610, %v2813
        %v2864 = vadd.f32 %v2611, %v2816
        %v2865 = vadd.f32 %v2612, %v2821
        %v2866 = vadd.f32 %v2613, %v2824
        %v2867 = vadd.f32 %v2614, %v2829
        %v2868 = vadd.f32 %v2615, %v2832
        %v2869 = vadd.f32 %v2616, %v2837
        %v2870 = vadd.f32 %v2617, %v2840
        %v2871 = vadd.f32 %v2618, %v2845
        %v2872 = vadd.f32 %v2619, %v2848
        %v2873 = vadd.f32 %v2620, %v2853
        %v2874 = vadd.f32 %v2621, %v2856
        %v2875 = vld [vmem:[%s2352] sm:$0x8]
        %v2876 = vld [vmem:[%s2352 + $0x8] sm:$0x7]
        %v2877 = vld [vmem:[%s2352 + $0xc] sm:$0x8]
        %v2878 = vld [vmem:[%s2352 + $0x14] sm:$0x7]
        %v2879 = vld [vmem:[%s2352 + $0x18] sm:$0x8]
        %v2880 = vld [vmem:[%s2352 + $0x20] sm:$0x7]
        %v2881 = vld [vmem:[%s2352 + $0x24] sm:$0x8]
        %v2882 = vld [vmem:[%s2352 + $0x2c] sm:$0x7]
        %v2883 = vld [vmem:[%s2352 + $0x30] sm:$0x8]
        %v2884 = vld [vmem:[%s2352 + $0x38] sm:$0x7]
        %v2885 = vld [vmem:[%s2352 + $0x3c] sm:$0x8]
        %v2886 = vld [vmem:[%s2352 + $0x44] sm:$0x7]
        %v2887 = vld [vmem:[%s2352 + $0x48] sm:$0x8]
        %v2888 = vld [vmem:[%s2352 + $0x50] sm:$0x7]
        %v2889 = vld [vmem:[%s2352 + $0x54] sm:$0x8]
        %v2890 = vld [vmem:[%s2352 + $0x5c] sm:$0x7]
        %v2907 = vrot.slane %v2875, 7
        %v2908 = vrot.slane %v2907, 4
        %v2909 = vrot.slane %v2354, 7
        %v2910 = vsel %vm1348, %v2908, %v2909
        %v2911 = vrot.slane %v2909, 4
        %v2912 = vrot.slane %v2876, 7
        %v2913 = vsel %vm1348, %v2911, %v2912
        %v2914 = vrot.slane %v2877, 7
        %v2915 = vrot.slane %v2914, 4
        %v2916 = vrot.slane %v2357, 7
        %v2917 = vsel %vm1348, %v2915, %v2916
        %v2918 = vrot.slane %v2916, 4
        %v2919 = vrot.slane %v2878, 7
        %v2920 = vsel %vm1348, %v2918, %v2919
        %v2921 = vrot.slane %v2879, 7
        %v2922 = vrot.slane %v2921, 4
        %v2923 = vrot.slane %v2360, 7
        %v2924 = vsel %vm1348, %v2922, %v2923
        %v2925 = vrot.slane %v2923, 4
        %v2926 = vrot.slane %v2880, 7
        %v2927 = vsel %vm1348, %v2925, %v2926
        %v2928 = vrot.slane %v2881, 7
        %v2929 = vrot.slane %v2928, 4
        %v2930 = vrot.slane %v2363, 7
        %v2931 = vsel %vm1348, %v2929, %v2930
        %v2932 = vrot.slane %v2930, 4
        %v2933 = vrot.slane %v2882, 7
        %v2934 = vsel %vm1348, %v2932, %v2933
        %v2935 = vrot.slane %v2883, 7
        %v2936 = vrot.slane %v2935, 4
        %v2937 = vrot.slane %v2366, 7
        %v2938 = vsel %vm1348, %v2936, %v2937
        %v2939 = vrot.slane %v2937, 4
        %v2940 = vrot.slane %v2884, 7
        %v2941 = vsel %vm1348, %v2939, %v2940
        %v2942 = vrot.slane %v2885, 7
        %v2943 = vrot.slane %v2942, 4
        %v2944 = vrot.slane %v2369, 7
        %v2945 = vsel %vm1348, %v2943, %v2944
        %v2946 = vrot.slane %v2944, 4
        %v2947 = vrot.slane %v2886, 7
        %v2948 = vsel %vm1348, %v2946, %v2947
        %v2949 = vrot.slane %v2887, 7
        %v2950 = vrot.slane %v2949, 4
        %v2951 = vrot.slane %v2372, 7
        %v2952 = vsel %vm1348, %v2950, %v2951
        %v2953 = vrot.slane %v2951, 4
        %v2954 = vrot.slane %v2888, 7
        %v2955 = vsel %vm1348, %v2953, %v2954
        %v2956 = vrot.slane %v2889, 7
        %v2957 = vrot.slane %v2956, 4
        %v2958 = vrot.slane %v2375, 7
        %v2959 = vsel %vm1348, %v2957, %v2958
        %v2960 = vrot.slane %v2958, 4
        %v2961 = vrot.slane %v2890, 7
        %v2962 = vsel %vm1348, %v2960, %v2961
        %v2963 = vld [vmem:[%s290 + $0x20] sm:$0xf]
        %v2964 = vunpack.c.l.b16 %v2910
        %v2965 = vunpack.c.l.b16 %v2913
        %v2966 = vunpack.c.l.b16 %v2917
        %v2967 = vunpack.c.l.b16 %v2920
        %v2968 = vunpack.c.l.b16 %v2924
        %v2969 = vunpack.c.l.b16 %v2927
        %v2970 = vunpack.c.l.b16 %v2931
        %v2971 = vunpack.c.l.b16 %v2934
        %v2972 = vunpack.c.l.b16 %v2938
        %v2973 = vunpack.c.l.b16 %v2941
        %v2974 = vunpack.c.l.b16 %v2945
        %v2975 = vunpack.c.l.b16 %v2948
        %v2976 = vunpack.c.l.b16 %v2952
        %v2977 = vunpack.c.l.b16 %v2955
        %v2978 = vunpack.c.l.b16 %v2959
        %v2979 = vunpack.c.l.b16 %v2962
        %v2980 = vpack.c.b16 %v2965, %v2964
        %v2981 = vpack.c.b16 %v2967, %v2966
        %v2982 = vpack.c.b16 %v2969, %v2968
        %v2983 = vpack.c.b16 %v2971, %v2970
        %v2984 = vpack.c.b16 %v2973, %v2972
        %v2985 = vpack.c.b16 %v2975, %v2974
        %v2986 = vpack.c.b16 %v2977, %v2976
        %v2987 = vpack.c.b16 %v2979, %v2978
        %v2989 = vsel %vm1040, %v2980, 0
        %v2992 = vsel %vm1040, %v2981, 0
        %v2995 = vsel %vm1040, %v2982, 0
        %v2998 = vsel %vm1040, %v2983, 0
        %v3001 = vsel %vm1040, %v2984, 0
        %v3004 = vsel %vm1040, %v2985, 0
        %v3007 = vsel %vm1040, %v2986, 0
        %v3010 = vsel %vm1040, %v2987, 0
        %v3013 = vsel %vm1065, %v2963, 0
        %3015 = vmatprep.subr.bf16.mxu0 0
        %3016 = vmatpush1.bf16.msra.mxu0 %v3013
        %3017 = vmatprep.subr.bf16.mxu0 0
        %3018 = vmatpush1.bf16.msra.mxu0 0
        %3019 = vmatprep.subr.bf16.mxu0 0
        %3020 = vmatpush1.bf16.msra.mxu0 0
        %3021 = vmatprep.subr.bf16.mxu0 0
        %3022 = vmatpush1.bf16.msra.mxu0 0
        %3023 = vmatprep.subr.bf16.mxu0 0
        %3024 = vmatpush1.bf16.msra.mxu0 0
        %3025 = vmatprep.subr.bf16.mxu0 0
        %3026 = vmatpush1.bf16.msra.mxu0 0
        %3027 = vmatprep.subr.bf16.mxu0 0
        %3028 = vmatpush1.bf16.msra.mxu0 0
        %3029 = vmatprep.subr.bf16.mxu0 0
        %3030 = vmatpush1.bf16.msra.mxu0 0
        %3031 = vmatprep.subr.bf16.mxu0 0
        %3032 = vmatpush1.bf16.msra.mxu0 0
        %3033 = vmatprep.subr.bf16.mxu0 0
        %3034 = vmatpush1.bf16.msra.mxu0 0
        %3035 = vmatprep.subr.bf16.mxu0 0
        %3036 = vmatpush1.bf16.msra.mxu0 0
        %3037 = vmatprep.subr.bf16.mxu0 0
        %3038 = vmatpush1.bf16.msra.mxu0 0
        %3039 = vmatprep.subr.bf16.mxu0 0
        %3040 = vmatpush1.bf16.msra.mxu0 0
        %3041 = vmatprep.subr.bf16.mxu0 0
        %3042 = vmatpush1.bf16.msra.mxu0 0
        %3043 = vmatprep.subr.bf16.mxu0 0
        %3044 = vmatpush1.bf16.msra.mxu0 0
        %3045 = vmatprep.subr.bf16.mxu0 0
        %3046 = vmatpush1.bf16.msra.mxu0 0
        %3047 = vmatprep.mubr.bf16.mxu0 0
        %3048 = vmatmul.mubr.bf16.gmra.mrb[0].mxu0 %v2989
        %v3049 = vpop.f32.mrb[0].mxu0
        %v3050 = vadd.f32 0.0, %v3049
        %v3051 = vpop.f32.mrb[0].mxu0
        %v3052 = vpop.f32.mrb[0].mxu0
        %v3053 = vadd.f32 0.0, %v3052
        %v3054 = vpop.f32.mrb[0].mxu0
        %3055 = vmatprep.mubr.bf16.mxu0 0
        %3056 = vmatmul.mubr.bf16.gmra.mrb[0].mxu0 %v2992
        %v3057 = vpop.f32.mrb[0].mxu0
        %v3058 = vadd.f32 0.0, %v3057
        %v3059 = vpop.f32.mrb[0].mxu0
        %v3060 = vpop.f32.mrb[0].mxu0
        %v3061 = vadd.f32 0.0, %v3060
        %v3062 = vpop.f32.mrb[0].mxu0
        %3063 = vmatprep.mubr.bf16.mxu0 0
        %3064 = vmatmul.mubr.bf16.gmra.mrb[0].mxu0 %v2995
        %v3065 = vpop.f32.mrb[0].mxu0
        %v3066 = vadd.f32 0.0, %v3065
        %v3067 = vpop.f32.mrb[0].mxu0
        %v3068 = vpop.f32.mrb[0].mxu0
        %v3069 = vadd.f32 0.0, %v3068
        %v3070 = vpop.f32.mrb[0].mxu0
        %3071 = vmatprep.mubr.bf16.mxu0 0
        %3072 = vmatmul.mubr.bf16.gmra.mrb[0].mxu0 %v2998
        %v3073 = vpop.f32.mrb[0].mxu0
        %v3074 = vadd.f32 0.0, %v3073
        %v3075 = vpop.f32.mrb[0].mxu0
        %v3076 = vpop.f32.mrb[0].mxu0
        %v3077 = vadd.f32 0.0, %v3076
        %v3078 = vpop.f32.mrb[0].mxu0
        %3079 = vmatprep.mubr.bf16.mxu0 0
        %3080 = vmatmul.mubr.bf16.gmra.mrb[0].mxu0 %v3001
        %v3081 = vpop.f32.mrb[0].mxu0
        %v3082 = vadd.f32 0.0, %v3081
        %v3083 = vpop.f32.mrb[0].mxu0
        %v3084 = vpop.f32.mrb[0].mxu0
        %v3085 = vadd.f32 0.0, %v3084
        %v3086 = vpop.f32.mrb[0].mxu0
        %3087 = vmatprep.mubr.bf16.mxu0 0
        %3088 = vmatmul.mubr.bf16.gmra.mrb[0].mxu0 %v3004
        %v3089 = vpop.f32.mrb[0].mxu0
        %v3090 = vadd.f32 0.0, %v3089
        %v3091 = vpop.f32.mrb[0].mxu0
        %v3092 = vpop.f32.mrb[0].mxu0
        %v3093 = vadd.f32 0.0, %v3092
        %v3094 = vpop.f32.mrb[0].mxu0
        %3095 = vmatprep.mubr.bf16.mxu0 0
        %3096 = vmatmul.mubr.bf16.gmra.mrb[0].mxu0 %v3007
        %v3097 = vpop.f32.mrb[0].mxu0
        %v3098 = vadd.f32 0.0, %v3097
        %v3099 = vpop.f32.mrb[0].mxu0
        %v3100 = vpop.f32.mrb[0].mxu0
        %v3101 = vadd.f32 0.0, %v3100
        %v3102 = vpop.f32.mrb[0].mxu0
        %3103 = vmatprep.mubr.bf16.mxu0 0
        %3104 = vmatmul.mubr.bf16.gmra.mrb[0].mxu0 %v3010
        %v3105 = vpop.f32.mrb[0].mxu0
        %v3106 = vadd.f32 0.0, %v3105
        %v3107 = vpop.f32.mrb[0].mxu0
        %v3108 = vpop.f32.mrb[0].mxu0
        %v3109 = vadd.f32 0.0, %v3108
        %v3110 = vpop.f32.mrb[0].mxu0
        %3111 = vdwg.mxu0
        %v3112 = vadd.f32 %v2859, %v3050
        %v3113 = vadd.f32 %v2860, %v3053
        %v3114 = vadd.f32 %v2861, %v3058
        %v3115 = vadd.f32 %v2862, %v3061
        %v3116 = vadd.f32 %v2863, %v3066
        %v3117 = vadd.f32 %v2864, %v3069
        %v3118 = vadd.f32 %v2865, %v3074
        %v3119 = vadd.f32 %v2866, %v3077
        %v3120 = vadd.f32 %v2867, %v3082
        %v3121 = vadd.f32 %v2868, %v3085
        %v3122 = vadd.f32 %v2869, %v3090
        %v3123 = vadd.f32 %v2870, %v3093
        %v3124 = vadd.f32 %v2871, %v3098
        %v3125 = vadd.f32 %v2872, %v3101
        %v3126 = vadd.f32 %v2873, %v3106
        %v3127 = vadd.f32 %v2874, %v3109
        %v3128 = vld [vmem:[%s3 + $0x1] sm:$0x1]
        %v3129 = vlaneseq
        %v3130 = vshrl.u32 %v3129, 7
        %v3131 = vsub.s32 0, %v3130
        %v3132 = vrot.slane %v3128, %v3131
        %v3133 = vadd.f32 %v3112, %v3132
        %v3134 = vadd.f32 %v3113, %v3132
        %v3135 = vadd.f32 %v3114, %v3132
        %v3136 = vadd.f32 %v3115, %v3132
        %v3137 = vadd.f32 %v3116, %v3132
        %v3138 = vadd.f32 %v3117, %v3132
        %v3139 = vadd.f32 %v3118, %v3132
        %v3140 = vadd.f32 %v3119, %v3132
        %v3141 = vadd.f32 %v3120, %v3132
        %v3142 = vadd.f32 %v3121, %v3132
        %v3143 = vadd.f32 %v3122, %v3132
        %v3144 = vadd.f32 %v3123, %v3132
        %v3145 = vadd.f32 %v3124, %v3132
        %v3146 = vadd.f32 %v3125, %v3132
        %v3147 = vadd.f32 %v3126, %v3132
        %v3148 = vadd.f32 %v3127, %v3132
        %v3149 = vmax.f32 %v3133, 0.0
        %v3150 = vmax.f32 %v3134, 0.0
        %v3151 = vmax.f32 %v3135, 0.0
        %v3152 = vmax.f32 %v3136, 0.0
        %v3153 = vmax.f32 %v3137, 0.0
        %v3154 = vmax.f32 %v3138, 0.0
        %v3155 = vmax.f32 %v3139, 0.0
        %v3156 = vmax.f32 %v3140, 0.0
        %v3157 = vmax.f32 %v3141, 0.0
        %v3158 = vmax.f32 %v3142, 0.0
        %v3159 = vmax.f32 %v3143, 0.0
        %v3160 = vmax.f32 %v3144, 0.0
        %v3161 = vmax.f32 %v3145, 0.0
        %v3162 = vmax.f32 %v3146, 0.0
        %v3163 = vmax.f32 %v3147, 0.0
        %v3164 = vmax.f32 %v3148, 0.0
        %v3165 = vld [vmem:[#allocation2] sm:$0xff]
        %v3166 = vld [vmem:[#allocation2 + $0x8] sm:$0xff]
        %v3167 = vld [vmem:[#allocation2 + $0x10] sm:$0xff]
        %v3168 = vld [vmem:[#allocation2 + $0x18] sm:$0xff]
        %v3169 = vld [vmem:[#allocation2 + $0x20] sm:$0xff]
        %v3170 = vld [vmem:[#allocation2 + $0x28] sm:$0xff]
        %v3171 = vld [vmem:[#allocation2 + $0x30] sm:$0xff]
        %v3172 = vld [vmem:[#allocation2 + $0x38] sm:$0xff]
        %v3173 = vld [vmem:[#allocation2 + $0x40] sm:$0xff]
        %v3174 = vld [vmem:[#allocation2 + $0x48] sm:$0xff]
        %v3175 = vld [vmem:[#allocation2 + $0x50] sm:$0xff]
        %v3176 = vld [vmem:[#allocation2 + $0x58] sm:$0xff]
        %v3177 = vld [vmem:[#allocation2 + $0x60] sm:$0xff]
        %v3178 = vld [vmem:[#allocation2 + $0x68] sm:$0xff]
        %v3179 = vld [vmem:[#allocation2 + $0x70] sm:$0xff]
        %v3180 = vld [vmem:[#allocation2 + $0x78] sm:$0xff]
        %v3181 = vpack.c.bf16 %v3150, %v3149
        %v3182 = vpack.c.bf16 %v3152, %v3151
        %v3183 = vpack.c.bf16 %v3154, %v3153
        %v3184 = vpack.c.bf16 %v3156, %v3155
        %v3185 = vpack.c.bf16 %v3158, %v3157
        %v3186 = vpack.c.bf16 %v3160, %v3159
        %v3187 = vpack.c.bf16 %v3162, %v3161
        %v3188 = vpack.c.bf16 %v3164, %v3163
        %v3189 = vld [vmem:[%s295] sm:$0xf]
        %v3190 = vld [vmem:[%s295 + $0x4] sm:$0xf]
        %v3191 = vld [vmem:[%s295 + $0x8] sm:$0xf]
        %v3192 = vld [vmem:[%s295 + $0xc] sm:$0xf]
        %v3197 = vunpack.c.l.b16 %v3189
        %v3198 = vunpack.c.l.b16 %v3190
        %v3199 = vunpack.c.l.b16 %v3191
        %v3200 = vunpack.c.l.b16 %v3192
        %v3201 = vpack.c.b16 %v3198, %v3197
        %v3202 = vpack.c.b16 %v3200, %v3199
        %vm3205 = vcmask 261120
        %v3207 = vsel %vm3205, %v3181, 0
        %v3210 = vsel %vm3205, %v3182, 0
        %v3213 = vsel %vm3205, %v3183, 0
        %v3216 = vsel %vm3205, %v3184, 0
        %v3219 = vsel %vm3205, %v3185, 0
        %v3222 = vsel %vm3205, %v3186, 0
        %v3225 = vsel %vm3205, %v3187, 0
        %v3228 = vsel %vm3205, %v3188, 0
        %3230 = vmatprep.subr.bf16.mxu0 0
        %3231 = vmatpush1.bf16.msra.mxu0 %v3201
        %3232 = vmatprep.subr.bf16.mxu0 0
        %3233 = vmatpush1.bf16.msra.mxu0 %v3202
        %3234 = vmatprep.subr.bf16.mxu0 0
        %3235 = vmatpush1.bf16.msra.mxu0 0
        %3236 = vmatprep.subr.bf16.mxu0 0
        %3237 = vmatpush1.bf16.msra.mxu0 0
        %3238 = vmatprep.subr.bf16.mxu0 0
        %3239 = vmatpush1.bf16.msra.mxu0 0
        %3240 = vmatprep.subr.bf16.mxu0 0
        %3241 = vmatpush1.bf16.msra.mxu0 0
        %3242 = vmatprep.subr.bf16.mxu0 0
        %3243 = vmatpush1.bf16.msra.mxu0 0
        %3244 = vmatprep.subr.bf16.mxu0 0
        %3245 = vmatpush1.bf16.msra.mxu0 0
        %3246 = vmatprep.subr.bf16.mxu0 0
        %3247 = vmatpush1.bf16.msra.mxu0 0
        %3248 = vmatprep.subr.bf16.mxu0 0
        %3249 = vmatpush1.bf16.msra.mxu0 0
        %3250 = vmatprep.subr.bf16.mxu0 0
        %3251 = vmatpush1.bf16.msra.mxu0 0
        %3252 = vmatprep.subr.bf16.mxu0 0
        %3253 = vmatpush1.bf16.msra.mxu0 0
        %3254 = vmatprep.subr.bf16.mxu0 0
        %3255 = vmatpush1.bf16.msra.mxu0 0
        %3256 = vmatprep.subr.bf16.mxu0 0
        %3257 = vmatpush1.bf16.msra.mxu0 0
        %3258 = vmatprep.subr.bf16.mxu0 0
        %3259 = vmatpush1.bf16.msra.mxu0 0
        %3260 = vmatprep.subr.bf16.mxu0 0
        %3261 = vmatpush1.bf16.msra.mxu0 0
        %3262 = vmatprep.mubr.bf16.mxu0 0
        %3263 = vmatmul.mubr.bf16.gmra.mrb[0].mxu0 %v3207
        %v3264 = vpop.f32.mrb[0].mxu0
        %v3265 = vadd.f32 0.0, %v3264
        %v3266 = vpop.f32.mrb[0].mxu0
        %v3267 = vpop.f32.mrb[0].mxu0
        %v3268 = vadd.f32 0.0, %v3267
        %v3269 = vpop.f32.mrb[0].mxu0
        %3270 = vmatprep.mubr.bf16.mxu0 0
        %3271 = vmatmul.mubr.bf16.gmra.mrb[0].mxu0 %v3210
        %v3272 = vpop.f32.mrb[0].mxu0
        %v3273 = vadd.f32 0.0, %v3272
        %v3274 = vpop.f32.mrb[0].mxu0
        %v3275 = vpop.f32.mrb[0].mxu0
        %v3276 = vadd.f32 0.0, %v3275
        %v3277 = vpop.f32.mrb[0].mxu0
        %3278 = vmatprep.mubr.bf16.mxu0 0
        %3279 = vmatmul.mubr.bf16.gmra.mrb[0].mxu0 %v3213
        %v3280 = vpop.f32.mrb[0].mxu0
        %v3281 = vadd.f32 0.0, %v3280
        %v3282 = vpop.f32.mrb[0].mxu0
        %v3283 = vpop.f32.mrb[0].mxu0
        %v3284 = vadd.f32 0.0, %v3283
        %v3285 = vpop.f32.mrb[0].mxu0
        %3286 = vmatprep.mubr.bf16.mxu0 0
        %3287 = vmatmul.mubr.bf16.gmra.mrb[0].mxu0 %v3216
        %v3288 = vpop.f32.mrb[0].mxu0
        %v3289 = vadd.f32 0.0, %v3288
        %v3290 = vpop.f32.mrb[0].mxu0
        %v3291 = vpop.f32.mrb[0].mxu0
        %v3292 = vadd.f32 0.0, %v3291
        %v3293 = vpop.f32.mrb[0].mxu0
        %3294 = vmatprep.mubr.bf16.mxu0 0
        %3295 = vmatmul.mubr.bf16.gmra.mrb[0].mxu0 %v3219
        %v3296 = vpop.f32.mrb[0].mxu0
        %v3297 = vadd.f32 0.0, %v3296
        %v3298 = vpop.f32.mrb[0].mxu0
        %v3299 = vpop.f32.mrb[0].mxu0
        %v3300 = vadd.f32 0.0, %v3299
        %v3301 = vpop.f32.mrb[0].mxu0
        %3302 = vmatprep.mubr.bf16.mxu0 0
        %3303 = vmatmul.mubr.bf16.gmra.mrb[0].mxu0 %v3222
        %v3304 = vpop.f32.mrb[0].mxu0
        %v3305 = vadd.f32 0.0, %v3304
        %v3306 = vpop.f32.mrb[0].mxu0
        %v3307 = vpop.f32.mrb[0].mxu0
        %v3308 = vadd.f32 0.0, %v3307
        %v3309 = vpop.f32.mrb[0].mxu0
        %3310 = vmatprep.mubr.bf16.mxu0 0
        %3311 = vmatmul.mubr.bf16.gmra.mrb[0].mxu0 %v3225
        %v3312 = vpop.f32.mrb[0].mxu0
        %v3313 = vadd.f32 0.0, %v3312
        %v3314 = vpop.f32.mrb[0].mxu0
        %v3315 = vpop.f32.mrb[0].mxu0
        %v3316 = vadd.f32 0.0, %v3315
        %v3317 = vpop.f32.mrb[0].mxu0
        %3318 = vmatprep.mubr.bf16.mxu0 0
        %3319 = vmatmul.mubr.bf16.gmra.mrb[0].mxu0 %v3228
        %v3320 = vpop.f32.mrb[0].mxu0
        %v3321 = vadd.f32 0.0, %v3320
        %v3322 = vpop.f32.mrb[0].mxu0
        %v3323 = vpop.f32.mrb[0].mxu0
        %v3324 = vadd.f32 0.0, %v3323
        %v3325 = vpop.f32.mrb[0].mxu0
        %3326 = vdwg.mxu0
        %v3327 = vadd.f32 %v3165, %v3265
        %v3328 = vadd.f32 %v3166, %v3268
        %v3329 = vadd.f32 %v3167, %v3273
        %v3330 = vadd.f32 %v3168, %v3276
        %v3331 = vadd.f32 %v3169, %v3281
        %v3332 = vadd.f32 %v3170, %v3284
        %v3333 = vadd.f32 %v3171, %v3289
        %v3334 = vadd.f32 %v3172, %v3292
        %v3335 = vadd.f32 %v3173, %v3297
        %v3336 = vadd.f32 %v3174, %v3300
        %v3337 = vadd.f32 %v3175, %v3305
        %v3338 = vadd.f32 %v3176, %v3308
        %v3339 = vadd.f32 %v3177, %v3313
        %v3340 = vadd.f32 %v3178, %v3316
        %v3341 = vadd.f32 %v3179, %v3321
        %v3342 = vadd.f32 %v3180, %v3324
        %3343 = vst.msk [vmem:[#allocation2] sm:$0xff] %vm3205, %v3327
        %3344 = vst.msk [vmem:[#allocation2 + $0x8] sm:$0xff] %vm3205, %v3328
        %3345 = vst.msk [vmem:[#allocation2 + $0x10] sm:$0xff] %vm3205, %v3329
        %3346 = vst.msk [vmem:[#allocation2 + $0x18] sm:$0xff] %vm3205, %v3330
        %3347 = vst.msk [vmem:[#allocation2 + $0x20] sm:$0xff] %vm3205, %v3331
        %3348 = vst.msk [vmem:[#allocation2 + $0x28] sm:$0xff] %vm3205, %v3332
        %3349 = vst.msk [vmem:[#allocation2 + $0x30] sm:$0xff] %vm3205, %v3333
        %3350 = vst.msk [vmem:[#allocation2 + $0x38] sm:$0xff] %vm3205, %v3334
        %3351 = vst.msk [vmem:[#allocation2 + $0x40] sm:$0xff] %vm3205, %v3335
        %3352 = vst.msk [vmem:[#allocation2 + $0x48] sm:$0xff] %vm3205, %v3336
        %3353 = vst.msk [vmem:[#allocation2 + $0x50] sm:$0xff] %vm3205, %v3337
        %3354 = vst.msk [vmem:[#allocation2 + $0x58] sm:$0xff] %vm3205, %v3338
        %3355 = vst.msk [vmem:[#allocation2 + $0x60] sm:$0xff] %vm3205, %v3339
        %3356 = vst.msk [vmem:[#allocation2 + $0x68] sm:$0xff] %vm3205, %v3340
        %3357 = vst.msk [vmem:[#allocation2 + $0x70] sm:$0xff] %vm3205, %v3341
        %3358 = vst.msk [vmem:[#allocation2 + $0x78] sm:$0xff] %vm3205, %v3342
      $region48: #{tpu_custom_call.1} parent=39 // pred_fallthru
        _
      %p3359 = scmp.eq.s32.totalorder %s23, 2
      // Predicated region
      $region49: #{tpu_custom_call.1} parent=39 // pred_check
        %p3360 = pneg %p3359
      $region50: #{tpu_custom_call.1} parent=39 // pred_check_branch
        %3362 = sbr.rel (%p3360) target = $region52
      $region51: #{tpu_custom_call.1} parent=39 // pred_region
        %s3363 = smul.u32 %s310, 3
        %s3364 = smul.addr %s3363, 4
        %s3365 = scalar_lea.vmem %s285, %s3364
        %v3366 = vld [vmem:[%s3365] sm:$0xf]
        %v3367 = vld [vmem:[%s3365 + $0x4] sm:$0xf]
        %v3368 = vld [vmem:[%s3365 + $0xc] sm:$0xf]
        %v3369 = vld [vmem:[%s3365 + $0x10] sm:$0xf]
        %v3370 = vld [vmem:[%s3365 + $0x18] sm:$0xf]
        %v3371 = vld [vmem:[%s3365 + $0x1c] sm:$0xf]
        %v3372 = vld [vmem:[%s3365 + $0x24] sm:$0xf]
        %v3373 = vld [vmem:[%s3365 + $0x28] sm:$0xf]
        %v3374 = vld [vmem:[%s3365 + $0x30] sm:$0xf]
        %v3375 = vld [vmem:[%s3365 + $0x34] sm:$0xf]
        %v3376 = vld [vmem:[%s3365 + $0x3c] sm:$0xf]
        %v3377 = vld [vmem:[%s3365 + $0x40] sm:$0xf]
        %v3378 = vld [vmem:[%s3365 + $0x48] sm:$0xf]
        %v3379 = vld [vmem:[%s3365 + $0x4c] sm:$0xf]
        %v3380 = vld [vmem:[%s3365 + $0x54] sm:$0xf]
        %v3381 = vld [vmem:[%s3365 + $0x58] sm:$0xf]
        %v3382 = vld [vmem:[%s290] sm:$0xf]
        %v3383 = vld [vmem:[%s3365] sm:$0xc]
        %v3384 = vld [vmem:[%s3365 + $0x8] sm:$0x3]
        %v3385 = vld [vmem:[%s3365 + $0xc] sm:$0xc]
        %v3386 = vld [vmem:[%s3365 + $0x14] sm:$0x3]
        %v3387 = vld [vmem:[%s3365 + $0x18] sm:$0xc]
        %v3388 = vld [vmem:[%s3365 + $0x20] sm:$0x3]
        %v3389 = vld [vmem:[%s3365 + $0x24] sm:$0xc]
        %v3390 = vld [vmem:[%s3365 + $0x2c] sm:$0x3]
        %v3391 = vld [vmem:[%s3365 + $0x30] sm:$0xc]
        %v3392 = vld [vmem:[%s3365 + $0x38] sm:$0x3]
        %v3393 = vld [vmem:[%s3365 + $0x3c] sm:$0xc]
        %v3394 = vld [vmem:[%s3365 + $0x44] sm:$0x3]
        %v3395 = vld [vmem:[%s3365 + $0x48] sm:$0xc]
        %v3396 = vld [vmem:[%s3365 + $0x50] sm:$0x3]
        %v3397 = vld [vmem:[%s3365 + $0x54] sm:$0xc]
        %v3398 = vld [vmem:[%s3365 + $0x5c] sm:$0x3]
        %vm3423 = vcmask 1041408
        %vm3424 = vcmask 1045508
        %vm3425 = vmor %vm3423, %vm3424
        %v3426 = vrot.slane %v3383, 6
        %v3427 = vrot.slane %v3426, 4
        %v3428 = vrot.slane %v3367, 6
        %v3429 = vsel %vm3425, %v3427, %v3428
        %v3430 = vrot.slane %v3428, 4
        %v3431 = vrot.slane %v3384, 6
        %v3432 = vsel %vm3425, %v3430, %v3431
        %v3433 = vrot.slane %v3385, 6
        %v3434 = vrot.slane %v3433, 4
        %v3435 = vrot.slane %v3369, 6
        %v3436 = vsel %vm3425, %v3434, %v3435
        %v3437 = vrot.slane %v3435, 4
        %v3438 = vrot.slane %v3386, 6
        %v3439 = vsel %vm3425, %v3437, %v3438
        %v3440 = vrot.slane %v3387, 6
        %v3441 = vrot.slane %v3440, 4
        %v3442 = vrot.slane %v3371, 6
        %v3443 = vsel %vm3425, %v3441, %v3442
        %v3444 = vrot.slane %v3442, 4
        %v3445 = vrot.slane %v3388, 6
        %v3446 = vsel %vm3425, %v3444, %v3445
        %v3447 = vrot.slane %v3389, 6
        %v3448 = vrot.slane %v3447, 4
        %v3449 = vrot.slane %v3373, 6
        %v3450 = vsel %vm3425, %v3448, %v3449
        %v3451 = vrot.slane %v3449, 4
        %v3452 = vrot.slane %v3390, 6
        %v3453 = vsel %vm3425, %v3451, %v3452
        %v3454 = vrot.slane %v3391, 6
        %v3455 = vrot.slane %v3454, 4
        %v3456 = vrot.slane %v3375, 6
        %v3457 = vsel %vm3425, %v3455, %v3456
        %v3458 = vrot.slane %v3456, 4
        %v3459 = vrot.slane %v3392, 6
        %v3460 = vsel %vm3425, %v3458, %v3459
        %v3461 = vrot.slane %v3393, 6
        %v3462 = vrot.slane %v3461, 4
        %v3463 = vrot.slane %v3377, 6
        %v3464 = vsel %vm3425, %v3462, %v3463
        %v3465 = vrot.slane %v3463, 4
        %v3466 = vrot.slane %v3394, 6
        %v3467 = vsel %vm3425, %v3465, %v3466
        %v3468 = vrot.slane %v3395, 6
        %v3469 = vrot.slane %v3468, 4
        %v3470 = vrot.slane %v3379, 6
        %v3471 = vsel %vm3425, %v3469, %v3470
        %v3472 = vrot.slane %v3470, 4
        %v3473 = vrot.slane %v3396, 6
        %v3474 = vsel %vm3425, %v3472, %v3473
        %v3475 = vrot.slane %v3397, 6
        %v3476 = vrot.slane %v3475, 4
        %v3477 = vrot.slane %v3381, 6
        %v3478 = vsel %vm3425, %v3476, %v3477
        %v3479 = vrot.slane %v3477, 4
        %v3480 = vrot.slane %v3398, 6
        %v3481 = vsel %vm3425, %v3479, %v3480
        %v3482 = vld [vmem:[%s290 + $0x4] sm:$0xf]
        %v3483 = vunpack.c.l.b16 %v3429
        %v3484 = vunpack.c.l.b16 %v3432
        %v3485 = vunpack.c.l.b16 %v3436
        %v3486 = vunpack.c.l.b16 %v3439
        %v3487 = vunpack.c.l.b16 %v3443
        %v3488 = vunpack.c.l.b16 %v3446
        %v3489 = vunpack.c.l.b16 %v3450
        %v3490 = vunpack.c.l.b16 %v3453
        %v3491 = vunpack.c.l.b16 %v3457
        %v3492 = vunpack.c.l.b16 %v3460
        %v3493 = vunpack.c.l.b16 %v3464
        %v3494 = vunpack.c.l.b16 %v3467
        %v3495 = vunpack.c.l.b16 %v3471
        %v3496 = vunpack.c.l.b16 %v3474
        %v3497 = vunpack.c.l.b16 %v3478
        %v3498 = vunpack.c.l.b16 %v3481
        %v3499 = vpack.c.b16 %v3484, %v3483
        %v3500 = vpack.c.b16 %v3486, %v3485
        %v3501 = vpack.c.b16 %v3488, %v3487
        %v3502 = vpack.c.b16 %v3490, %v3489
        %v3503 = vpack.c.b16 %v3492, %v3491
        %v3504 = vpack.c.b16 %v3494, %v3493
        %v3505 = vpack.c.b16 %v3496, %v3495
        %v3506 = vpack.c.b16 %v3498, %v3497
        %vm3507 = vcmask 64512
        %v3509 = vsel %vm3507, %v3499, 0
        %v3512 = vsel %vm3507, %v3500, 0
        %v3515 = vsel %vm3507, %v3501, 0
        %v3518 = vsel %vm3507, %v3502, 0
        %v3521 = vsel %vm3507, %v3503, 0
        %v3524 = vsel %vm3507, %v3504, 0
        %v3527 = vsel %vm3507, %v3505, 0
        %v3530 = vsel %vm3507, %v3506, 0
        %vm3532 = vcmask 1043456
        %v3534 = vsel %vm3532, %v3482, 0
        %3536 = vmatprep.subr.bf16.mxu0 0
        %3537 = vmatpush1.bf16.msra.mxu0 %v3534
        %3538 = vmatprep.subr.bf16.mxu0 0
        %3539 = vmatpush1.bf16.msra.mxu0 0
        %3540 = vmatprep.subr.bf16.mxu0 0
        %3541 = vmatpush1.bf16.msra.mxu0 0
        %3542 = vmatprep.subr.bf16.mxu0 0
        %3543 = vmatpush1.bf16.msra.mxu0 0
        %3544 = vmatprep.subr.bf16.mxu0 0
        %3545 = vmatpush1.bf16.msra.mxu0 0
        %3546 = vmatprep.subr.bf16.mxu0 0
        %3547 = vmatpush1.bf16.msra.mxu0 0
        %3548 = vmatprep.subr.bf16.mxu0 0
        %3549 = vmatpush1.bf16.msra.mxu0 0
        %3550 = vmatprep.subr.bf16.mxu0 0
        %3551 = vmatpush1.bf16.msra.mxu0 0
        %3552 = vmatprep.subr.bf16.mxu0 0
        %3553 = vmatpush1.bf16.msra.mxu0 0
        %3554 = vmatprep.subr.bf16.mxu0 0
        %3555 = vmatpush1.bf16.msra.mxu0 0
        %3556 = vmatprep.subr.bf16.mxu0 0
        %3557 = vmatpush1.bf16.msra.mxu0 0
        %3558 = vmatprep.subr.bf16.mxu0 0
        %3559 = vmatpush1.bf16.msra.mxu0 0
        %3560 = vmatprep.subr.bf16.mxu0 0
        %3561 = vmatpush1.bf16.msra.mxu0 0
        %3562 = vmatprep.subr.bf16.mxu0 0
        %3563 = vmatpush1.bf16.msra.mxu0 0
        %3564 = vmatprep.subr.bf16.mxu0 0
        %3565 = vmatpush1.bf16.msra.mxu0 0
        %3566 = vmatprep.subr.bf16.mxu0 0
        %3567 = vmatpush1.bf16.msra.mxu0 0
        %3568 = vmatprep.mubr.bf16.mxu0 0
        %3569 = vmatmul.mubr.bf16.gmra.mrb[0].mxu0 %v3509
        %v3570 = vpop.f32.mrb[0].mxu0
        %v3571 = vadd.f32 0.0, %v3570
        %v3572 = vpop.f32.mrb[0].mxu0
        %v3573 = vpop.f32.mrb[0].mxu0
        %v3574 = vadd.f32 0.0, %v3573
        %v3575 = vpop.f32.mrb[0].mxu0
        %3576 = vmatprep.mubr.bf16.mxu0 0
        %3577 = vmatmul.mubr.bf16.gmra.mrb[0].mxu0 %v3512
        %v3578 = vpop.f32.mrb[0].mxu0
        %v3579 = vadd.f32 0.0, %v3578
        %v3580 = vpop.f32.mrb[0].mxu0
        %v3581 = vpop.f32.mrb[0].mxu0
        %v3582 = vadd.f32 0.0, %v3581
        %v3583 = vpop.f32.mrb[0].mxu0
        %3584 = vmatprep.mubr.bf16.mxu0 0
        %3585 = vmatmul.mubr.bf16.gmra.mrb[0].mxu0 %v3515
        %v3586 = vpop.f32.mrb[0].mxu0
        %v3587 = vadd.f32 0.0, %v3586
        %v3588 = vpop.f32.mrb[0].mxu0
        %v3589 = vpop.f32.mrb[0].mxu0
        %v3590 = vadd.f32 0.0, %v3589
        %v3591 = vpop.f32.mrb[0].mxu0
        %3592 = vmatprep.mubr.bf16.mxu0 0
        %3593 = vmatmul.mubr.bf16.gmra.mrb[0].mxu0 %v3518
        %v3594 = vpop.f32.mrb[0].mxu0
        %v3595 = vadd.f32 0.0, %v3594
        %v3596 = vpop.f32.mrb[0].mxu0
        %v3597 = vpop.f32.mrb[0].mxu0
        %v3598 = vadd.f32 0.0, %v3597
        %v3599 = vpop.f32.mrb[0].mxu0
        %3600 = vmatprep.mubr.bf16.mxu0 0
        %3601 = vmatmul.mubr.bf16.gmra.mrb[0].mxu0 %v3521
        %v3602 = vpop.f32.mrb[0].mxu0
        %v3603 = vadd.f32 0.0, %v3602
        %v3604 = vpop.f32.mrb[0].mxu0
        %v3605 = vpop.f32.mrb[0].mxu0
        %v3606 = vadd.f32 0.0, %v3605
        %v3607 = vpop.f32.mrb[0].mxu0
        %3608 = vmatprep.mubr.bf16.mxu0 0
        %3609 = vmatmul.mubr.bf16.gmra.mrb[0].mxu0 %v3524
        %v3610 = vpop.f32.mrb[0].mxu0
        %v3611 = vadd.f32 0.0, %v3610
        %v3612 = vpop.f32.mrb[0].mxu0
        %v3613 = vpop.f32.mrb[0].mxu0
        %v3614 = vadd.f32 0.0, %v3613
        %v3615 = vpop.f32.mrb[0].mxu0
        %3616 = vmatprep.mubr.bf16.mxu0 0
        %3617 = vmatmul.mubr.bf16.gmra.mrb[0].mxu0 %v3527
        %v3618 = vpop.f32.mrb[0].mxu0
        %v3619 = vadd.f32 0.0, %v3618
        %v3620 = vpop.f32.mrb[0].mxu0
        %v3621 = vpop.f32.mrb[0].mxu0
        %v3622 = vadd.f32 0.0, %v3621
        %v3623 = vpop.f32.mrb[0].mxu0
        %3624 = vmatprep.mubr.bf16.mxu0 0
        %3625 = vmatmul.mubr.bf16.gmra.mrb[0].mxu0 %v3530
        %v3626 = vpop.f32.mrb[0].mxu0
        %v3627 = vadd.f32 0.0, %v3626
        %v3628 = vpop.f32.mrb[0].mxu0
        %v3629 = vpop.f32.mrb[0].mxu0
        %v3630 = vadd.f32 0.0, %v3629
        %v3631 = vpop.f32.mrb[0].mxu0
        %3632 = vdwg.mxu0
        %v3641 = vunpack.c.l.b16 %v3366
        %v3642 = vunpack.c.l.b16 %v3367
        %v3643 = vunpack.c.l.b16 %v3368
        %v3644 = vunpack.c.l.b16 %v3369
        %v3645 = vunpack.c.l.b16 %v3370
        %v3646 = vunpack.c.l.b16 %v3371
        %v3647 = vunpack.c.l.b16 %v3372
        %v3648 = vunpack.c.l.b16 %v3373
        %v3649 = vunpack.c.l.b16 %v3374
        %v3650 = vunpack.c.l.b16 %v3375
        %v3651 = vunpack.c.l.b16 %v3376
        %v3652 = vunpack.c.l.b16 %v3377
        %v3653 = vunpack.c.l.b16 %v3378
        %v3654 = vunpack.c.l.b16 %v3379
        %v3655 = vunpack.c.l.b16 %v3380
        %v3656 = vunpack.c.l.b16 %v3381
        %v3657 = vpack.c.b16 %v3642, %v3641
        %v3658 = vpack.c.b16 %v3644, %v3643
        %v3659 = vpack.c.b16 %v3646, %v3645
        %v3660 = vpack.c.b16 %v3648, %v3647
        %v3661 = vpack.c.b16 %v3650, %v3649
        %v3662 = vpack.c.b16 %v3652, %v3651
        %v3663 = vpack.c.b16 %v3654, %v3653
        %v3664 = vpack.c.b16 %v3656, %v3655
        %v3666 = vsel %vm3507, %v3657, 0
        %v3669 = vsel %vm3507, %v3658, 0
        %v3672 = vsel %vm3507, %v3659, 0
        %v3675 = vsel %vm3507, %v3660, 0
        %v3678 = vsel %vm3507, %v3661, 0
        %v3681 = vsel %vm3507, %v3662, 0
        %v3684 = vsel %vm3507, %v3663, 0
        %v3687 = vsel %vm3507, %v3664, 0
        %v3690 = vsel %vm3532, %v3382, 0
        %3692 = vmatprep.subr.bf16.mxu0 0
        %3693 = vmatpush1.bf16.msra.mxu0 %v3690
        %3694 = vmatprep.subr.bf16.mxu0 0
        %3695 = vmatpush1.bf16.msra.mxu0 0
        %3696 = vmatprep.subr.bf16.mxu0 0
        %3697 = vmatpush1.bf16.msra.mxu0 0
        %3698 = vmatprep.subr.bf16.mxu0 0
        %3699 = vmatpush1.bf16.msra.mxu0 0
        %3700 = vmatprep.subr.bf16.mxu0 0
        %3701 = vmatpush1.bf16.msra.mxu0 0
        %3702 = vmatprep.subr.bf16.mxu0 0
        %3703 = vmatpush1.bf16.msra.mxu0 0
        %3704 = vmatprep.subr.bf16.mxu0 0
        %3705 = vmatpush1.bf16.msra.mxu0 0
        %3706 = vmatprep.subr.bf16.mxu0 0
        %3707 = vmatpush1.bf16.msra.mxu0 0
        %3708 = vmatprep.subr.bf16.mxu0 0
        %3709 = vmatpush1.bf16.msra.mxu0 0
        %3710 = vmatprep.subr.bf16.mxu0 0
        %3711 = vmatpush1.bf16.msra.mxu0 0
        %3712 = vmatprep.subr.bf16.mxu0 0
        %3713 = vmatpush1.bf16.msra.mxu0 0
        %3714 = vmatprep.subr.bf16.mxu0 0
        %3715 = vmatpush1.bf16.msra.mxu0 0
        %3716 = vmatprep.subr.bf16.mxu0 0
        %3717 = vmatpush1.bf16.msra.mxu0 0
        %3718 = vmatprep.subr.bf16.mxu0 0
        %3719 = vmatpush1.bf16.msra.mxu0 0
        %3720 = vmatprep.subr.bf16.mxu0 0
        %3721 = vmatpush1.bf16.msra.mxu0 0
        %3722 = vmatprep.subr.bf16.mxu0 0
        %3723 = vmatpush1.bf16.msra.mxu0 0
        %3724 = vmatprep.mubr.bf16.mxu0 0
        %3725 = vmatmul.mubr.bf16.gmra.mrb[0].mxu0 %v3666
        %v3726 = vpop.f32.mrb[0].mxu0
        %v3727 = vadd.f32 %v3571, %v3726
        %v3728 = vpop.f32.mrb[0].mxu0
        %v3729 = vpop.f32.mrb[0].mxu0
        %v3730 = vadd.f32 %v3574, %v3729
        %v3731 = vpop.f32.mrb[0].mxu0
        %3732 = vmatprep.mubr.bf16.mxu0 0
        %3733 = vmatmul.mubr.bf16.gmra.mrb[0].mxu0 %v3669
        %v3734 = vpop.f32.mrb[0].mxu0
        %v3735 = vadd.f32 %v3579, %v3734
        %v3736 = vpop.f32.mrb[0].mxu0
        %v3737 = vpop.f32.mrb[0].mxu0
        %v3738 = vadd.f32 %v3582, %v3737
        %v3739 = vpop.f32.mrb[0].mxu0
        %3740 = vmatprep.mubr.bf16.mxu0 0
        %3741 = vmatmul.mubr.bf16.gmra.mrb[0].mxu0 %v3672
        %v3742 = vpop.f32.mrb[0].mxu0
        %v3743 = vadd.f32 %v3587, %v3742
        %v3744 = vpop.f32.mrb[0].mxu0
        %v3745 = vpop.f32.mrb[0].mxu0
        %v3746 = vadd.f32 %v3590, %v3745
        %v3747 = vpop.f32.mrb[0].mxu0
        %3748 = vmatprep.mubr.bf16.mxu0 0
        %3749 = vmatmul.mubr.bf16.gmra.mrb[0].mxu0 %v3675
        %v3750 = vpop.f32.mrb[0].mxu0
        %v3751 = vadd.f32 %v3595, %v3750
        %v3752 = vpop.f32.mrb[0].mxu0
        %v3753 = vpop.f32.mrb[0].mxu0
        %v3754 = vadd.f32 %v3598, %v3753
        %v3755 = vpop.f32.mrb[0].mxu0
        %3756 = vmatprep.mubr.bf16.mxu0 0
        %3757 = vmatmul.mubr.bf16.gmra.mrb[0].mxu0 %v3678
        %v3758 = vpop.f32.mrb[0].mxu0
        %v3759 = vadd.f32 %v3603, %v3758
        %v3760 = vpop.f32.mrb[0].mxu0
        %v3761 = vpop.f32.mrb[0].mxu0
        %v3762 = vadd.f32 %v3606, %v3761
        %v3763 = vpop.f32.mrb[0].mxu0
        %3764 = vmatprep.mubr.bf16.mxu0 0
        %3765 = vmatmul.mubr.bf16.gmra.mrb[0].mxu0 %v3681
        %v3766 = vpop.f32.mrb[0].mxu0
        %v3767 = vadd.f32 %v3611, %v3766
        %v3768 = vpop.f32.mrb[0].mxu0
        %v3769 = vpop.f32.mrb[0].mxu0
        %v3770 = vadd.f32 %v3614, %v3769
        %v3771 = vpop.f32.mrb[0].mxu0
        %3772 = vmatprep.mubr.bf16.mxu0 0
        %3773 = vmatmul.mubr.bf16.gmra.mrb[0].mxu0 %v3684
        %v3774 = vpop.f32.mrb[0].mxu0
        %v3775 = vadd.f32 %v3619, %v3774
        %v3776 = vpop.f32.mrb[0].mxu0
        %v3777 = vpop.f32.mrb[0].mxu0
        %v3778 = vadd.f32 %v3622, %v3777
        %v3779 = vpop.f32.mrb[0].mxu0
        %3780 = vmatprep.mubr.bf16.mxu0 0
        %3781 = vmatmul.mubr.bf16.gmra.mrb[0].mxu0 %v3687
        %v3782 = vpop.f32.mrb[0].mxu0
        %v3783 = vadd.f32 %v3627, %v3782
        %v3784 = vpop.f32.mrb[0].mxu0
        %v3785 = vpop.f32.mrb[0].mxu0
        %v3786 = vadd.f32 %v3630, %v3785
        %v3787 = vpop.f32.mrb[0].mxu0
        %3788 = vdwg.mxu0
        %v3789 = vld [vmem:[%s3365 + $0x8] sm:$0xf]
        %v3790 = vld [vmem:[%s3365 + $0x14] sm:$0xf]
        %v3791 = vld [vmem:[%s3365 + $0x20] sm:$0xf]
        %v3792 = vld [vmem:[%s3365 + $0x2c] sm:$0xf]
        %v3793 = vld [vmem:[%s3365 + $0x38] sm:$0xf]
        %v3794 = vld [vmem:[%s3365 + $0x44] sm:$0xf]
        %v3795 = vld [vmem:[%s3365 + $0x50] sm:$0xf]
        %v3796 = vld [vmem:[%s3365 + $0x5c] sm:$0xf]
        %v3797 = vld [vmem:[%s290 + $0x8] sm:$0xf]
        %v3806 = vunpack.c.l.b16 %v3789
        %v3807 = vunpack.c.l.b16 %v3790
        %v3808 = vunpack.c.l.b16 %v3791
        %v3809 = vunpack.c.l.b16 %v3792
        %v3810 = vunpack.c.l.b16 %v3793
        %v3811 = vunpack.c.l.b16 %v3794
        %v3812 = vunpack.c.l.b16 %v3795
        %v3813 = vunpack.c.l.b16 %v3796
        %v3814 = vpack.c.b16 %v3806, %v3642
        %v3815 = vpack.c.b16 %v3807, %v3644
        %v3816 = vpack.c.b16 %v3808, %v3646
        %v3817 = vpack.c.b16 %v3809, %v3648
        %v3818 = vpack.c.b16 %v3810, %v3650
        %v3819 = vpack.c.b16 %v3811, %v3652
        %v3820 = vpack.c.b16 %v3812, %v3654
        %v3821 = vpack.c.b16 %v3813, %v3656
        %v3823 = vsel %vm3507, %v3814, 0
        %v3826 = vsel %vm3507, %v3815, 0
        %v3829 = vsel %vm3507, %v3816, 0
        %v3832 = vsel %vm3507, %v3817, 0
        %v3835 = vsel %vm3507, %v3818, 0
        %v3838 = vsel %vm3507, %v3819, 0
        %v3841 = vsel %vm3507, %v3820, 0
        %v3844 = vsel %vm3507, %v3821, 0
        %v3847 = vsel %vm3532, %v3797, 0
        %3849 = vmatprep.subr.bf16.mxu0 0
        %3850 = vmatpush1.bf16.msra.mxu0 %v3847
        %3851 = vmatprep.subr.bf16.mxu0 0
        %3852 = vmatpush1.bf16.msra.mxu0 0
        %3853 = vmatprep.subr.bf16.mxu0 0
        %3854 = vmatpush1.bf16.msra.mxu0 0
        %3855 = vmatprep.subr.bf16.mxu0 0
        %3856 = vmatpush1.bf16.msra.mxu0 0
        %3857 = vmatprep.subr.bf16.mxu0 0
        %3858 = vmatpush1.bf16.msra.mxu0 0
        %3859 = vmatprep.subr.bf16.mxu0 0
        %3860 = vmatpush1.bf16.msra.mxu0 0
        %3861 = vmatprep.subr.bf16.mxu0 0
        %3862 = vmatpush1.bf16.msra.mxu0 0
        %3863 = vmatprep.subr.bf16.mxu0 0
        %3864 = vmatpush1.bf16.msra.mxu0 0
        %3865 = vmatprep.subr.bf16.mxu0 0
        %3866 = vmatpush1.bf16.msra.mxu0 0
        %3867 = vmatprep.subr.bf16.mxu0 0
        %3868 = vmatpush1.bf16.msra.mxu0 0
        %3869 = vmatprep.subr.bf16.mxu0 0
        %3870 = vmatpush1.bf16.msra.mxu0 0
        %3871 = vmatprep.subr.bf16.mxu0 0
        %3872 = vmatpush1.bf16.msra.mxu0 0
        %3873 = vmatprep.subr.bf16.mxu0 0
        %3874 = vmatpush1.bf16.msra.mxu0 0
        %3875 = vmatprep.subr.bf16.mxu0 0
        %3876 = vmatpush1.bf16.msra.mxu0 0
        %3877 = vmatprep.subr.bf16.mxu0 0
        %3878 = vmatpush1.bf16.msra.mxu0 0
        %3879 = vmatprep.subr.bf16.mxu0 0
        %3880 = vmatpush1.bf16.msra.mxu0 0
        %3881 = vmatprep.mubr.bf16.mxu0 0
        %3882 = vmatmul.mubr.bf16.gmra.mrb[0].mxu0 %v3823
        %v3883 = vpop.f32.mrb[0].mxu0
        %v3884 = vadd.f32 0.0, %v3883
        %v3885 = vpop.f32.mrb[0].mxu0
        %v3886 = vpop.f32.mrb[0].mxu0
        %v3887 = vadd.f32 0.0, %v3886
        %v3888 = vpop.f32.mrb[0].mxu0
        %3889 = vmatprep.mubr.bf16.mxu0 0
        %3890 = vmatmul.mubr.bf16.gmra.mrb[0].mxu0 %v3826
        %v3891 = vpop.f32.mrb[0].mxu0
        %v3892 = vadd.f32 0.0, %v3891
        %v3893 = vpop.f32.mrb[0].mxu0
        %v3894 = vpop.f32.mrb[0].mxu0
        %v3895 = vadd.f32 0.0, %v3894
        %v3896 = vpop.f32.mrb[0].mxu0
        %3897 = vmatprep.mubr.bf16.mxu0 0
        %3898 = vmatmul.mubr.bf16.gmra.mrb[0].mxu0 %v3829
        %v3899 = vpop.f32.mrb[0].mxu0
        %v3900 = vadd.f32 0.0, %v3899
        %v3901 = vpop.f32.mrb[0].mxu0
        %v3902 = vpop.f32.mrb[0].mxu0
        %v3903 = vadd.f32 0.0, %v3902
        %v3904 = vpop.f32.mrb[0].mxu0
        %3905 = vmatprep.mubr.bf16.mxu0 0
        %3906 = vmatmul.mubr.bf16.gmra.mrb[0].mxu0 %v3832
        %v3907 = vpop.f32.mrb[0].mxu0
        %v3908 = vadd.f32 0.0, %v3907
        %v3909 = vpop.f32.mrb[0].mxu0
        %v3910 = vpop.f32.mrb[0].mxu0
        %v3911 = vadd.f32 0.0, %v3910
        %v3912 = vpop.f32.mrb[0].mxu0
        %3913 = vmatprep.mubr.bf16.mxu0 0
        %3914 = vmatmul.mubr.bf16.gmra.mrb[0].mxu0 %v3835
        %v3915 = vpop.f32.mrb[0].mxu0
        %v3916 = vadd.f32 0.0, %v3915
        %v3917 = vpop.f32.mrb[0].mxu0
        %v3918 = vpop.f32.mrb[0].mxu0
        %v3919 = vadd.f32 0.0, %v3918
        %v3920 = vpop.f32.mrb[0].mxu0
        %3921 = vmatprep.mubr.bf16.mxu0 0
        %3922 = vmatmul.mubr.bf16.gmra.mrb[0].mxu0 %v3838
        %v3923 = vpop.f32.mrb[0].mxu0
        %v3924 = vadd.f32 0.0, %v3923
        %v3925 = vpop.f32.mrb[0].mxu0
        %v3926 = vpop.f32.mrb[0].mxu0
        %v3927 = vadd.f32 0.0, %v3926
        %v3928 = vpop.f32.mrb[0].mxu0
        %3929 = vmatprep.mubr.bf16.mxu0 0
        %3930 = vmatmul.mubr.bf16.gmra.mrb[0].mxu0 %v3841
        %v3931 = vpop.f32.mrb[0].mxu0
        %v3932 = vadd.f32 0.0, %v3931
        %v3933 = vpop.f32.mrb[0].mxu0
        %v3934 = vpop.f32.mrb[0].mxu0
        %v3935 = vadd.f32 0.0, %v3934
        %v3936 = vpop.f32.mrb[0].mxu0
        %3937 = vmatprep.mubr.bf16.mxu0 0
        %3938 = vmatmul.mubr.bf16.gmra.mrb[0].mxu0 %v3844
        %v3939 = vpop.f32.mrb[0].mxu0
        %v3940 = vadd.f32 0.0, %v3939
        %v3941 = vpop.f32.mrb[0].mxu0
        %v3942 = vpop.f32.mrb[0].mxu0
        %v3943 = vadd.f32 0.0, %v3942
        %v3944 = vpop.f32.mrb[0].mxu0
        %3945 = vdwg.mxu0
        %v3946 = vadd.f32 %v3727, %v3884
        %v3947 = vadd.f32 %v3730, %v3887
        %v3948 = vadd.f32 %v3735, %v3892
        %v3949 = vadd.f32 %v3738, %v3895
        %v3950 = vadd.f32 %v3743, %v3900
        %v3951 = vadd.f32 %v3746, %v3903
        %v3952 = vadd.f32 %v3751, %v3908
        %v3953 = vadd.f32 %v3754, %v3911
        %v3954 = vadd.f32 %v3759, %v3916
        %v3955 = vadd.f32 %v3762, %v3919
        %v3956 = vadd.f32 %v3767, %v3924
        %v3957 = vadd.f32 %v3770, %v3927
        %v3958 = vadd.f32 %v3775, %v3932
        %v3959 = vadd.f32 %v3778, %v3935
        %v3960 = vadd.f32 %v3783, %v3940
        %v3961 = vadd.f32 %v3786, %v3943
        %s3962 = sadd.s32 %s310, 4
        %s3963 = smul.u32 %s3962, 3
        %s3964 = smul.addr %s3963, 4
        %s3965 = scalar_lea.vmem %s285, %s3964
        %v3966 = vld [vmem:[%s3965] sm:$0xf]
        %v3967 = vld [vmem:[%s3965 + $0x4] sm:$0xf]
        %v3968 = vld [vmem:[%s3965 + $0xc] sm:$0xf]
        %v3969 = vld [vmem:[%s3965 + $0x10] sm:$0xf]
        %v3970 = vld [vmem:[%s3965 + $0x18] sm:$0xf]
        %v3971 = vld [vmem:[%s3965 + $0x1c] sm:$0xf]
        %v3972 = vld [vmem:[%s3965 + $0x24] sm:$0xf]
        %v3973 = vld [vmem:[%s3965 + $0x28] sm:$0xf]
        %v3974 = vld [vmem:[%s3965 + $0x30] sm:$0xf]
        %v3975 = vld [vmem:[%s3965 + $0x34] sm:$0xf]
        %v3976 = vld [vmem:[%s3965 + $0x3c] sm:$0xf]
        %v3977 = vld [vmem:[%s3965 + $0x40] sm:$0xf]
        %v3978 = vld [vmem:[%s3965 + $0x48] sm:$0xf]
        %v3979 = vld [vmem:[%s3965 + $0x4c] sm:$0xf]
        %v3980 = vld [vmem:[%s3965 + $0x54] sm:$0xf]
        %v3981 = vld [vmem:[%s3965 + $0x58] sm:$0xf]
        %v3982 = vld [vmem:[%s290 + $0xc] sm:$0xf]
        %v3999 = vunpack.c.l.b16 %v3966
        %v4000 = vunpack.c.l.b16 %v3967
        %v4001 = vunpack.c.l.b16 %v3968
        %v4002 = vunpack.c.l.b16 %v3969
        %v4003 = vunpack.c.l.b16 %v3970
        %v4004 = vunpack.c.l.b16 %v3971
        %v4005 = vunpack.c.l.b16 %v3972
        %v4006 = vunpack.c.l.b16 %v3973
        %v4007 = vunpack.c.l.b16 %v3974
        %v4008 = vunpack.c.l.b16 %v3975
        %v4009 = vunpack.c.l.b16 %v3976
        %v4010 = vunpack.c.l.b16 %v3977
        %v4011 = vunpack.c.l.b16 %v3978
        %v4012 = vunpack.c.l.b16 %v3979
        %v4013 = vunpack.c.l.b16 %v3980
        %v4014 = vunpack.c.l.b16 %v3981
        %v4015 = vpack.c.b16 %v4000, %v3999
        %v4016 = vpack.c.b16 %v4002, %v4001
        %v4017 = vpack.c.b16 %v4004, %v4003
        %v4018 = vpack.c.b16 %v4006, %v4005
        %v4019 = vpack.c.b16 %v4008, %v4007
        %v4020 = vpack.c.b16 %v4010, %v4009
        %v4021 = vpack.c.b16 %v4012, %v4011
        %v4022 = vpack.c.b16 %v4014, %v4013
        %v4024 = vsel %vm3507, %v4015, 0
        %v4027 = vsel %vm3507, %v4016, 0
        %v4030 = vsel %vm3507, %v4017, 0
        %v4033 = vsel %vm3507, %v4018, 0
        %v4036 = vsel %vm3507, %v4019, 0
        %v4039 = vsel %vm3507, %v4020, 0
        %v4042 = vsel %vm3507, %v4021, 0
        %v4045 = vsel %vm3507, %v4022, 0
        %v4048 = vsel %vm3532, %v3982, 0
        %4050 = vmatprep.subr.bf16.mxu0 0
        %4051 = vmatpush1.bf16.msra.mxu0 %v4048
        %4052 = vmatprep.subr.bf16.mxu0 0
        %4053 = vmatpush1.bf16.msra.mxu0 0
        %4054 = vmatprep.subr.bf16.mxu0 0
        %4055 = vmatpush1.bf16.msra.mxu0 0
        %4056 = vmatprep.subr.bf16.mxu0 0
        %4057 = vmatpush1.bf16.msra.mxu0 0
        %4058 = vmatprep.subr.bf16.mxu0 0
        %4059 = vmatpush1.bf16.msra.mxu0 0
        %4060 = vmatprep.subr.bf16.mxu0 0
        %4061 = vmatpush1.bf16.msra.mxu0 0
        %4062 = vmatprep.subr.bf16.mxu0 0
        %4063 = vmatpush1.bf16.msra.mxu0 0
        %4064 = vmatprep.subr.bf16.mxu0 0
        %4065 = vmatpush1.bf16.msra.mxu0 0
        %4066 = vmatprep.subr.bf16.mxu0 0
        %4067 = vmatpush1.bf16.msra.mxu0 0
        %4068 = vmatprep.subr.bf16.mxu0 0
        %4069 = vmatpush1.bf16.msra.mxu0 0
        %4070 = vmatprep.subr.bf16.mxu0 0
        %4071 = vmatpush1.bf16.msra.mxu0 0
        %4072 = vmatprep.subr.bf16.mxu0 0
        %4073 = vmatpush1.bf16.msra.mxu0 0
        %4074 = vmatprep.subr.bf16.mxu0 0
        %4075 = vmatpush1.bf16.msra.mxu0 0
        %4076 = vmatprep.subr.bf16.mxu0 0
        %4077 = vmatpush1.bf16.msra.mxu0 0
        %4078 = vmatprep.subr.bf16.mxu0 0
        %4079 = vmatpush1.bf16.msra.mxu0 0
        %4080 = vmatprep.subr.bf16.mxu0 0
        %4081 = vmatpush1.bf16.msra.mxu0 0
        %4082 = vmatprep.mubr.bf16.mxu0 0
        %4083 = vmatmul.mubr.bf16.gmra.mrb[0].mxu0 %v4024
        %v4084 = vpop.f32.mrb[0].mxu0
        %v4085 = vadd.f32 0.0, %v4084
        %v4086 = vpop.f32.mrb[0].mxu0
        %v4087 = vpop.f32.mrb[0].mxu0
        %v4088 = vadd.f32 0.0, %v4087
        %v4089 = vpop.f32.mrb[0].mxu0
        %4090 = vmatprep.mubr.bf16.mxu0 0
        %4091 = vmatmul.mubr.bf16.gmra.mrb[0].mxu0 %v4027
        %v4092 = vpop.f32.mrb[0].mxu0
        %v4093 = vadd.f32 0.0, %v4092
        %v4094 = vpop.f32.mrb[0].mxu0
        %v4095 = vpop.f32.mrb[0].mxu0
        %v4096 = vadd.f32 0.0, %v4095
        %v4097 = vpop.f32.mrb[0].mxu0
        %4098 = vmatprep.mubr.bf16.mxu0 0
        %4099 = vmatmul.mubr.bf16.gmra.mrb[0].mxu0 %v4030
        %v4100 = vpop.f32.mrb[0].mxu0
        %v4101 = vadd.f32 0.0, %v4100
        %v4102 = vpop.f32.mrb[0].mxu0
        %v4103 = vpop.f32.mrb[0].mxu0
        %v4104 = vadd.f32 0.0, %v4103
        %v4105 = vpop.f32.mrb[0].mxu0
        %4106 = vmatprep.mubr.bf16.mxu0 0
        %4107 = vmatmul.mubr.bf16.gmra.mrb[0].mxu0 %v4033
        %v4108 = vpop.f32.mrb[0].mxu0
        %v4109 = vadd.f32 0.0, %v4108
        %v4110 = vpop.f32.mrb[0].mxu0
        %v4111 = vpop.f32.mrb[0].mxu0
        %v4112 = vadd.f32 0.0, %v4111
        %v4113 = vpop.f32.mrb[0].mxu0
        %4114 = vmatprep.mubr.bf16.mxu0 0
        %4115 = vmatmul.mubr.bf16.gmra.mrb[0].mxu0 %v4036
        %v4116 = vpop.f32.mrb[0].mxu0
        %v4117 = vadd.f32 0.0, %v4116
        %v4118 = vpop.f32.mrb[0].mxu0
        %v4119 = vpop.f32.mrb[0].mxu0
        %v4120 = vadd.f32 0.0, %v4119
        %v4121 = vpop.f32.mrb[0].mxu0
        %4122 = vmatprep.mubr.bf16.mxu0 0
        %4123 = vmatmul.mubr.bf16.gmra.mrb[0].mxu0 %v4039
        %v4124 = vpop.f32.mrb[0].mxu0
        %v4125 = vadd.f32 0.0, %v4124
        %v4126 = vpop.f32.mrb[0].mxu0
        %v4127 = vpop.f32.mrb[0].mxu0
        %v4128 = vadd.f32 0.0, %v4127
        %v4129 = vpop.f32.mrb[0].mxu0
        %4130 = vmatprep.mubr.bf16.mxu0 0
        %4131 = vmatmul.mubr.bf16.gmra.mrb[0].mxu0 %v4042
        %v4132 = vpop.f32.mrb[0].mxu0
        %v4133 = vadd.f32 0.0, %v4132
        %v4134 = vpop.f32.mrb[0].mxu0
        %v4135 = vpop.f32.mrb[0].mxu0
        %v4136 = vadd.f32 0.0, %v4135
        %v4137 = vpop.f32.mrb[0].mxu0
        %4138 = vmatprep.mubr.bf16.mxu0 0
        %4139 = vmatmul.mubr.bf16.gmra.mrb[0].mxu0 %v4045
        %v4140 = vpop.f32.mrb[0].mxu0
        %v4141 = vadd.f32 0.0, %v4140
        %v4142 = vpop.f32.mrb[0].mxu0
        %v4143 = vpop.f32.mrb[0].mxu0
        %v4144 = vadd.f32 0.0, %v4143
        %v4145 = vpop.f32.mrb[0].mxu0
        %4146 = vdwg.mxu0
        %v4147 = vadd.f32 %v3946, %v4085
        %v4148 = vadd.f32 %v3947, %v4088
        %v4149 = vadd.f32 %v3948, %v4093
        %v4150 = vadd.f32 %v3949, %v4096
        %v4151 = vadd.f32 %v3950, %v4101
        %v4152 = vadd.f32 %v3951, %v4104
        %v4153 = vadd.f32 %v3952, %v4109
        %v4154 = vadd.f32 %v3953, %v4112
        %v4155 = vadd.f32 %v3954, %v4117
        %v4156 = vadd.f32 %v3955, %v4120
        %v4157 = vadd.f32 %v3956, %v4125
        %v4158 = vadd.f32 %v3957, %v4128
        %v4159 = vadd.f32 %v3958, %v4133
        %v4160 = vadd.f32 %v3959, %v4136
        %v4161 = vadd.f32 %v3960, %v4141
        %v4162 = vadd.f32 %v3961, %v4144
        %v4163 = vld [vmem:[%s3965] sm:$0xc]
        %v4164 = vld [vmem:[%s3965 + $0x4] sm:$0xf]
        %v4165 = vld [vmem:[%s3965 + $0x8] sm:$0x3]
        %v4166 = vld [vmem:[%s3965 + $0xc] sm:$0xc]
        %v4167 = vld [vmem:[%s3965 + $0x10] sm:$0xf]
        %v4168 = vld [vmem:[%s3965 + $0x14] sm:$0x3]
        %v4169 = vld [vmem:[%s3965 + $0x18] sm:$0xc]
        %v4170 = vld [vmem:[%s3965 + $0x1c] sm:$0xf]
        %v4171 = vld [vmem:[%s3965 + $0x20] sm:$0x3]
        %v4172 = vld [vmem:[%s3965 + $0x24] sm:$0xc]
        %v4173 = vld [vmem:[%s3965 + $0x28] sm:$0xf]
        %v4174 = vld [vmem:[%s3965 + $0x2c] sm:$0x3]
        %v4175 = vld [vmem:[%s3965 + $0x30] sm:$0xc]
        %v4176 = vld [vmem:[%s3965 + $0x34] sm:$0xf]
        %v4177 = vld [vmem:[%s3965 + $0x38] sm:$0x3]
        %v4178 = vld [vmem:[%s3965 + $0x3c] sm:$0xc]
        %v4179 = vld [vmem:[%s3965 + $0x40] sm:$0xf]
        %v4180 = vld [vmem:[%s3965 + $0x44] sm:$0x3]
        %v4181 = vld [vmem:[%s3965 + $0x48] sm:$0xc]
        %v4182 = vld [vmem:[%s3965 + $0x4c] sm:$0xf]
        %v4183 = vld [vmem:[%s3965 + $0x50] sm:$0x3]
        %v4184 = vld [vmem:[%s3965 + $0x54] sm:$0xc]
        %v4185 = vld [vmem:[%s3965 + $0x58] sm:$0xf]
        %v4186 = vld [vmem:[%s3965 + $0x5c] sm:$0x3]
        %v4211 = vrot.slane %v4163, 6
        %v4212 = vrot.slane %v4211, 4
        %v4213 = vrot.slane %v4164, 6
        %v4214 = vsel %vm3425, %v4212, %v4213
        %v4215 = vrot.slane %v4213, 4
        %v4216 = vrot.slane %v4165, 6
        %v4217 = vsel %vm3425, %v4215, %v4216
        %v4218 = vrot.slane %v4166, 6
        %v4219 = vrot.slane %v4218, 4
        %v4220 = vrot.slane %v4167, 6
        %v4221 = vsel %vm3425, %v4219, %v4220
        %v4222 = vrot.slane %v4220, 4
        %v4223 = vrot.slane %v4168, 6
        %v4224 = vsel %vm3425, %v4222, %v4223
        %v4225 = vrot.slane %v4169, 6
        %v4226 = vrot.slane %v4225, 4
        %v4227 = vrot.slane %v4170, 6
        %v4228 = vsel %vm3425, %v4226, %v4227
        %v4229 = vrot.slane %v4227, 4
        %v4230 = vrot.slane %v4171, 6
        %v4231 = vsel %vm3425, %v4229, %v4230
        %v4232 = vrot.slane %v4172, 6
        %v4233 = vrot.slane %v4232, 4
        %v4234 = vrot.slane %v4173, 6
        %v4235 = vsel %vm3425, %v4233, %v4234
        %v4236 = vrot.slane %v4234, 4
        %v4237 = vrot.slane %v4174, 6
        %v4238 = vsel %vm3425, %v4236, %v4237
        %v4239 = vrot.slane %v4175, 6
        %v4240 = vrot.slane %v4239, 4
        %v4241 = vrot.slane %v4176, 6
        %v4242 = vsel %vm3425, %v4240, %v4241
        %v4243 = vrot.slane %v4241, 4
        %v4244 = vrot.slane %v4177, 6
        %v4245 = vsel %vm3425, %v4243, %v4244
        %v4246 = vrot.slane %v4178, 6
        %v4247 = vrot.slane %v4246, 4
        %v4248 = vrot.slane %v4179, 6
        %v4249 = vsel %vm3425, %v4247, %v4248
        %v4250 = vrot.slane %v4248, 4
        %v4251 = vrot.slane %v4180, 6
        %v4252 = vsel %vm3425, %v4250, %v4251
        %v4253 = vrot.slane %v4181, 6
        %v4254 = vrot.slane %v4253, 4
        %v4255 = vrot.slane %v4182, 6
        %v4256 = vsel %vm3425, %v4254, %v4255
        %v4257 = vrot.slane %v4255, 4
        %v4258 = vrot.slane %v4183, 6
        %v4259 = vsel %vm3425, %v4257, %v4258
        %v4260 = vrot.slane %v4184, 6
        %v4261 = vrot.slane %v4260, 4
        %v4262 = vrot.slane %v4185, 6
        %v4263 = vsel %vm3425, %v4261, %v4262
        %v4264 = vrot.slane %v4262, 4
        %v4265 = vrot.slane %v4186, 6
        %v4266 = vsel %vm3425, %v4264, %v4265
        %v4267 = vld [vmem:[%s290 + $0x10] sm:$0xf]
        %v4268 = vunpack.c.l.b16 %v4214
        %v4269 = vunpack.c.l.b16 %v4217
        %v4270 = vunpack.c.l.b16 %v4221
        %v4271 = vunpack.c.l.b16 %v4224
        %v4272 = vunpack.c.l.b16 %v4228
        %v4273 = vunpack.c.l.b16 %v4231
        %v4274 = vunpack.c.l.b16 %v4235
        %v4275 = vunpack.c.l.b16 %v4238
        %v4276 = vunpack.c.l.b16 %v4242
        %v4277 = vunpack.c.l.b16 %v4245
        %v4278 = vunpack.c.l.b16 %v4249
        %v4279 = vunpack.c.l.b16 %v4252
        %v4280 = vunpack.c.l.b16 %v4256
        %v4281 = vunpack.c.l.b16 %v4259
        %v4282 = vunpack.c.l.b16 %v4263
        %v4283 = vunpack.c.l.b16 %v4266
        %v4284 = vpack.c.b16 %v4269, %v4268
        %v4285 = vpack.c.b16 %v4271, %v4270
        %v4286 = vpack.c.b16 %v4273, %v4272
        %v4287 = vpack.c.b16 %v4275, %v4274
        %v4288 = vpack.c.b16 %v4277, %v4276
        %v4289 = vpack.c.b16 %v4279, %v4278
        %v4290 = vpack.c.b16 %v4281, %v4280
        %v4291 = vpack.c.b16 %v4283, %v4282
        %v4293 = vsel %vm3507, %v4284, 0
        %v4296 = vsel %vm3507, %v4285, 0
        %v4299 = vsel %vm3507, %v4286, 0
        %v4302 = vsel %vm3507, %v4287, 0
        %v4305 = vsel %vm3507, %v4288, 0
        %v4308 = vsel %vm3507, %v4289, 0
        %v4311 = vsel %vm3507, %v4290, 0
        %v4314 = vsel %vm3507, %v4291, 0
        %v4317 = vsel %vm3532, %v4267, 0
        %4319 = vmatprep.subr.bf16.mxu0 0
        %4320 = vmatpush1.bf16.msra.mxu0 %v4317
        %4321 = vmatprep.subr.bf16.mxu0 0
        %4322 = vmatpush1.bf16.msra.mxu0 0
        %4323 = vmatprep.subr.bf16.mxu0 0
        %4324 = vmatpush1.bf16.msra.mxu0 0
        %4325 = vmatprep.subr.bf16.mxu0 0
        %4326 = vmatpush1.bf16.msra.mxu0 0
        %4327 = vmatprep.subr.bf16.mxu0 0
        %4328 = vmatpush1.bf16.msra.mxu0 0
        %4329 = vmatprep.subr.bf16.mxu0 0
        %4330 = vmatpush1.bf16.msra.mxu0 0
        %4331 = vmatprep.subr.bf16.mxu0 0
        %4332 = vmatpush1.bf16.msra.mxu0 0
        %4333 = vmatprep.subr.bf16.mxu0 0
        %4334 = vmatpush1.bf16.msra.mxu0 0
        %4335 = vmatprep.subr.bf16.mxu0 0
        %4336 = vmatpush1.bf16.msra.mxu0 0
        %4337 = vmatprep.subr.bf16.mxu0 0
        %4338 = vmatpush1.bf16.msra.mxu0 0
        %4339 = vmatprep.subr.bf16.mxu0 0
        %4340 = vmatpush1.bf16.msra.mxu0 0
        %4341 = vmatprep.subr.bf16.mxu0 0
        %4342 = vmatpush1.bf16.msra.mxu0 0
        %4343 = vmatprep.subr.bf16.mxu0 0
        %4344 = vmatpush1.bf16.msra.mxu0 0
        %4345 = vmatprep.subr.bf16.mxu0 0
        %4346 = vmatpush1.bf16.msra.mxu0 0
        %4347 = vmatprep.subr.bf16.mxu0 0
        %4348 = vmatpush1.bf16.msra.mxu0 0
        %4349 = vmatprep.subr.bf16.mxu0 0
        %4350 = vmatpush1.bf16.msra.mxu0 0
        %4351 = vmatprep.mubr.bf16.mxu0 0
        %4352 = vmatmul.mubr.bf16.gmra.mrb[0].mxu0 %v4293
        %v4353 = vpop.f32.mrb[0].mxu0
        %v4354 = vadd.f32 0.0, %v4353
        %v4355 = vpop.f32.mrb[0].mxu0
        %v4356 = vpop.f32.mrb[0].mxu0
        %v4357 = vadd.f32 0.0, %v4356
        %v4358 = vpop.f32.mrb[0].mxu0
        %4359 = vmatprep.mubr.bf16.mxu0 0
        %4360 = vmatmul.mubr.bf16.gmra.mrb[0].mxu0 %v4296
        %v4361 = vpop.f32.mrb[0].mxu0
        %v4362 = vadd.f32 0.0, %v4361
        %v4363 = vpop.f32.mrb[0].mxu0
        %v4364 = vpop.f32.mrb[0].mxu0
        %v4365 = vadd.f32 0.0, %v4364
        %v4366 = vpop.f32.mrb[0].mxu0
        %4367 = vmatprep.mubr.bf16.mxu0 0
        %4368 = vmatmul.mubr.bf16.gmra.mrb[0].mxu0 %v4299
        %v4369 = vpop.f32.mrb[0].mxu0
        %v4370 = vadd.f32 0.0, %v4369
        %v4371 = vpop.f32.mrb[0].mxu0
        %v4372 = vpop.f32.mrb[0].mxu0
        %v4373 = vadd.f32 0.0, %v4372
        %v4374 = vpop.f32.mrb[0].mxu0
        %4375 = vmatprep.mubr.bf16.mxu0 0
        %4376 = vmatmul.mubr.bf16.gmra.mrb[0].mxu0 %v4302
        %v4377 = vpop.f32.mrb[0].mxu0
        %v4378 = vadd.f32 0.0, %v4377
        %v4379 = vpop.f32.mrb[0].mxu0
        %v4380 = vpop.f32.mrb[0].mxu0
        %v4381 = vadd.f32 0.0, %v4380
        %v4382 = vpop.f32.mrb[0].mxu0
        %4383 = vmatprep.mubr.bf16.mxu0 0
        %4384 = vmatmul.mubr.bf16.gmra.mrb[0].mxu0 %v4305
        %v4385 = vpop.f32.mrb[0].mxu0
        %v4386 = vadd.f32 0.0, %v4385
        %v4387 = vpop.f32.mrb[0].mxu0
        %v4388 = vpop.f32.mrb[0].mxu0
        %v4389 = vadd.f32 0.0, %v4388
        %v4390 = vpop.f32.mrb[0].mxu0
        %4391 = vmatprep.mubr.bf16.mxu0 0
        %4392 = vmatmul.mubr.bf16.gmra.mrb[0].mxu0 %v4308
        %v4393 = vpop.f32.mrb[0].mxu0
        %v4394 = vadd.f32 0.0, %v4393
        %v4395 = vpop.f32.mrb[0].mxu0
        %v4396 = vpop.f32.mrb[0].mxu0
        %v4397 = vadd.f32 0.0, %v4396
        %v4398 = vpop.f32.mrb[0].mxu0
        %4399 = vmatprep.mubr.bf16.mxu0 0
        %4400 = vmatmul.mubr.bf16.gmra.mrb[0].mxu0 %v4311
        %v4401 = vpop.f32.mrb[0].mxu0
        %v4402 = vadd.f32 0.0, %v4401
        %v4403 = vpop.f32.mrb[0].mxu0
        %v4404 = vpop.f32.mrb[0].mxu0
        %v4405 = vadd.f32 0.0, %v4404
        %v4406 = vpop.f32.mrb[0].mxu0
        %4407 = vmatprep.mubr.bf16.mxu0 0
        %4408 = vmatmul.mubr.bf16.gmra.mrb[0].mxu0 %v4314
        %v4409 = vpop.f32.mrb[0].mxu0
        %v4410 = vadd.f32 0.0, %v4409
        %v4411 = vpop.f32.mrb[0].mxu0
        %v4412 = vpop.f32.mrb[0].mxu0
        %v4413 = vadd.f32 0.0, %v4412
        %v4414 = vpop.f32.mrb[0].mxu0
        %4415 = vdwg.mxu0
        %v4416 = vadd.f32 %v4147, %v4354
        %v4417 = vadd.f32 %v4148, %v4357
        %v4418 = vadd.f32 %v4149, %v4362
        %v4419 = vadd.f32 %v4150, %v4365
        %v4420 = vadd.f32 %v4151, %v4370
        %v4421 = vadd.f32 %v4152, %v4373
        %v4422 = vadd.f32 %v4153, %v4378
        %v4423 = vadd.f32 %v4154, %v4381
        %v4424 = vadd.f32 %v4155, %v4386
        %v4425 = vadd.f32 %v4156, %v4389
        %v4426 = vadd.f32 %v4157, %v4394
        %v4427 = vadd.f32 %v4158, %v4397
        %v4428 = vadd.f32 %v4159, %v4402
        %v4429 = vadd.f32 %v4160, %v4405
        %v4430 = vadd.f32 %v4161, %v4410
        %v4431 = vadd.f32 %v4162, %v4413
        %v4432 = vld [vmem:[%s3965 + $0x8] sm:$0xf]
        %v4433 = vld [vmem:[%s3965 + $0x14] sm:$0xf]
        %v4434 = vld [vmem:[%s3965 + $0x20] sm:$0xf]
        %v4435 = vld [vmem:[%s3965 + $0x2c] sm:$0xf]
        %v4436 = vld [vmem:[%s3965 + $0x38] sm:$0xf]
        %v4437 = vld [vmem:[%s3965 + $0x44] sm:$0xf]
        %v4438 = vld [vmem:[%s3965 + $0x50] sm:$0xf]
        %v4439 = vld [vmem:[%s3965 + $0x5c] sm:$0xf]
        %v4440 = vld [vmem:[%s290 + $0x14] sm:$0xf]
        %v4449 = vunpack.c.l.b16 %v4164
        %v4450 = vunpack.c.l.b16 %v4432
        %v4451 = vunpack.c.l.b16 %v4167
        %v4452 = vunpack.c.l.b16 %v4433
        %v4453 = vunpack.c.l.b16 %v4170
        %v4454 = vunpack.c.l.b16 %v4434
        %v4455 = vunpack.c.l.b16 %v4173
        %v4456 = vunpack.c.l.b16 %v4435
        %v4457 = vunpack.c.l.b16 %v4176
        %v4458 = vunpack.c.l.b16 %v4436
        %v4459 = vunpack.c.l.b16 %v4179
        %v4460 = vunpack.c.l.b16 %v4437
        %v4461 = vunpack.c.l.b16 %v4182
        %v4462 = vunpack.c.l.b16 %v4438
        %v4463 = vunpack.c.l.b16 %v4185
        %v4464 = vunpack.c.l.b16 %v4439
        %v4465 = vpack.c.b16 %v4450, %v4449
        %v4466 = vpack.c.b16 %v4452, %v4451
        %v4467 = vpack.c.b16 %v4454, %v4453
        %v4468 = vpack.c.b16 %v4456, %v4455
        %v4469 = vpack.c.b16 %v4458, %v4457
        %v4470 = vpack.c.b16 %v4460, %v4459
        %v4471 = vpack.c.b16 %v4462, %v4461
        %v4472 = vpack.c.b16 %v4464, %v4463
        %v4474 = vsel %vm3507, %v4465, 0
        %v4477 = vsel %vm3507, %v4466, 0
        %v4480 = vsel %vm3507, %v4467, 0
        %v4483 = vsel %vm3507, %v4468, 0
        %v4486 = vsel %vm3507, %v4469, 0
        %v4489 = vsel %vm3507, %v4470, 0
        %v4492 = vsel %vm3507, %v4471, 0
        %v4495 = vsel %vm3507, %v4472, 0
        %v4498 = vsel %vm3532, %v4440, 0
        %4500 = vmatprep.subr.bf16.mxu0 0
        %4501 = vmatpush1.bf16.msra.mxu0 %v4498
        %4502 = vmatprep.subr.bf16.mxu0 0
        %4503 = vmatpush1.bf16.msra.mxu0 0
        %4504 = vmatprep.subr.bf16.mxu0 0
        %4505 = vmatpush1.bf16.msra.mxu0 0
        %4506 = vmatprep.subr.bf16.mxu0 0
        %4507 = vmatpush1.bf16.msra.mxu0 0
        %4508 = vmatprep.subr.bf16.mxu0 0
        %4509 = vmatpush1.bf16.msra.mxu0 0
        %4510 = vmatprep.subr.bf16.mxu0 0
        %4511 = vmatpush1.bf16.msra.mxu0 0
        %4512 = vmatprep.subr.bf16.mxu0 0
        %4513 = vmatpush1.bf16.msra.mxu0 0
        %4514 = vmatprep.subr.bf16.mxu0 0
        %4515 = vmatpush1.bf16.msra.mxu0 0
        %4516 = vmatprep.subr.bf16.mxu0 0
        %4517 = vmatpush1.bf16.msra.mxu0 0
        %4518 = vmatprep.subr.bf16.mxu0 0
        %4519 = vmatpush1.bf16.msra.mxu0 0
        %4520 = vmatprep.subr.bf16.mxu0 0
        %4521 = vmatpush1.bf16.msra.mxu0 0
        %4522 = vmatprep.subr.bf16.mxu0 0
        %4523 = vmatpush1.bf16.msra.mxu0 0
        %4524 = vmatprep.subr.bf16.mxu0 0
        %4525 = vmatpush1.bf16.msra.mxu0 0
        %4526 = vmatprep.subr.bf16.mxu0 0
        %4527 = vmatpush1.bf16.msra.mxu0 0
        %4528 = vmatprep.subr.bf16.mxu0 0
        %4529 = vmatpush1.bf16.msra.mxu0 0
        %4530 = vmatprep.subr.bf16.mxu0 0
        %4531 = vmatpush1.bf16.msra.mxu0 0
        %4532 = vmatprep.mubr.bf16.mxu0 0
        %4533 = vmatmul.mubr.bf16.gmra.mrb[0].mxu0 %v4474
        %v4534 = vpop.f32.mrb[0].mxu0
        %v4535 = vadd.f32 0.0, %v4534
        %v4536 = vpop.f32.mrb[0].mxu0
        %v4537 = vpop.f32.mrb[0].mxu0
        %v4538 = vadd.f32 0.0, %v4537
        %v4539 = vpop.f32.mrb[0].mxu0
        %4540 = vmatprep.mubr.bf16.mxu0 0
        %4541 = vmatmul.mubr.bf16.gmra.mrb[0].mxu0 %v4477
        %v4542 = vpop.f32.mrb[0].mxu0
        %v4543 = vadd.f32 0.0, %v4542
        %v4544 = vpop.f32.mrb[0].mxu0
        %v4545 = vpop.f32.mrb[0].mxu0
        %v4546 = vadd.f32 0.0, %v4545
        %v4547 = vpop.f32.mrb[0].mxu0
        %4548 = vmatprep.mubr.bf16.mxu0 0
        %4549 = vmatmul.mubr.bf16.gmra.mrb[0].mxu0 %v4480
        %v4550 = vpop.f32.mrb[0].mxu0
        %v4551 = vadd.f32 0.0, %v4550
        %v4552 = vpop.f32.mrb[0].mxu0
        %v4553 = vpop.f32.mrb[0].mxu0
        %v4554 = vadd.f32 0.0, %v4553
        %v4555 = vpop.f32.mrb[0].mxu0
        %4556 = vmatprep.mubr.bf16.mxu0 0
        %4557 = vmatmul.mubr.bf16.gmra.mrb[0].mxu0 %v4483
        %v4558 = vpop.f32.mrb[0].mxu0
        %v4559 = vadd.f32 0.0, %v4558
        %v4560 = vpop.f32.mrb[0].mxu0
        %v4561 = vpop.f32.mrb[0].mxu0
        %v4562 = vadd.f32 0.0, %v4561
        %v4563 = vpop.f32.mrb[0].mxu0
        %4564 = vmatprep.mubr.bf16.mxu0 0
        %4565 = vmatmul.mubr.bf16.gmra.mrb[0].mxu0 %v4486
        %v4566 = vpop.f32.mrb[0].mxu0
        %v4567 = vadd.f32 0.0, %v4566
        %v4568 = vpop.f32.mrb[0].mxu0
        %v4569 = vpop.f32.mrb[0].mxu0
        %v4570 = vadd.f32 0.0, %v4569
        %v4571 = vpop.f32.mrb[0].mxu0
        %4572 = vmatprep.mubr.bf16.mxu0 0
        %4573 = vmatmul.mubr.bf16.gmra.mrb[0].mxu0 %v4489
        %v4574 = vpop.f32.mrb[0].mxu0
        %v4575 = vadd.f32 0.0, %v4574
        %v4576 = vpop.f32.mrb[0].mxu0
        %v4577 = vpop.f32.mrb[0].mxu0
        %v4578 = vadd.f32 0.0, %v4577
        %v4579 = vpop.f32.mrb[0].mxu0
        %4580 = vmatprep.mubr.bf16.mxu0 0
        %4581 = vmatmul.mubr.bf16.gmra.mrb[0].mxu0 %v4492
        %v4582 = vpop.f32.mrb[0].mxu0
        %v4583 = vadd.f32 0.0, %v4582
        %v4584 = vpop.f32.mrb[0].mxu0
        %v4585 = vpop.f32.mrb[0].mxu0
        %v4586 = vadd.f32 0.0, %v4585
        %v4587 = vpop.f32.mrb[0].mxu0
        %4588 = vmatprep.mubr.bf16.mxu0 0
        %4589 = vmatmul.mubr.bf16.gmra.mrb[0].mxu0 %v4495
        %v4590 = vpop.f32.mrb[0].mxu0
        %v4591 = vadd.f32 0.0, %v4590
        %v4592 = vpop.f32.mrb[0].mxu0
        %v4593 = vpop.f32.mrb[0].mxu0
        %v4594 = vadd.f32 0.0, %v4593
        %v4595 = vpop.f32.mrb[0].mxu0
        %4596 = vdwg.mxu0
        %v4597 = vadd.f32 %v4416, %v4535
        %v4598 = vadd.f32 %v4417, %v4538
        %v4599 = vadd.f32 %v4418, %v4543
        %v4600 = vadd.f32 %v4419, %v4546
        %v4601 = vadd.f32 %v4420, %v4551
        %v4602 = vadd.f32 %v4421, %v4554
        %v4603 = vadd.f32 %v4422, %v4559
        %v4604 = vadd.f32 %v4423, %v4562
        %v4605 = vadd.f32 %v4424, %v4567
        %v4606 = vadd.f32 %v4425, %v4570
        %v4607 = vadd.f32 %v4426, %v4575
        %v4608 = vadd.f32 %v4427, %v4578
        %v4609 = vadd.f32 %v4428, %v4583
        %v4610 = vadd.f32 %v4429, %v4586
        %v4611 = vadd.f32 %v4430, %v4591
        %v4612 = vadd.f32 %v4431, %v4594
        %s4613 = sadd.s32 %s310, 8
        %s4614 = smul.u32 %s4613, 3
        %s4615 = smul.addr %s4614, 4
        %s4616 = scalar_lea.vmem %s285, %s4615
        %v4617 = vld [vmem:[%s4616] sm:$0xf]
        %v4618 = vld [vmem:[%s4616 + $0x4] sm:$0xf]
        %v4619 = vld [vmem:[%s4616 + $0xc] sm:$0xf]
        %v4620 = vld [vmem:[%s4616 + $0x10] sm:$0xf]
        %v4621 = vld [vmem:[%s4616 + $0x18] sm:$0xf]
        %v4622 = vld [vmem:[%s4616 + $0x1c] sm:$0xf]
        %v4623 = vld [vmem:[%s4616 + $0x24] sm:$0xf]
        %v4624 = vld [vmem:[%s4616 + $0x28] sm:$0xf]
        %v4625 = vld [vmem:[%s4616 + $0x30] sm:$0xf]
        %v4626 = vld [vmem:[%s4616 + $0x34] sm:$0xf]
        %v4627 = vld [vmem:[%s4616 + $0x3c] sm:$0xf]
        %v4628 = vld [vmem:[%s4616 + $0x40] sm:$0xf]
        %v4629 = vld [vmem:[%s4616 + $0x48] sm:$0xf]
        %v4630 = vld [vmem:[%s4616 + $0x4c] sm:$0xf]
        %v4631 = vld [vmem:[%s4616 + $0x54] sm:$0xf]
        %v4632 = vld [vmem:[%s4616 + $0x58] sm:$0xf]
        %v4633 = vld [vmem:[%s290 + $0x18] sm:$0xf]
        %v4650 = vunpack.c.l.b16 %v4617
        %v4651 = vunpack.c.l.b16 %v4618
        %v4652 = vunpack.c.l.b16 %v4619
        %v4653 = vunpack.c.l.b16 %v4620
        %v4654 = vunpack.c.l.b16 %v4621
        %v4655 = vunpack.c.l.b16 %v4622
        %v4656 = vunpack.c.l.b16 %v4623
        %v4657 = vunpack.c.l.b16 %v4624
        %v4658 = vunpack.c.l.b16 %v4625
        %v4659 = vunpack.c.l.b16 %v4626
        %v4660 = vunpack.c.l.b16 %v4627
        %v4661 = vunpack.c.l.b16 %v4628
        %v4662 = vunpack.c.l.b16 %v4629
        %v4663 = vunpack.c.l.b16 %v4630
        %v4664 = vunpack.c.l.b16 %v4631
        %v4665 = vunpack.c.l.b16 %v4632
        %v4666 = vpack.c.b16 %v4651, %v4650
        %v4667 = vpack.c.b16 %v4653, %v4652
        %v4668 = vpack.c.b16 %v4655, %v4654
        %v4669 = vpack.c.b16 %v4657, %v4656
        %v4670 = vpack.c.b16 %v4659, %v4658
        %v4671 = vpack.c.b16 %v4661, %v4660
        %v4672 = vpack.c.b16 %v4663, %v4662
        %v4673 = vpack.c.b16 %v4665, %v4664
        %v4675 = vsel %vm3507, %v4666, 0
        %v4678 = vsel %vm3507, %v4667, 0
        %v4681 = vsel %vm3507, %v4668, 0
        %v4684 = vsel %vm3507, %v4669, 0
        %v4687 = vsel %vm3507, %v4670, 0
        %v4690 = vsel %vm3507, %v4671, 0
        %v4693 = vsel %vm3507, %v4672, 0
        %v4696 = vsel %vm3507, %v4673, 0
        %v4699 = vsel %vm3532, %v4633, 0
        %4701 = vmatprep.subr.bf16.mxu0 0
        %4702 = vmatpush1.bf16.msra.mxu0 %v4699
        %4703 = vmatprep.subr.bf16.mxu0 0
        %4704 = vmatpush1.bf16.msra.mxu0 0
        %4705 = vmatprep.subr.bf16.mxu0 0
        %4706 = vmatpush1.bf16.msra.mxu0 0
        %4707 = vmatprep.subr.bf16.mxu0 0
        %4708 = vmatpush1.bf16.msra.mxu0 0
        %4709 = vmatprep.subr.bf16.mxu0 0
        %4710 = vmatpush1.bf16.msra.mxu0 0
        %4711 = vmatprep.subr.bf16.mxu0 0
        %4712 = vmatpush1.bf16.msra.mxu0 0
        %4713 = vmatprep.subr.bf16.mxu0 0
        %4714 = vmatpush1.bf16.msra.mxu0 0
        %4715 = vmatprep.subr.bf16.mxu0 0
        %4716 = vmatpush1.bf16.msra.mxu0 0
        %4717 = vmatprep.subr.bf16.mxu0 0
        %4718 = vmatpush1.bf16.msra.mxu0 0
        %4719 = vmatprep.subr.bf16.mxu0 0
        %4720 = vmatpush1.bf16.msra.mxu0 0
        %4721 = vmatprep.subr.bf16.mxu0 0
        %4722 = vmatpush1.bf16.msra.mxu0 0
        %4723 = vmatprep.subr.bf16.mxu0 0
        %4724 = vmatpush1.bf16.msra.mxu0 0
        %4725 = vmatprep.subr.bf16.mxu0 0
        %4726 = vmatpush1.bf16.msra.mxu0 0
        %4727 = vmatprep.subr.bf16.mxu0 0
        %4728 = vmatpush1.bf16.msra.mxu0 0
        %4729 = vmatprep.subr.bf16.mxu0 0
        %4730 = vmatpush1.bf16.msra.mxu0 0
        %4731 = vmatprep.subr.bf16.mxu0 0
        %4732 = vmatpush1.bf16.msra.mxu0 0
        %4733 = vmatprep.mubr.bf16.mxu0 0
        %4734 = vmatmul.mubr.bf16.gmra.mrb[0].mxu0 %v4675
        %v4735 = vpop.f32.mrb[0].mxu0
        %v4736 = vadd.f32 0.0, %v4735
        %v4737 = vpop.f32.mrb[0].mxu0
        %v4738 = vpop.f32.mrb[0].mxu0
        %v4739 = vadd.f32 0.0, %v4738
        %v4740 = vpop.f32.mrb[0].mxu0
        %4741 = vmatprep.mubr.bf16.mxu0 0
        %4742 = vmatmul.mubr.bf16.gmra.mrb[0].mxu0 %v4678
        %v4743 = vpop.f32.mrb[0].mxu0
        %v4744 = vadd.f32 0.0, %v4743
        %v4745 = vpop.f32.mrb[0].mxu0
        %v4746 = vpop.f32.mrb[0].mxu0
        %v4747 = vadd.f32 0.0, %v4746
        %v4748 = vpop.f32.mrb[0].mxu0
        %4749 = vmatprep.mubr.bf16.mxu0 0
        %4750 = vmatmul.mubr.bf16.gmra.mrb[0].mxu0 %v4681
        %v4751 = vpop.f32.mrb[0].mxu0
        %v4752 = vadd.f32 0.0, %v4751
        %v4753 = vpop.f32.mrb[0].mxu0
        %v4754 = vpop.f32.mrb[0].mxu0
        %v4755 = vadd.f32 0.0, %v4754
        %v4756 = vpop.f32.mrb[0].mxu0
        %4757 = vmatprep.mubr.bf16.mxu0 0
        %4758 = vmatmul.mubr.bf16.gmra.mrb[0].mxu0 %v4684
        %v4759 = vpop.f32.mrb[0].mxu0
        %v4760 = vadd.f32 0.0, %v4759
        %v4761 = vpop.f32.mrb[0].mxu0
        %v4762 = vpop.f32.mrb[0].mxu0
        %v4763 = vadd.f32 0.0, %v4762
        %v4764 = vpop.f32.mrb[0].mxu0
        %4765 = vmatprep.mubr.bf16.mxu0 0
        %4766 = vmatmul.mubr.bf16.gmra.mrb[0].mxu0 %v4687
        %v4767 = vpop.f32.mrb[0].mxu0
        %v4768 = vadd.f32 0.0, %v4767
        %v4769 = vpop.f32.mrb[0].mxu0
        %v4770 = vpop.f32.mrb[0].mxu0
        %v4771 = vadd.f32 0.0, %v4770
        %v4772 = vpop.f32.mrb[0].mxu0
        %4773 = vmatprep.mubr.bf16.mxu0 0
        %4774 = vmatmul.mubr.bf16.gmra.mrb[0].mxu0 %v4690
        %v4775 = vpop.f32.mrb[0].mxu0
        %v4776 = vadd.f32 0.0, %v4775
        %v4777 = vpop.f32.mrb[0].mxu0
        %v4778 = vpop.f32.mrb[0].mxu0
        %v4779 = vadd.f32 0.0, %v4778
        %v4780 = vpop.f32.mrb[0].mxu0
        %4781 = vmatprep.mubr.bf16.mxu0 0
        %4782 = vmatmul.mubr.bf16.gmra.mrb[0].mxu0 %v4693
        %v4783 = vpop.f32.mrb[0].mxu0
        %v4784 = vadd.f32 0.0, %v4783
        %v4785 = vpop.f32.mrb[0].mxu0
        %v4786 = vpop.f32.mrb[0].mxu0
        %v4787 = vadd.f32 0.0, %v4786
        %v4788 = vpop.f32.mrb[0].mxu0
        %4789 = vmatprep.mubr.bf16.mxu0 0
        %4790 = vmatmul.mubr.bf16.gmra.mrb[0].mxu0 %v4696
        %v4791 = vpop.f32.mrb[0].mxu0
        %v4792 = vadd.f32 0.0, %v4791
        %v4793 = vpop.f32.mrb[0].mxu0
        %v4794 = vpop.f32.mrb[0].mxu0
        %v4795 = vadd.f32 0.0, %v4794
        %v4796 = vpop.f32.mrb[0].mxu0
        %4797 = vdwg.mxu0
        %v4798 = vadd.f32 %v4597, %v4736
        %v4799 = vadd.f32 %v4598, %v4739
        %v4800 = vadd.f32 %v4599, %v4744
        %v4801 = vadd.f32 %v4600, %v4747
        %v4802 = vadd.f32 %v4601, %v4752
        %v4803 = vadd.f32 %v4602, %v4755
        %v4804 = vadd.f32 %v4603, %v4760
        %v4805 = vadd.f32 %v4604, %v4763
        %v4806 = vadd.f32 %v4605, %v4768
        %v4807 = vadd.f32 %v4606, %v4771
        %v4808 = vadd.f32 %v4607, %v4776
        %v4809 = vadd.f32 %v4608, %v4779
        %v4810 = vadd.f32 %v4609, %v4784
        %v4811 = vadd.f32 %v4610, %v4787
        %v4812 = vadd.f32 %v4611, %v4792
        %v4813 = vadd.f32 %v4612, %v4795
        %v4814 = vld [vmem:[%s4616] sm:$0xc]
        %v4815 = vld [vmem:[%s4616 + $0x4] sm:$0xf]
        %v4816 = vld [vmem:[%s4616 + $0x8] sm:$0x3]
        %v4817 = vld [vmem:[%s4616 + $0xc] sm:$0xc]
        %v4818 = vld [vmem:[%s4616 + $0x10] sm:$0xf]
        %v4819 = vld [vmem:[%s4616 + $0x14] sm:$0x3]
        %v4820 = vld [vmem:[%s4616 + $0x18] sm:$0xc]
        %v4821 = vld [vmem:[%s4616 + $0x1c] sm:$0xf]
        %v4822 = vld [vmem:[%s4616 + $0x20] sm:$0x3]
        %v4823 = vld [vmem:[%s4616 + $0x24] sm:$0xc]
        %v4824 = vld [vmem:[%s4616 + $0x28] sm:$0xf]
        %v4825 = vld [vmem:[%s4616 + $0x2c] sm:$0x3]
        %v4826 = vld [vmem:[%s4616 + $0x30] sm:$0xc]
        %v4827 = vld [vmem:[%s4616 + $0x34] sm:$0xf]
        %v4828 = vld [vmem:[%s4616 + $0x38] sm:$0x3]
        %v4829 = vld [vmem:[%s4616 + $0x3c] sm:$0xc]
        %v4830 = vld [vmem:[%s4616 + $0x40] sm:$0xf]
        %v4831 = vld [vmem:[%s4616 + $0x44] sm:$0x3]
        %v4832 = vld [vmem:[%s4616 + $0x48] sm:$0xc]
        %v4833 = vld [vmem:[%s4616 + $0x4c] sm:$0xf]
        %v4834 = vld [vmem:[%s4616 + $0x50] sm:$0x3]
        %v4835 = vld [vmem:[%s4616 + $0x54] sm:$0xc]
        %v4836 = vld [vmem:[%s4616 + $0x58] sm:$0xf]
        %v4837 = vld [vmem:[%s4616 + $0x5c] sm:$0x3]
        %v4862 = vrot.slane %v4814, 6
        %v4863 = vrot.slane %v4862, 4
        %v4864 = vrot.slane %v4815, 6
        %v4865 = vsel %vm3425, %v4863, %v4864
        %v4866 = vrot.slane %v4864, 4
        %v4867 = vrot.slane %v4816, 6
        %v4868 = vsel %vm3425, %v4866, %v4867
        %v4869 = vrot.slane %v4817, 6
        %v4870 = vrot.slane %v4869, 4
        %v4871 = vrot.slane %v4818, 6
        %v4872 = vsel %vm3425, %v4870, %v4871
        %v4873 = vrot.slane %v4871, 4
        %v4874 = vrot.slane %v4819, 6
        %v4875 = vsel %vm3425, %v4873, %v4874
        %v4876 = vrot.slane %v4820, 6
        %v4877 = vrot.slane %v4876, 4
        %v4878 = vrot.slane %v4821, 6
        %v4879 = vsel %vm3425, %v4877, %v4878
        %v4880 = vrot.slane %v4878, 4
        %v4881 = vrot.slane %v4822, 6
        %v4882 = vsel %vm3425, %v4880, %v4881
        %v4883 = vrot.slane %v4823, 6
        %v4884 = vrot.slane %v4883, 4
        %v4885 = vrot.slane %v4824, 6
        %v4886 = vsel %vm3425, %v4884, %v4885
        %v4887 = vrot.slane %v4885, 4
        %v4888 = vrot.slane %v4825, 6
        %v4889 = vsel %vm3425, %v4887, %v4888
        %v4890 = vrot.slane %v4826, 6
        %v4891 = vrot.slane %v4890, 4
        %v4892 = vrot.slane %v4827, 6
        %v4893 = vsel %vm3425, %v4891, %v4892
        %v4894 = vrot.slane %v4892, 4
        %v4895 = vrot.slane %v4828, 6
        %v4896 = vsel %vm3425, %v4894, %v4895
        %v4897 = vrot.slane %v4829, 6
        %v4898 = vrot.slane %v4897, 4
        %v4899 = vrot.slane %v4830, 6
        %v4900 = vsel %vm3425, %v4898, %v4899
        %v4901 = vrot.slane %v4899, 4
        %v4902 = vrot.slane %v4831, 6
        %v4903 = vsel %vm3425, %v4901, %v4902
        %v4904 = vrot.slane %v4832, 6
        %v4905 = vrot.slane %v4904, 4
        %v4906 = vrot.slane %v4833, 6
        %v4907 = vsel %vm3425, %v4905, %v4906
        %v4908 = vrot.slane %v4906, 4
        %v4909 = vrot.slane %v4834, 6
        %v4910 = vsel %vm3425, %v4908, %v4909
        %v4911 = vrot.slane %v4835, 6
        %v4912 = vrot.slane %v4911, 4
        %v4913 = vrot.slane %v4836, 6
        %v4914 = vsel %vm3425, %v4912, %v4913
        %v4915 = vrot.slane %v4913, 4
        %v4916 = vrot.slane %v4837, 6
        %v4917 = vsel %vm3425, %v4915, %v4916
        %v4918 = vld [vmem:[%s290 + $0x1c] sm:$0xf]
        %v4919 = vunpack.c.l.b16 %v4865
        %v4920 = vunpack.c.l.b16 %v4868
        %v4921 = vunpack.c.l.b16 %v4872
        %v4922 = vunpack.c.l.b16 %v4875
        %v4923 = vunpack.c.l.b16 %v4879
        %v4924 = vunpack.c.l.b16 %v4882
        %v4925 = vunpack.c.l.b16 %v4886
        %v4926 = vunpack.c.l.b16 %v4889
        %v4927 = vunpack.c.l.b16 %v4893
        %v4928 = vunpack.c.l.b16 %v4896
        %v4929 = vunpack.c.l.b16 %v4900
        %v4930 = vunpack.c.l.b16 %v4903
        %v4931 = vunpack.c.l.b16 %v4907
        %v4932 = vunpack.c.l.b16 %v4910
        %v4933 = vunpack.c.l.b16 %v4914
        %v4934 = vunpack.c.l.b16 %v4917
        %v4935 = vpack.c.b16 %v4920, %v4919
        %v4936 = vpack.c.b16 %v4922, %v4921
        %v4937 = vpack.c.b16 %v4924, %v4923
        %v4938 = vpack.c.b16 %v4926, %v4925
        %v4939 = vpack.c.b16 %v4928, %v4927
        %v4940 = vpack.c.b16 %v4930, %v4929
        %v4941 = vpack.c.b16 %v4932, %v4931
        %v4942 = vpack.c.b16 %v4934, %v4933
        %v4944 = vsel %vm3507, %v4935, 0
        %v4947 = vsel %vm3507, %v4936, 0
        %v4950 = vsel %vm3507, %v4937, 0
        %v4953 = vsel %vm3507, %v4938, 0
        %v4956 = vsel %vm3507, %v4939, 0
        %v4959 = vsel %vm3507, %v4940, 0
        %v4962 = vsel %vm3507, %v4941, 0
        %v4965 = vsel %vm3507, %v4942, 0
        %v4968 = vsel %vm3532, %v4918, 0
        %4970 = vmatprep.subr.bf16.mxu0 0
        %4971 = vmatpush1.bf16.msra.mxu0 %v4968
        %4972 = vmatprep.subr.bf16.mxu0 0
        %4973 = vmatpush1.bf16.msra.mxu0 0
        %4974 = vmatprep.subr.bf16.mxu0 0
        %4975 = vmatpush1.bf16.msra.mxu0 0
        %4976 = vmatprep.subr.bf16.mxu0 0
        %4977 = vmatpush1.bf16.msra.mxu0 0
        %4978 = vmatprep.subr.bf16.mxu0 0
        %4979 = vmatpush1.bf16.msra.mxu0 0
        %4980 = vmatprep.subr.bf16.mxu0 0
        %4981 = vmatpush1.bf16.msra.mxu0 0
        %4982 = vmatprep.subr.bf16.mxu0 0
        %4983 = vmatpush1.bf16.msra.mxu0 0
        %4984 = vmatprep.subr.bf16.mxu0 0
        %4985 = vmatpush1.bf16.msra.mxu0 0
        %4986 = vmatprep.subr.bf16.mxu0 0
        %4987 = vmatpush1.bf16.msra.mxu0 0
        %4988 = vmatprep.subr.bf16.mxu0 0
        %4989 = vmatpush1.bf16.msra.mxu0 0
        %4990 = vmatprep.subr.bf16.mxu0 0
        %4991 = vmatpush1.bf16.msra.mxu0 0
        %4992 = vmatprep.subr.bf16.mxu0 0
        %4993 = vmatpush1.bf16.msra.mxu0 0
        %4994 = vmatprep.subr.bf16.mxu0 0
        %4995 = vmatpush1.bf16.msra.mxu0 0
        %4996 = vmatprep.subr.bf16.mxu0 0
        %4997 = vmatpush1.bf16.msra.mxu0 0
        %4998 = vmatprep.subr.bf16.mxu0 0
        %4999 = vmatpush1.bf16.msra.mxu0 0
        %5000 = vmatprep.subr.bf16.mxu0 0
        %5001 = vmatpush1.bf16.msra.mxu0 0
        %5002 = vmatprep.mubr.bf16.mxu0 0
        %5003 = vmatmul.mubr.bf16.gmra.mrb[0].mxu0 %v4944
        %v5004 = vpop.f32.mrb[0].mxu0
        %v5005 = vadd.f32 0.0, %v5004
        %v5006 = vpop.f32.mrb[0].mxu0
        %v5007 = vpop.f32.mrb[0].mxu0
        %v5008 = vadd.f32 0.0, %v5007
        %v5009 = vpop.f32.mrb[0].mxu0
        %5010 = vmatprep.mubr.bf16.mxu0 0
        %5011 = vmatmul.mubr.bf16.gmra.mrb[0].mxu0 %v4947
        %v5012 = vpop.f32.mrb[0].mxu0
        %v5013 = vadd.f32 0.0, %v5012
        %v5014 = vpop.f32.mrb[0].mxu0
        %v5015 = vpop.f32.mrb[0].mxu0
        %v5016 = vadd.f32 0.0, %v5015
        %v5017 = vpop.f32.mrb[0].mxu0
        %5018 = vmatprep.mubr.bf16.mxu0 0
        %5019 = vmatmul.mubr.bf16.gmra.mrb[0].mxu0 %v4950
        %v5020 = vpop.f32.mrb[0].mxu0
        %v5021 = vadd.f32 0.0, %v5020
        %v5022 = vpop.f32.mrb[0].mxu0
        %v5023 = vpop.f32.mrb[0].mxu0
        %v5024 = vadd.f32 0.0, %v5023
        %v5025 = vpop.f32.mrb[0].mxu0
        %5026 = vmatprep.mubr.bf16.mxu0 0
        %5027 = vmatmul.mubr.bf16.gmra.mrb[0].mxu0 %v4953
        %v5028 = vpop.f32.mrb[0].mxu0
        %v5029 = vadd.f32 0.0, %v5028
        %v5030 = vpop.f32.mrb[0].mxu0
        %v5031 = vpop.f32.mrb[0].mxu0
        %v5032 = vadd.f32 0.0, %v5031
        %v5033 = vpop.f32.mrb[0].mxu0
        %5034 = vmatprep.mubr.bf16.mxu0 0
        %5035 = vmatmul.mubr.bf16.gmra.mrb[0].mxu0 %v4956
        %v5036 = vpop.f32.mrb[0].mxu0
        %v5037 = vadd.f32 0.0, %v5036
        %v5038 = vpop.f32.mrb[0].mxu0
        %v5039 = vpop.f32.mrb[0].mxu0
        %v5040 = vadd.f32 0.0, %v5039
        %v5041 = vpop.f32.mrb[0].mxu0
        %5042 = vmatprep.mubr.bf16.mxu0 0
        %5043 = vmatmul.mubr.bf16.gmra.mrb[0].mxu0 %v4959
        %v5044 = vpop.f32.mrb[0].mxu0
        %v5045 = vadd.f32 0.0, %v5044
        %v5046 = vpop.f32.mrb[0].mxu0
        %v5047 = vpop.f32.mrb[0].mxu0
        %v5048 = vadd.f32 0.0, %v5047
        %v5049 = vpop.f32.mrb[0].mxu0
        %5050 = vmatprep.mubr.bf16.mxu0 0
        %5051 = vmatmul.mubr.bf16.gmra.mrb[0].mxu0 %v4962
        %v5052 = vpop.f32.mrb[0].mxu0
        %v5053 = vadd.f32 0.0, %v5052
        %v5054 = vpop.f32.mrb[0].mxu0
        %v5055 = vpop.f32.mrb[0].mxu0
        %v5056 = vadd.f32 0.0, %v5055
        %v5057 = vpop.f32.mrb[0].mxu0
        %5058 = vmatprep.mubr.bf16.mxu0 0
        %5059 = vmatmul.mubr.bf16.gmra.mrb[0].mxu0 %v4965
        %v5060 = vpop.f32.mrb[0].mxu0
        %v5061 = vadd.f32 0.0, %v5060
        %v5062 = vpop.f32.mrb[0].mxu0
        %v5063 = vpop.f32.mrb[0].mxu0
        %v5064 = vadd.f32 0.0, %v5063
        %v5065 = vpop.f32.mrb[0].mxu0
        %5066 = vdwg.mxu0
        %v5067 = vadd.f32 %v4798, %v5005
        %v5068 = vadd.f32 %v4799, %v5008
        %v5069 = vadd.f32 %v4800, %v5013
        %v5070 = vadd.f32 %v4801, %v5016
        %v5071 = vadd.f32 %v4802, %v5021
        %v5072 = vadd.f32 %v4803, %v5024
        %v5073 = vadd.f32 %v4804, %v5029
        %v5074 = vadd.f32 %v4805, %v5032
        %v5075 = vadd.f32 %v4806, %v5037
        %v5076 = vadd.f32 %v4807, %v5040
        %v5077 = vadd.f32 %v4808, %v5045
        %v5078 = vadd.f32 %v4809, %v5048
        %v5079 = vadd.f32 %v4810, %v5053
        %v5080 = vadd.f32 %v4811, %v5056
        %v5081 = vadd.f32 %v4812, %v5061
        %v5082 = vadd.f32 %v4813, %v5064
        %v5083 = vld [vmem:[%s4616 + $0x8] sm:$0xf]
        %v5084 = vld [vmem:[%s4616 + $0x14] sm:$0xf]
        %v5085 = vld [vmem:[%s4616 + $0x20] sm:$0xf]
        %v5086 = vld [vmem:[%s4616 + $0x2c] sm:$0xf]
        %v5087 = vld [vmem:[%s4616 + $0x38] sm:$0xf]
        %v5088 = vld [vmem:[%s4616 + $0x44] sm:$0xf]
        %v5089 = vld [vmem:[%s4616 + $0x50] sm:$0xf]
        %v5090 = vld [vmem:[%s4616 + $0x5c] sm:$0xf]
        %v5091 = vld [vmem:[%s290 + $0x20] sm:$0xf]
        %v5100 = vunpack.c.l.b16 %v4815
        %v5101 = vunpack.c.l.b16 %v5083
        %v5102 = vunpack.c.l.b16 %v4818
        %v5103 = vunpack.c.l.b16 %v5084
        %v5104 = vunpack.c.l.b16 %v4821
        %v5105 = vunpack.c.l.b16 %v5085
        %v5106 = vunpack.c.l.b16 %v4824
        %v5107 = vunpack.c.l.b16 %v5086
        %v5108 = vunpack.c.l.b16 %v4827
        %v5109 = vunpack.c.l.b16 %v5087
        %v5110 = vunpack.c.l.b16 %v4830
        %v5111 = vunpack.c.l.b16 %v5088
        %v5112 = vunpack.c.l.b16 %v4833
        %v5113 = vunpack.c.l.b16 %v5089
        %v5114 = vunpack.c.l.b16 %v4836
        %v5115 = vunpack.c.l.b16 %v5090
        %v5116 = vpack.c.b16 %v5101, %v5100
        %v5117 = vpack.c.b16 %v5103, %v5102
        %v5118 = vpack.c.b16 %v5105, %v5104
        %v5119 = vpack.c.b16 %v5107, %v5106
        %v5120 = vpack.c.b16 %v5109, %v5108
        %v5121 = vpack.c.b16 %v5111, %v5110
        %v5122 = vpack.c.b16 %v5113, %v5112
        %v5123 = vpack.c.b16 %v5115, %v5114
        %v5125 = vsel %vm3507, %v5116, 0
        %v5128 = vsel %vm3507, %v5117, 0
        %v5131 = vsel %vm3507, %v5118, 0
        %v5134 = vsel %vm3507, %v5119, 0
        %v5137 = vsel %vm3507, %v5120, 0
        %v5140 = vsel %vm3507, %v5121, 0
        %v5143 = vsel %vm3507, %v5122, 0
        %v5146 = vsel %vm3507, %v5123, 0
        %v5149 = vsel %vm3532, %v5091, 0
        %5151 = vmatprep.subr.bf16.mxu0 0
        %5152 = vmatpush1.bf16.msra.mxu0 %v5149
        %5153 = vmatprep.subr.bf16.mxu0 0
        %5154 = vmatpush1.bf16.msra.mxu0 0
        %5155 = vmatprep.subr.bf16.mxu0 0
        %5156 = vmatpush1.bf16.msra.mxu0 0
        %5157 = vmatprep.subr.bf16.mxu0 0
        %5158 = vmatpush1.bf16.msra.mxu0 0
        %5159 = vmatprep.subr.bf16.mxu0 0
        %5160 = vmatpush1.bf16.msra.mxu0 0
        %5161 = vmatprep.subr.bf16.mxu0 0
        %5162 = vmatpush1.bf16.msra.mxu0 0
        %5163 = vmatprep.subr.bf16.mxu0 0
        %5164 = vmatpush1.bf16.msra.mxu0 0
        %5165 = vmatprep.subr.bf16.mxu0 0
        %5166 = vmatpush1.bf16.msra.mxu0 0
        %5167 = vmatprep.subr.bf16.mxu0 0
        %5168 = vmatpush1.bf16.msra.mxu0 0
        %5169 = vmatprep.subr.bf16.mxu0 0
        %5170 = vmatpush1.bf16.msra.mxu0 0
        %5171 = vmatprep.subr.bf16.mxu0 0
        %5172 = vmatpush1.bf16.msra.mxu0 0
        %5173 = vmatprep.subr.bf16.mxu0 0
        %5174 = vmatpush1.bf16.msra.mxu0 0
        %5175 = vmatprep.subr.bf16.mxu0 0
        %5176 = vmatpush1.bf16.msra.mxu0 0
        %5177 = vmatprep.subr.bf16.mxu0 0
        %5178 = vmatpush1.bf16.msra.mxu0 0
        %5179 = vmatprep.subr.bf16.mxu0 0
        %5180 = vmatpush1.bf16.msra.mxu0 0
        %5181 = vmatprep.subr.bf16.mxu0 0
        %5182 = vmatpush1.bf16.msra.mxu0 0
        %5183 = vmatprep.mubr.bf16.mxu0 0
        %5184 = vmatmul.mubr.bf16.gmra.mrb[0].mxu0 %v5125
        %v5185 = vpop.f32.mrb[0].mxu0
        %v5186 = vadd.f32 0.0, %v5185
        %v5187 = vpop.f32.mrb[0].mxu0
        %v5188 = vpop.f32.mrb[0].mxu0
        %v5189 = vadd.f32 0.0, %v5188
        %v5190 = vpop.f32.mrb[0].mxu0
        %5191 = vmatprep.mubr.bf16.mxu0 0
        %5192 = vmatmul.mubr.bf16.gmra.mrb[0].mxu0 %v5128
        %v5193 = vpop.f32.mrb[0].mxu0
        %v5194 = vadd.f32 0.0, %v5193
        %v5195 = vpop.f32.mrb[0].mxu0
        %v5196 = vpop.f32.mrb[0].mxu0
        %v5197 = vadd.f32 0.0, %v5196
        %v5198 = vpop.f32.mrb[0].mxu0
        %5199 = vmatprep.mubr.bf16.mxu0 0
        %5200 = vmatmul.mubr.bf16.gmra.mrb[0].mxu0 %v5131
        %v5201 = vpop.f32.mrb[0].mxu0
        %v5202 = vadd.f32 0.0, %v5201
        %v5203 = vpop.f32.mrb[0].mxu0
        %v5204 = vpop.f32.mrb[0].mxu0
        %v5205 = vadd.f32 0.0, %v5204
        %v5206 = vpop.f32.mrb[0].mxu0
        %5207 = vmatprep.mubr.bf16.mxu0 0
        %5208 = vmatmul.mubr.bf16.gmra.mrb[0].mxu0 %v5134
        %v5209 = vpop.f32.mrb[0].mxu0
        %v5210 = vadd.f32 0.0, %v5209
        %v5211 = vpop.f32.mrb[0].mxu0
        %v5212 = vpop.f32.mrb[0].mxu0
        %v5213 = vadd.f32 0.0, %v5212
        %v5214 = vpop.f32.mrb[0].mxu0
        %5215 = vmatprep.mubr.bf16.mxu0 0
        %5216 = vmatmul.mubr.bf16.gmra.mrb[0].mxu0 %v5137
        %v5217 = vpop.f32.mrb[0].mxu0
        %v5218 = vadd.f32 0.0, %v5217
        %v5219 = vpop.f32.mrb[0].mxu0
        %v5220 = vpop.f32.mrb[0].mxu0
        %v5221 = vadd.f32 0.0, %v5220
        %v5222 = vpop.f32.mrb[0].mxu0
        %5223 = vmatprep.mubr.bf16.mxu0 0
        %5224 = vmatmul.mubr.bf16.gmra.mrb[0].mxu0 %v5140
        %v5225 = vpop.f32.mrb[0].mxu0
        %v5226 = vadd.f32 0.0, %v5225
        %v5227 = vpop.f32.mrb[0].mxu0
        %v5228 = vpop.f32.mrb[0].mxu0
        %v5229 = vadd.f32 0.0, %v5228
        %v5230 = vpop.f32.mrb[0].mxu0
        %5231 = vmatprep.mubr.bf16.mxu0 0
        %5232 = vmatmul.mubr.bf16.gmra.mrb[0].mxu0 %v5143
        %v5233 = vpop.f32.mrb[0].mxu0
        %v5234 = vadd.f32 0.0, %v5233
        %v5235 = vpop.f32.mrb[0].mxu0
        %v5236 = vpop.f32.mrb[0].mxu0
        %v5237 = vadd.f32 0.0, %v5236
        %v5238 = vpop.f32.mrb[0].mxu0
        %5239 = vmatprep.mubr.bf16.mxu0 0
        %5240 = vmatmul.mubr.bf16.gmra.mrb[0].mxu0 %v5146
        %v5241 = vpop.f32.mrb[0].mxu0
        %v5242 = vadd.f32 0.0, %v5241
        %v5243 = vpop.f32.mrb[0].mxu0
        %v5244 = vpop.f32.mrb[0].mxu0
        %v5245 = vadd.f32 0.0, %v5244
        %v5246 = vpop.f32.mrb[0].mxu0
        %5247 = vdwg.mxu0
        %v5248 = vadd.f32 %v5067, %v5186
        %v5249 = vadd.f32 %v5068, %v5189
        %v5250 = vadd.f32 %v5069, %v5194
        %v5251 = vadd.f32 %v5070, %v5197
        %v5252 = vadd.f32 %v5071, %v5202
        %v5253 = vadd.f32 %v5072, %v5205
        %v5254 = vadd.f32 %v5073, %v5210
        %v5255 = vadd.f32 %v5074, %v5213
        %v5256 = vadd.f32 %v5075, %v5218
        %v5257 = vadd.f32 %v5076, %v5221
        %v5258 = vadd.f32 %v5077, %v5226
        %v5259 = vadd.f32 %v5078, %v5229
        %v5260 = vadd.f32 %v5079, %v5234
        %v5261 = vadd.f32 %v5080, %v5237
        %v5262 = vadd.f32 %v5081, %v5242
        %v5263 = vadd.f32 %v5082, %v5245
        %v5264 = vld [vmem:[%s3 + $0x2] sm:$0x1]
        %v5265 = vlaneseq
        %v5266 = vshrl.u32 %v5265, 7
        %v5267 = vsub.s32 0, %v5266
        %v5268 = vrot.slane %v5264, %v5267
        %v5269 = vadd.f32 %v5248, %v5268
        %v5270 = vadd.f32 %v5249, %v5268
        %v5271 = vadd.f32 %v5250, %v5268
        %v5272 = vadd.f32 %v5251, %v5268
        %v5273 = vadd.f32 %v5252, %v5268
        %v5274 = vadd.f32 %v5253, %v5268
        %v5275 = vadd.f32 %v5254, %v5268
        %v5276 = vadd.f32 %v5255, %v5268
        %v5277 = vadd.f32 %v5256, %v5268
        %v5278 = vadd.f32 %v5257, %v5268
        %v5279 = vadd.f32 %v5258, %v5268
        %v5280 = vadd.f32 %v5259, %v5268
        %v5281 = vadd.f32 %v5260, %v5268
        %v5282 = vadd.f32 %v5261, %v5268
        %v5283 = vadd.f32 %v5262, %v5268
        %v5284 = vadd.f32 %v5263, %v5268
        %v5285 = vmax.f32 %v5269, 0.0
        %v5286 = vmax.f32 %v5270, 0.0
        %v5287 = vmax.f32 %v5271, 0.0
        %v5288 = vmax.f32 %v5272, 0.0
        %v5289 = vmax.f32 %v5273, 0.0
        %v5290 = vmax.f32 %v5274, 0.0
        %v5291 = vmax.f32 %v5275, 0.0
        %v5292 = vmax.f32 %v5276, 0.0
        %v5293 = vmax.f32 %v5277, 0.0
        %v5294 = vmax.f32 %v5278, 0.0
        %v5295 = vmax.f32 %v5279, 0.0
        %v5296 = vmax.f32 %v5280, 0.0
        %v5297 = vmax.f32 %v5281, 0.0
        %v5298 = vmax.f32 %v5282, 0.0
        %v5299 = vmax.f32 %v5283, 0.0
        %v5300 = vmax.f32 %v5284, 0.0
        %v5301 = vld [vmem:[#allocation2] sm:$0xff]
        %v5302 = vld [vmem:[#allocation2 + $0x8] sm:$0xff]
        %v5303 = vld [vmem:[#allocation2 + $0x10] sm:$0xff]
        %v5304 = vld [vmem:[#allocation2 + $0x18] sm:$0xff]
        %v5305 = vld [vmem:[#allocation2 + $0x20] sm:$0xff]
        %v5306 = vld [vmem:[#allocation2 + $0x28] sm:$0xff]
        %v5307 = vld [vmem:[#allocation2 + $0x30] sm:$0xff]
        %v5308 = vld [vmem:[#allocation2 + $0x38] sm:$0xff]
        %v5309 = vld [vmem:[#allocation2 + $0x40] sm:$0xff]
        %v5310 = vld [vmem:[#allocation2 + $0x48] sm:$0xff]
        %v5311 = vld [vmem:[#allocation2 + $0x50] sm:$0xff]
        %v5312 = vld [vmem:[#allocation2 + $0x58] sm:$0xff]
        %v5313 = vld [vmem:[#allocation2 + $0x60] sm:$0xff]
        %v5314 = vld [vmem:[#allocation2 + $0x68] sm:$0xff]
        %v5315 = vld [vmem:[#allocation2 + $0x70] sm:$0xff]
        %v5316 = vld [vmem:[#allocation2 + $0x78] sm:$0xff]
        %v5317 = vpack.c.bf16 %v5286, %v5285
        %v5318 = vpack.c.bf16 %v5288, %v5287
        %v5319 = vpack.c.bf16 %v5290, %v5289
        %v5320 = vpack.c.bf16 %v5292, %v5291
        %v5321 = vpack.c.bf16 %v5294, %v5293
        %v5322 = vpack.c.bf16 %v5296, %v5295
        %v5323 = vpack.c.bf16 %v5298, %v5297
        %v5324 = vpack.c.bf16 %v5300, %v5299
        %v5325 = vld [vmem:[%s295] sm:$0xf]
        %v5326 = vld [vmem:[%s295 + $0x4] sm:$0xf]
        %v5327 = vld [vmem:[%s295 + $0x8] sm:$0xf]
        %v5328 = vld [vmem:[%s295 + $0xc] sm:$0xf]
        %v5333 = vunpack.c.l.b16 %v5325
        %v5334 = vunpack.c.l.b16 %v5326
        %v5335 = vunpack.c.l.b16 %v5327
        %v5336 = vunpack.c.l.b16 %v5328
        %v5337 = vpack.c.b16 %v5334, %v5333
        %v5338 = vpack.c.b16 %v5336, %v5335
        %vm5341 = vcmask 261120
        %v5343 = vsel %vm5341, %v5317, 0
        %v5346 = vsel %vm5341, %v5318, 0
        %v5349 = vsel %vm5341, %v5319, 0
        %v5352 = vsel %vm5341, %v5320, 0
        %v5355 = vsel %vm5341, %v5321, 0
        %v5358 = vsel %vm5341, %v5322, 0
        %v5361 = vsel %vm5341, %v5323, 0
        %v5364 = vsel %vm5341, %v5324, 0
        %5366 = vmatprep.subr.bf16.mxu0 0
        %5367 = vmatpush1.bf16.msra.mxu0 %v5337
        %5368 = vmatprep.subr.bf16.mxu0 0
        %5369 = vmatpush1.bf16.msra.mxu0 %v5338
        %5370 = vmatprep.subr.bf16.mxu0 0
        %5371 = vmatpush1.bf16.msra.mxu0 0
        %5372 = vmatprep.subr.bf16.mxu0 0
        %5373 = vmatpush1.bf16.msra.mxu0 0
        %5374 = vmatprep.subr.bf16.mxu0 0
        %5375 = vmatpush1.bf16.msra.mxu0 0
        %5376 = vmatprep.subr.bf16.mxu0 0
        %5377 = vmatpush1.bf16.msra.mxu0 0
        %5378 = vmatprep.subr.bf16.mxu0 0
        %5379 = vmatpush1.bf16.msra.mxu0 0
        %5380 = vmatprep.subr.bf16.mxu0 0
        %5381 = vmatpush1.bf16.msra.mxu0 0
        %5382 = vmatprep.subr.bf16.mxu0 0
        %5383 = vmatpush1.bf16.msra.mxu0 0
        %5384 = vmatprep.subr.bf16.mxu0 0
        %5385 = vmatpush1.bf16.msra.mxu0 0
        %5386 = vmatprep.subr.bf16.mxu0 0
        %5387 = vmatpush1.bf16.msra.mxu0 0
        %5388 = vmatprep.subr.bf16.mxu0 0
        %5389 = vmatpush1.bf16.msra.mxu0 0
        %5390 = vmatprep.subr.bf16.mxu0 0
        %5391 = vmatpush1.bf16.msra.mxu0 0
        %5392 = vmatprep.subr.bf16.mxu0 0
        %5393 = vmatpush1.bf16.msra.mxu0 0
        %5394 = vmatprep.subr.bf16.mxu0 0
        %5395 = vmatpush1.bf16.msra.mxu0 0
        %5396 = vmatprep.subr.bf16.mxu0 0
        %5397 = vmatpush1.bf16.msra.mxu0 0
        %5398 = vmatprep.mubr.bf16.mxu0 0
        %5399 = vmatmul.mubr.bf16.gmra.mrb[0].mxu0 %v5343
        %v5400 = vpop.f32.mrb[0].mxu0
        %v5401 = vadd.f32 0.0, %v5400
        %v5402 = vpop.f32.mrb[0].mxu0
        %v5403 = vpop.f32.mrb[0].mxu0
        %v5404 = vadd.f32 0.0, %v5403
        %v5405 = vpop.f32.mrb[0].mxu0
        %5406 = vmatprep.mubr.bf16.mxu0 0
        %5407 = vmatmul.mubr.bf16.gmra.mrb[0].mxu0 %v5346
        %v5408 = vpop.f32.mrb[0].mxu0
        %v5409 = vadd.f32 0.0, %v5408
        %v5410 = vpop.f32.mrb[0].mxu0
        %v5411 = vpop.f32.mrb[0].mxu0
        %v5412 = vadd.f32 0.0, %v5411
        %v5413 = vpop.f32.mrb[0].mxu0
        %5414 = vmatprep.mubr.bf16.mxu0 0
        %5415 = vmatmul.mubr.bf16.gmra.mrb[0].mxu0 %v5349
        %v5416 = vpop.f32.mrb[0].mxu0
        %v5417 = vadd.f32 0.0, %v5416
        %v5418 = vpop.f32.mrb[0].mxu0
        %v5419 = vpop.f32.mrb[0].mxu0
        %v5420 = vadd.f32 0.0, %v5419
        %v5421 = vpop.f32.mrb[0].mxu0
        %5422 = vmatprep.mubr.bf16.mxu0 0
        %5423 = vmatmul.mubr.bf16.gmra.mrb[0].mxu0 %v5352
        %v5424 = vpop.f32.mrb[0].mxu0
        %v5425 = vadd.f32 0.0, %v5424
        %v5426 = vpop.f32.mrb[0].mxu0
        %v5427 = vpop.f32.mrb[0].mxu0
        %v5428 = vadd.f32 0.0, %v5427
        %v5429 = vpop.f32.mrb[0].mxu0
        %5430 = vmatprep.mubr.bf16.mxu0 0
        %5431 = vmatmul.mubr.bf16.gmra.mrb[0].mxu0 %v5355
        %v5432 = vpop.f32.mrb[0].mxu0
        %v5433 = vadd.f32 0.0, %v5432
        %v5434 = vpop.f32.mrb[0].mxu0
        %v5435 = vpop.f32.mrb[0].mxu0
        %v5436 = vadd.f32 0.0, %v5435
        %v5437 = vpop.f32.mrb[0].mxu0
        %5438 = vmatprep.mubr.bf16.mxu0 0
        %5439 = vmatmul.mubr.bf16.gmra.mrb[0].mxu0 %v5358
        %v5440 = vpop.f32.mrb[0].mxu0
        %v5441 = vadd.f32 0.0, %v5440
        %v5442 = vpop.f32.mrb[0].mxu0
        %v5443 = vpop.f32.mrb[0].mxu0
        %v5444 = vadd.f32 0.0, %v5443
        %v5445 = vpop.f32.mrb[0].mxu0
        %5446 = vmatprep.mubr.bf16.mxu0 0
        %5447 = vmatmul.mubr.bf16.gmra.mrb[0].mxu0 %v5361
        %v5448 = vpop.f32.mrb[0].mxu0
        %v5449 = vadd.f32 0.0, %v5448
        %v5450 = vpop.f32.mrb[0].mxu0
        %v5451 = vpop.f32.mrb[0].mxu0
        %v5452 = vadd.f32 0.0, %v5451
        %v5453 = vpop.f32.mrb[0].mxu0
        %5454 = vmatprep.mubr.bf16.mxu0 0
        %5455 = vmatmul.mubr.bf16.gmra.mrb[0].mxu0 %v5364
        %v5456 = vpop.f32.mrb[0].mxu0
        %v5457 = vadd.f32 0.0, %v5456
        %v5458 = vpop.f32.mrb[0].mxu0
        %v5459 = vpop.f32.mrb[0].mxu0
        %v5460 = vadd.f32 0.0, %v5459
        %v5461 = vpop.f32.mrb[0].mxu0
        %5462 = vdwg.mxu0
        %v5463 = vadd.f32 %v5301, %v5401
        %v5464 = vadd.f32 %v5302, %v5404
        %v5465 = vadd.f32 %v5303, %v5409
        %v5466 = vadd.f32 %v5304, %v5412
        %v5467 = vadd.f32 %v5305, %v5417
        %v5468 = vadd.f32 %v5306, %v5420
        %v5469 = vadd.f32 %v5307, %v5425
        %v5470 = vadd.f32 %v5308, %v5428
        %v5471 = vadd.f32 %v5309, %v5433
        %v5472 = vadd.f32 %v5310, %v5436
        %v5473 = vadd.f32 %v5311, %v5441
        %v5474 = vadd.f32 %v5312, %v5444
        %v5475 = vadd.f32 %v5313, %v5449
        %v5476 = vadd.f32 %v5314, %v5452
        %v5477 = vadd.f32 %v5315, %v5457
        %v5478 = vadd.f32 %v5316, %v5460
        %5479 = vst.msk [vmem:[#allocation2] sm:$0xff] %vm5341, %v5463
        %5480 = vst.msk [vmem:[#allocation2 + $0x8] sm:$0xff] %vm5341, %v5464
        %5481 = vst.msk [vmem:[#allocation2 + $0x10] sm:$0xff] %vm5341, %v5465
        %5482 = vst.msk [vmem:[#allocation2 + $0x18] sm:$0xff] %vm5341, %v5466
        %5483 = vst.msk [vmem:[#allocation2 + $0x20] sm:$0xff] %vm5341, %v5467
        %5484 = vst.msk [vmem:[#allocation2 + $0x28] sm:$0xff] %vm5341, %v5468
        %5485 = vst.msk [vmem:[#allocation2 + $0x30] sm:$0xff] %vm5341, %v5469
        %5486 = vst.msk [vmem:[#allocation2 + $0x38] sm:$0xff] %vm5341, %v5470
        %5487 = vst.msk [vmem:[#allocation2 + $0x40] sm:$0xff] %vm5341, %v5471
        %5488 = vst.msk [vmem:[#allocation2 + $0x48] sm:$0xff] %vm5341, %v5472
        %5489 = vst.msk [vmem:[#allocation2 + $0x50] sm:$0xff] %vm5341, %v5473
        %5490 = vst.msk [vmem:[#allocation2 + $0x58] sm:$0xff] %vm5341, %v5474
        %5491 = vst.msk [vmem:[#allocation2 + $0x60] sm:$0xff] %vm5341, %v5475
        %5492 = vst.msk [vmem:[#allocation2 + $0x68] sm:$0xff] %vm5341, %v5476
        %5493 = vst.msk [vmem:[#allocation2 + $0x70] sm:$0xff] %vm5341, %v5477
        %5494 = vst.msk [vmem:[#allocation2 + $0x78] sm:$0xff] %vm5341, %v5478
        %v5495 = vld [vmem:[#allocation2] sm:$0xff]
        %v5496 = vld [vmem:[#allocation2 + $0x8] sm:$0xff]
        %v5497 = vld [vmem:[#allocation2 + $0x10] sm:$0xff]
        %v5498 = vld [vmem:[#allocation2 + $0x18] sm:$0xff]
        %v5499 = vld [vmem:[#allocation2 + $0x20] sm:$0xff]
        %v5500 = vld [vmem:[#allocation2 + $0x28] sm:$0xff]
        %v5501 = vld [vmem:[#allocation2 + $0x30] sm:$0xff]
        %v5502 = vld [vmem:[#allocation2 + $0x38] sm:$0xff]
        %v5503 = vld [vmem:[#allocation2 + $0x40] sm:$0xff]
        %v5504 = vld [vmem:[#allocation2 + $0x48] sm:$0xff]
        %v5505 = vld [vmem:[#allocation2 + $0x50] sm:$0xff]
        %v5506 = vld [vmem:[#allocation2 + $0x58] sm:$0xff]
        %v5507 = vld [vmem:[#allocation2 + $0x60] sm:$0xff]
        %v5508 = vld [vmem:[#allocation2 + $0x68] sm:$0xff]
        %v5509 = vld [vmem:[#allocation2 + $0x70] sm:$0xff]
        %v5510 = vld [vmem:[#allocation2 + $0x78] sm:$0xff]
        %v5511 = vld [vmem:[%s298] sm:$0x1]
        %v5513 = vlaneseq
        %v5514 = vshrl.u32 %v5513, 7
        %v5515 = vsub.s32 0, %v5514
        %v5516 = vrot.slane %v5511, %v5515
        %v5518 = vadd.f32 %v5495, %v5516
        %v5519 = vadd.f32 %v5496, %v5516
        %v5520 = vadd.f32 %v5497, %v5516
        %v5521 = vadd.f32 %v5498, %v5516
        %v5522 = vadd.f32 %v5499, %v5516
        %v5523 = vadd.f32 %v5500, %v5516
        %v5524 = vadd.f32 %v5501, %v5516
        %v5525 = vadd.f32 %v5502, %v5516
        %v5526 = vadd.f32 %v5503, %v5516
        %v5527 = vadd.f32 %v5504, %v5516
        %v5528 = vadd.f32 %v5505, %v5516
        %v5529 = vadd.f32 %v5506, %v5516
        %v5530 = vadd.f32 %v5507, %v5516
        %v5531 = vadd.f32 %v5508, %v5516
        %v5532 = vadd.f32 %v5509, %v5516
        %v5533 = vadd.f32 %v5510, %v5516
        %v5534 = vmax.f32 %v5518, 0.0
        %v5535 = vmax.f32 %v5519, 0.0
        %v5536 = vmax.f32 %v5520, 0.0
        %v5537 = vmax.f32 %v5521, 0.0
        %v5538 = vmax.f32 %v5522, 0.0
        %v5539 = vmax.f32 %v5523, 0.0
        %v5540 = vmax.f32 %v5524, 0.0
        %v5541 = vmax.f32 %v5525, 0.0
        %v5542 = vmax.f32 %v5526, 0.0
        %v5543 = vmax.f32 %v5527, 0.0
        %v5544 = vmax.f32 %v5528, 0.0
        %v5545 = vmax.f32 %v5529, 0.0
        %v5546 = vmax.f32 %v5530, 0.0
        %v5547 = vmax.f32 %v5531, 0.0
        %v5548 = vmax.f32 %v5532, 0.0
        %v5549 = vmax.f32 %v5533, 0.0
        %5550 = vst.msk [vmem:[%s307] sm:$0xff] %vm5341, %v5534
        %5551 = vst.msk [vmem:[%s307 + $0x8] sm:$0xff] %vm5341, %v5535
        %5552 = vst.msk [vmem:[%s307 + $0x10] sm:$0xff] %vm5341, %v5536
        %5553 = vst.msk [vmem:[%s307 + $0x18] sm:$0xff] %vm5341, %v5537
        %5554 = vst.msk [vmem:[%s307 + $0x20] sm:$0xff] %vm5341, %v5538
        %5555 = vst.msk [vmem:[%s307 + $0x28] sm:$0xff] %vm5341, %v5539
        %5556 = vst.msk [vmem:[%s307 + $0x30] sm:$0xff] %vm5341, %v5540
        %5557 = vst.msk [vmem:[%s307 + $0x38] sm:$0xff] %vm5341, %v5541
        %5558 = vst.msk [vmem:[%s307 + $0x40] sm:$0xff] %vm5341, %v5542
        %5559 = vst.msk [vmem:[%s307 + $0x48] sm:$0xff] %vm5341, %v5543
        %5560 = vst.msk [vmem:[%s307 + $0x50] sm:$0xff] %vm5341, %v5544
        %5561 = vst.msk [vmem:[%s307 + $0x58] sm:$0xff] %vm5341, %v5545
        %5562 = vst.msk [vmem:[%s307 + $0x60] sm:$0xff] %vm5341, %v5546
        %5563 = vst.msk [vmem:[%s307 + $0x68] sm:$0xff] %vm5341, %v5547
        %5564 = vst.msk [vmem:[%s307 + $0x70] sm:$0xff] %vm5341, %v5548
        %5565 = vst.msk [vmem:[%s307 + $0x78] sm:$0xff] %vm5341, %v5549
      $region52: #{tpu_custom_call.1} parent=39 // pred_fallthru
        _
      %s5566 = smul.u32 16, %s22
      %p5567 = scmp.lt.s32.totalorder %s21, 1
      %s5568 = scalar_select %p5567, %s21, 1
      %p5569 = scmp.lt.s32.totalorder %s5566, 31
      %s5570 = scalar_select %p5569, %s5566, 31
      %s5571 = smul.addr %s5568, 32
      %s5572 = sadd.s32 %s5570, %s5571
      %s5573 = smul.addr %s5572, 8
      %s5574 = scalar_lea.vmem %s5, %s5573
      // Predicated region
      $region53: #{tpu_custom_call.1} parent=39 // pred_check
        %p5575 = pneg %p180
      $region54: #{tpu_custom_call.1} parent=39 // pred_check_branch
        %5577 = sbr.rel (%p5575) target = $region56
      $region55: #{tpu_custom_call.1} parent=39 // pred_region
        %s5578 = smul.u32 16, %s22
      $region56: #{tpu_custom_call.1} parent=39 // pred_fallthru
        _
    $region40: #{tpu_custom_call.1} parent=5 // pred_fallthru
      _
    %p5579 = scmp.le.s32.totalorder 2, %s11
    // Predicated region
    $region57: #{tpu_custom_call.1} parent=5 // pred_check
      %p5580 = pneg %p5579
    $region58: #{tpu_custom_call.1} parent=5 // pred_check_branch
      %5582 = sbr.rel (%p5580) target = $region60
    $region59: #{tpu_custom_call.1} parent=5 // pred_region
      %s5583 = ssub.s32 %s11, 2
      // Predicated region
      $region61: #{tpu_custom_call.1} parent=59 // pred_check
        %p5584 = pneg %p186
      $region62: #{tpu_custom_call.1} parent=59 // pred_check_branch
        %5586 = sbr.rel (%p5584) target = $region64
      $region63: #{tpu_custom_call.1} parent=59 // pred_region
        %s5587 = smul.u32 16, %s25
        %p5588 = scmp.lt.s32.totalorder %s24, 1
        %s5589 = scalar_select %p5588, %s24, 1
        %p5590 = scmp.lt.s32.totalorder %s5587, 31
        %s5591 = scalar_select %p5590, %s5587, 31
        %s5592 = smul.addr %s5589, 32
        %s5593 = sadd.s32 %s5591, %s5592
        %s5594 = smul.addr %s5593, 8
        %s5595 = scalar_lea.vmem %s5, %s5594
      $region64: #{tpu_custom_call.1} parent=59 // pred_fallthru
        _
    $region60: #{tpu_custom_call.1} parent=5 // pred_fallthru
      _
  $region6: #{tpu_custom_call.1} parent=0 // loop_footer
    %s15 = sadd.s32 1, %s11
  $region7: #{tpu_custom_call.1} parent=0 // loop_footer_branch
    %10 = sbr.rel target = $region3
  $region8: #{tpu_custom_call.1} parent=0 // loop_exit
    _

</llo_original>
